<compile_context>
chip_gen: v6e
topology: v6e:2x2x1
jax: 0.10.0
libtpu: 0.0.40
codegen_flags: <defaults>
</compile_context>

<pallas_src>
import functools

import jax
import jax.numpy as jnp
from jax.experimental import pallas as pl
from jax.experimental.pallas import tpu as pltpu

VMEM = pltpu.MemorySpace.VMEM
LANE = 128            # lane-padding target for feature dims
ASSIGN_RATIO = 0.25


# --------------------------- in-kernel helpers -------------------------------

def _mm(a, b, dims=None):
    """bf16-input / f32-accumulate matmul; `dims` allows transposed contractions."""
    if dims is None:
        dims = (((a.ndim - 1,), (0,)), ((), ()))
    return jax.lax.dot_general(
        a.astype(jnp.bfloat16), b.astype(jnp.bfloat16),
        dimension_numbers=dims, preferred_element_type=jnp.float32)


def _softmax_lastdim(logits):
    logits = logits - jnp.max(logits, axis=-1, keepdims=True)
    e = jnp.exp(logits)
    return e / jnp.sum(e, axis=-1, keepdims=True)


# --------------------------- fused forward kernel ----------------------------

def _make_fused_kernel(*, batch_size, num_layer, n_stages, assign_dim1):
    assert n_stages >= 1, "readout path assumes pool_num_layer >= 2"
    npg = assign_dim1 // batch_size  # node_per_pool_graph after first DiffPool

    def kernel(*refs):
        o_ref = refs[-1]
        it = iter(refs[:-1])
        src_oh = next(it)[...]
        dst_oh = next(it)[...]
        x = next(it)[...]
        fe_w = next(it)[...]
        fe_b = next(it)[...]
        ig_w = next(it)            # (L, EP, EP)  stacked input-GNN weights (bf16)
        ig_b = next(it)            # (L, 1, EP)   f32
        we1 = next(it)[...]
        be1 = next(it)[...]
        wa1 = next(it)[...]
        ba1 = next(it)[...]
        fg_w = next(it)            # (L, EP, EP)  stacked first (per-graph) GNN
        fg_b = next(it)
        stage_refs = [tuple(next(it) for _ in range(6)) for _ in range(n_stages)]
        pred_w = next(it)[...]
        pred_b = next(it)[...]

        # dense adjacency A = one_hot(src)^T @ one_hot(dst)  (duplicates sum), on MXU
        adj = _mm(src_oh, dst_oh, dims=(((0,), (0,)), ((), ())))        # (N, N) f32

        # FeatureEncoder: Linear(in_dim -> emb), lane-padded to 128
        h = _mm(x, fe_w) + fe_b                                         # (N, EP)

        # input GNN (JK='last'): relu(A @ H @ W + b), all layers fused
        for l in range(num_layer):
            ax = _mm(adj, h)
            h = jnp.maximum(_mm(ax, ig_w[l]) + ig_b[l], 0.0)

        # first DiffPool over the whole batched graph (A@H shared by both branches)
        ax = _mm(adj, h)
        z = jnp.maximum(_mm(ax, we1) + be1, 0.0)                        # (N, EP)
        s = _softmax_lastdim(_mm(ax, wa1) + ba1)                        # (N, K1)
        hp = _mm(s, z, dims=(((0,), (0,)), ((), ())))                   # S^T Z  (K1, EP)
        a_s = _mm(adj, s)                                               # A S    (N, K1)
        ap = _mm(s, a_s, dims=(((0,), (0,)), ((), ())))                 # S^T A S (K1, K1)

        # batch2tensor (diagonal blocks) + per-graph stages, statically unrolled
        row = jax.lax.broadcasted_iota(jnp.int32, (assign_dim1, npg), 0)
        col = jax.lax.broadcasted_iota(jnp.int32, (assign_dim1, npg), 1)
        outs = []
        for b in range(batch_size):
            # 0/1 selection matrix picks this graph's pooled rows / diagonal block
            e_b = (row == col + b * npg).astype(jnp.float32)            # (K1, npg)
            hb = _mm(e_b, hp, dims=(((0,), (0,)), ((), ())))            # (npg, EP)
            ab = _mm(e_b, _mm(ap, e_b), dims=(((0,), (0,)), ((), ())))  # (npg, npg)

            # first (per-graph) GNN layers
            for l in range(num_layer):
                axb = _mm(ab, hb)
                hb = jnp.maximum(_mm(axb, fg_w[l]) + fg_b[l], 0.0)

            # remaining DiffPool + GNN stages
            for (we, be, wa, ba, gw, gb) in stage_refs:
                axb = _mm(ab, hb)
                zb = jnp.maximum(_mm(axb, we[...]) + be[...], 0.0)
                sb = _softmax_lastdim(_mm(axb, wa[...]) + ba[...])
                hb = _mm(sb, zb, dims=(((0,), (0,)), ((), ())))         # (K_s, EP)
                asb = _mm(ab, sb)
                ab = _mm(sb, asb, dims=(((0,), (0,)), ((), ())))        # (K_s, K_s)
                for l in range(num_layer):
                    axb = _mm(ab, hb)
                    hb = jnp.maximum(_mm(axb, gw[l]) + gb[l], 0.0)

            # readout: max over the node/cluster axis (torch.max(h, dim=1)[0])
            outs.append(jnp.max(hb, axis=0, keepdims=True))             # (1, EP)

        out = jnp.concatenate(outs, axis=0)                             # (B, EP)

        # graph_pred_linear fused into the epilogue (readout_concat=='True' is False)
        o_ref[...] = _mm(out, pred_w) + pred_b

    return kernel


# --------------------------- parameters --------------------------------------

def init_model_params(key, in_dim, emb_dim, num_tasks, assign_dim1, assign_dim2,
                      num_layer, pool_num_layer):
    keys = iter(jax.random.split(key, 64))

    def w(shape, scale=0.1):
        return (scale * jax.random.normal(next(keys), shape)).astype(jnp.float32)

    p = {
        "fe_w": w((in_dim, emb_dim)), "fe_b": w((1, emb_dim)),
        "input_gnn": [(w((emb_dim, emb_dim)), w((1, emb_dim)))
                      for _ in range(num_layer)],
        "dp1": (w((emb_dim, emb_dim)), w((1, emb_dim)),
                w((emb_dim, assign_dim1)), w((1, assign_dim1))),
        "first_gnn": [(w((emb_dim, emb_dim)), w((1, emb_dim)))
                      for _ in range(num_layer)],
        "dp_layers": [], "gnn_layers": [],
        "pred_w": w((emb_dim, num_tasks)), "pred_b": w((1, num_tasks)),
    }
    a_dim = assign_dim2
    for _ in range(pool_num_layer - 1):
        p["dp_layers"].append((w((emb_dim, emb_dim)), w((1, emb_dim)),
                               w((emb_dim, a_dim)), w((1, a_dim))))
        p["gnn_layers"].append([(w((emb_dim, emb_dim)), w((1, emb_dim)))
                                for _ in range(num_layer)])
        a_dim = max(1, int(a_dim * ASSIGN_RATIO))
    return p


def _pad_to(a, shape):
    return jnp.pad(a, [(0, t - s) for s, t in zip(a.shape, shape)])


def _padw(a, shape):
    """Zero-pad and store as bf16 (matmul operands are cast to bf16 in-kernel anyway)."""
    return _pad_to(a, shape).astype(jnp.bfloat16)


def prepare_params(p):
    """Zero-pad feature dims to 128 lanes, stack per-layer weights, bf16 weights."""
    EP = LANE
    pp = {
        "fe_w": _padw(p["fe_w"], (p["fe_w"].shape[0], EP)),
        "fe_b": _pad_to(p["fe_b"], (1, EP)),
        "ig_w": jnp.stack([_padw(wl, (EP, EP)) for (wl, _) in p["input_gnn"]]),
        "ig_b": jnp.stack([_pad_to(bl, (1, EP)) for (_, bl) in p["input_gnn"]]),
        "fg_w": jnp.stack([_padw(wl, (EP, EP)) for (wl, _) in p["first_gnn"]]),
        "fg_b": jnp.stack([_pad_to(bl, (1, EP)) for (_, bl) in p["first_gnn"]]),
        "pred_w": _padw(p["pred_w"], (EP, LANE)),
        "pred_b": _pad_to(p["pred_b"], (1, LANE)),
    }
    we, be, wa, ba = p["dp1"]
    pp["dp1"] = (_padw(we, (EP, EP)), _pad_to(be, (1, EP)),
                 _padw(wa, (EP, wa.shape[1])), ba)
    stages = []
    for (we, be, wa, ba), layers in zip(p["dp_layers"], p["gnn_layers"]):
        stages.append((
            _padw(we, (EP, EP)), _pad_to(be, (1, EP)),
            _padw(wa, (EP, wa.shape[1])), ba,
            jnp.stack([_padw(wl, (EP, EP)) for (wl, _) in layers]),
            jnp.stack([_pad_to(bl, (1, EP)) for (_, bl) in layers]),
        ))
    pp["stages"] = tuple(stages)
    return pp


# --------------------------- forward ------------------------------------------

@functools.partial(jax.jit, static_argnames=("batch_size", "num_layer",
                                             "pool_num_layer", "assign_dim1",
                                             "num_tasks"))
def diffpool_forward(pp, x, edge_index, *, batch_size, num_layer,
                     pool_num_layer, assign_dim1, num_tasks):
    n_nodes = x.shape[0]
    # edge one-hots (iota compare, no scatter); the adjacency matmul happens in-kernel.
    # bf16 is exact for 0/1 values and halves HBM traffic for the (E, N) operands.
    src_oh = jax.nn.one_hot(edge_index[0], n_nodes, dtype=jnp.bfloat16)
    dst_oh = jax.nn.one_hot(edge_index[1], n_nodes, dtype=jnp.bfloat16)
    x_bf = x.astype(jnp.bfloat16)   # cast moved out of the kernel (same numerics)

    kernel = _make_fused_kernel(batch_size=batch_size, num_layer=num_layer,
                                n_stages=pool_num_layer - 1,
                                assign_dim1=assign_dim1)

    args = [src_oh, dst_oh, x_bf,
            pp["fe_w"], pp["fe_b"], pp["ig_w"], pp["ig_b"],
            *pp["dp1"], pp["fg_w"], pp["fg_b"]]
    for st in pp["stages"]:
        args.extend(st)
    args += [pp["pred_w"], pp["pred_b"]]

    out_padded = pl.pallas_call(
        kernel,
        out_shape=jax.ShapeDtypeStruct((batch_size, LANE), jnp.float32),
        in_specs=[pl.BlockSpec(memory_space=VMEM)] * len(args),
        out_specs=pl.BlockSpec(memory_space=VMEM),
    )(*args)
    return out_padded[:, :num_tasks]


# --------------------------- main ---------------------------------------------

if __name__ == "__main__":
    # small config consistent with the module
    B = 2                 # graphs in the batch
    NODES_PER_GRAPH = 16
    N = B * NODES_PER_GRAPH
    IN_DIM = 16
    EMB_DIM = 32
    NUM_TASKS = 4
    NUM_LAYER = 2
    POOL_NUM_LAYER = 2
    MAX_NUM_NODES = N
    ASSIGN_DIM1 = int(MAX_NUM_NODES * ASSIGN_RATIO)        # 8 (whole batch)
    ASSIGN_DIM2 = int(ASSIGN_DIM1 * ASSIGN_RATIO)          # 2 (per graph)
    assert ASSIGN_DIM1 % B == 0

    key = jax.random.PRNGKey(0)
    k_x, k_p = jax.random.split(key)

    # deterministic node features
    x = jax.random.normal(k_x, (N, IN_DIM), dtype=jnp.float32)

    # deterministic ring graph per batch element (bidirected edges)
    src, dst = [], []
    for g in range(B):
        for j in range(NODES_PER_GRAPH):
            u = g * NODES_PER_GRAPH + j
            v = g * NODES_PER_GRAPH + (j + 1) % NODES_PER_GRAPH
            src += [u, v]
            dst += [v, u]
    edge_index = jnp.array([src, dst], dtype=jnp.int32)

    params = init_model_params(k_p, IN_DIM, EMB_DIM, NUM_TASKS,
                               ASSIGN_DIM1, ASSIGN_DIM2,
                               NUM_LAYER, POOL_NUM_LAYER)
    padded_params = prepare_params(params)

    out = diffpool_forward(padded_params, x, edge_index,
                           batch_size=B, num_layer=NUM_LAYER,
                           pool_num_layer=POOL_NUM_LAYER,
                           assign_dim1=ASSIGN_DIM1, num_tasks=NUM_TASKS)
    out = jax.block_until_ready(out)
    assert out.shape == (B, NUM_TASKS), out.shape
    print("KERNEL_OK")
</pallas_src>

<mosaic_0001>
module attributes {stable_mosaic.version = 11 : i64} {
  func.func @kernel(%arg0: memref<64x32xbf16, #tpu.memory_space<vmem>>, %arg1: memref<64x32xbf16, #tpu.memory_space<vmem>>, %arg2: memref<32x16xbf16, #tpu.memory_space<vmem>>, %arg3: memref<16x128xbf16, #tpu.memory_space<vmem>>, %arg4: memref<1x128xf32, #tpu.memory_space<vmem>>, %arg5: memref<2x128x128xbf16, #tpu.memory_space<vmem>>, %arg6: memref<2x1x128xf32, #tpu.memory_space<vmem>>, %arg7: memref<128x128xbf16, #tpu.memory_space<vmem>>, %arg8: memref<1x128xf32, #tpu.memory_space<vmem>>, %arg9: memref<128x8xbf16, #tpu.memory_space<vmem>>, %arg10: memref<1x8xf32, #tpu.memory_space<vmem>>, %arg11: memref<2x128x128xbf16, #tpu.memory_space<vmem>>, %arg12: memref<2x1x128xf32, #tpu.memory_space<vmem>>, %arg13: memref<128x128xbf16, #tpu.memory_space<vmem>>, %arg14: memref<1x128xf32, #tpu.memory_space<vmem>>, %arg15: memref<128x2xbf16, #tpu.memory_space<vmem>>, %arg16: memref<1x2xf32, #tpu.memory_space<vmem>>, %arg17: memref<2x128x128xbf16, #tpu.memory_space<vmem>>, %arg18: memref<2x1x128xf32, #tpu.memory_space<vmem>>, %arg19: memref<128x128xbf16, #tpu.memory_space<vmem>>, %arg20: memref<1x128xf32, #tpu.memory_space<vmem>>, %arg21: memref<2x128xf32, #tpu.memory_space<vmem>>) attributes {dimension_semantics = [], scalar_prefetch = 0 : i64, scratch_operands = 0 : i64, tpu.core_type = #tpu.core_type<tc>} {
    %c0 = arith.constant 0 : index
    %c0_0 = arith.constant 0 : index
    %0 = vector.load %arg0[%c0, %c0_0] : memref<64x32xbf16, #tpu.memory_space<vmem>>, vector<64x32xbf16>
    %c0_1 = arith.constant 0 : index
    %c0_2 = arith.constant 0 : index
    %1 = vector.load %arg1[%c0_1, %c0_2] : memref<64x32xbf16, #tpu.memory_space<vmem>>, vector<64x32xbf16>
    %c0_3 = arith.constant 0 : index
    %c0_4 = arith.constant 0 : index
    %2 = vector.load %arg2[%c0_3, %c0_4] : memref<32x16xbf16, #tpu.memory_space<vmem>>, vector<32x16xbf16>
    %c0_5 = arith.constant 0 : index
    %c0_6 = arith.constant 0 : index
    %3 = vector.load %arg3[%c0_5, %c0_6] : memref<16x128xbf16, #tpu.memory_space<vmem>>, vector<16x128xbf16>
    %c0_7 = arith.constant 0 : index
    %c0_8 = arith.constant 0 : index
    %4 = vector.load %arg4[%c0_7, %c0_8] : memref<1x128xf32, #tpu.memory_space<vmem>>, vector<1x128xf32>
    %c0_9 = arith.constant 0 : index
    %c0_10 = arith.constant 0 : index
    %5 = vector.load %arg7[%c0_9, %c0_10] : memref<128x128xbf16, #tpu.memory_space<vmem>>, vector<128x128xbf16>
    %c0_11 = arith.constant 0 : index
    %c0_12 = arith.constant 0 : index
    %6 = vector.load %arg8[%c0_11, %c0_12] : memref<1x128xf32, #tpu.memory_space<vmem>>, vector<1x128xf32>
    %c0_13 = arith.constant 0 : index
    %c0_14 = arith.constant 0 : index
    %7 = vector.load %arg9[%c0_13, %c0_14] : memref<128x8xbf16, #tpu.memory_space<vmem>>, vector<128x8xbf16>
    %c0_15 = arith.constant 0 : index
    %c0_16 = arith.constant 0 : index
    %8 = vector.load %arg10[%c0_15, %c0_16] : memref<1x8xf32, #tpu.memory_space<vmem>>, vector<1x8xf32>
    %c0_17 = arith.constant 0 : index
    %c0_18 = arith.constant 0 : index
    %9 = vector.load %arg19[%c0_17, %c0_18] : memref<128x128xbf16, #tpu.memory_space<vmem>>, vector<128x128xbf16>
    %c0_19 = arith.constant 0 : index
    %c0_20 = arith.constant 0 : index
    %10 = vector.load %arg20[%c0_19, %c0_20] : memref<1x128xf32, #tpu.memory_space<vmem>>, vector<1x128xf32>
    %cst = arith.constant dense<0.000000e+00> : vector<32x32xf32>
    %11 = tpu.matmul %0, %1, %cst {dimension_numbers = #tpu.dot_dimension_numbers<[0], [0], [1], [1], [0, 1, 1, 1], [], []>} : vector<64x32xbf16>, vector<64x32xbf16>, vector<32x32xf32> -> vector<32x32xf32>
    %cst_21 = arith.constant dense<0.000000e+00> : vector<32x128xf32>
    %12 = tpu.matmul %2, %3, %cst_21 {dimension_numbers = #tpu.dot_dimension_numbers<[1], [0], [0], [1], [0, 0, 1, 1], [], []>} : vector<32x16xbf16>, vector<16x128xbf16>, vector<32x128xf32> -> vector<32x128xf32>
    %13 = vector.broadcast %4 : vector<1x128xf32> to vector<32x128xf32>
    %14 = arith.addf %12, %13 : vector<32x128xf32>
    %15 = arith.truncf %11 : vector<32x32xf32> to vector<32x32xbf16>
    %16 = arith.truncf %14 : vector<32x128xf32> to vector<32x128xbf16>
    %cst_22 = arith.constant dense<0.000000e+00> : vector<32x128xf32>
    %17 = tpu.matmul %15, %16, %cst_22 {dimension_numbers = #tpu.dot_dimension_numbers<[1], [0], [0], [1], [0, 0, 1, 1], [], []>} : vector<32x32xbf16>, vector<32x128xbf16>, vector<32x128xf32> -> vector<32x128xf32>
    %c0_23 = arith.constant 0 : index
    %c0_24 = arith.constant 0 : index
    %c0_25 = arith.constant 0 : index
    %18 = vector.load %arg5[%c0_23, %c0_24, %c0_25] : memref<2x128x128xbf16, #tpu.memory_space<vmem>>, vector<1x128x128xbf16>
    %19 = vector.shape_cast %18 : vector<1x128x128xbf16> to vector<128x128xbf16>
    %20 = arith.truncf %17 : vector<32x128xf32> to vector<32x128xbf16>
    %cst_26 = arith.constant dense<0.000000e+00> : vector<32x128xf32>
    %21 = tpu.matmul %20, %19, %cst_26 {dimension_numbers = #tpu.dot_dimension_numbers<[1], [0], [0], [1], [0, 0, 1, 1], [], []>} : vector<32x128xbf16>, vector<128x128xbf16>, vector<32x128xf32> -> vector<32x128xf32>
    %c0_27 = arith.constant 0 : index
    %c0_28 = arith.constant 0 : index
    %c0_29 = arith.constant 0 : index
    %22 = vector.load %arg6[%c0_27, %c0_28, %c0_29] : memref<2x1x128xf32, #tpu.memory_space<vmem>>, vector<1x1x128xf32>
    %23 = vector.shape_cast %22 : vector<1x1x128xf32> to vector<1x128xf32>
    %24 = vector.broadcast %23 : vector<1x128xf32> to vector<32x128xf32>
    %25 = arith.addf %21, %24 : vector<32x128xf32>
    %cst_30 = arith.constant 0.000000e+00 : f32
    %26 = vector.broadcast %cst_30 : f32 to vector<32x128xf32>
    %27 = arith.maximumf %25, %26 : vector<32x128xf32>
    %28 = arith.truncf %11 : vector<32x32xf32> to vector<32x32xbf16>
    %29 = arith.truncf %27 : vector<32x128xf32> to vector<32x128xbf16>
    %cst_31 = arith.constant dense<0.000000e+00> : vector<32x128xf32>
    %30 = tpu.matmul %28, %29, %cst_31 {dimension_numbers = #tpu.dot_dimension_numbers<[1], [0], [0], [1], [0, 0, 1, 1], [], []>} : vector<32x32xbf16>, vector<32x128xbf16>, vector<32x128xf32> -> vector<32x128xf32>
    %c1 = arith.constant 1 : index
    %c0_32 = arith.constant 0 : index
    %c0_33 = arith.constant 0 : index
    %31 = vector.load %arg5[%c1, %c0_32, %c0_33] : memref<2x128x128xbf16, #tpu.memory_space<vmem>>, vector<1x128x128xbf16>
    %32 = vector.shape_cast %31 : vector<1x128x128xbf16> to vector<128x128xbf16>
    %33 = arith.truncf %30 : vector<32x128xf32> to vector<32x128xbf16>
    %cst_34 = arith.constant dense<0.000000e+00> : vector<32x128xf32>
    %34 = tpu.matmul %33, %32, %cst_34 {dimension_numbers = #tpu.dot_dimension_numbers<[1], [0], [0], [1], [0, 0, 1, 1], [], []>} : vector<32x128xbf16>, vector<128x128xbf16>, vector<32x128xf32> -> vector<32x128xf32>
    %c1_35 = arith.constant 1 : index
    %c0_36 = arith.constant 0 : index
    %c0_37 = arith.constant 0 : index
    %35 = vector.load %arg6[%c1_35, %c0_36, %c0_37] : memref<2x1x128xf32, #tpu.memory_space<vmem>>, vector<1x1x128xf32>
    %36 = vector.shape_cast %35 : vector<1x1x128xf32> to vector<1x128xf32>
    %37 = vector.broadcast %36 : vector<1x128xf32> to vector<32x128xf32>
    %38 = arith.addf %34, %37 : vector<32x128xf32>
    %cst_38 = arith.constant 0.000000e+00 : f32
    %39 = vector.broadcast %cst_38 : f32 to vector<32x128xf32>
    %40 = arith.maximumf %38, %39 : vector<32x128xf32>
    %41 = arith.truncf %11 : vector<32x32xf32> to vector<32x32xbf16>
    %42 = arith.truncf %40 : vector<32x128xf32> to vector<32x128xbf16>
    %cst_39 = arith.constant dense<0.000000e+00> : vector<32x128xf32>
    %43 = tpu.matmul %41, %42, %cst_39 {dimension_numbers = #tpu.dot_dimension_numbers<[1], [0], [0], [1], [0, 0, 1, 1], [], []>} : vector<32x32xbf16>, vector<32x128xbf16>, vector<32x128xf32> -> vector<32x128xf32>
    %44 = arith.truncf %43 : vector<32x128xf32> to vector<32x128xbf16>
    %cst_40 = arith.constant dense<0.000000e+00> : vector<32x128xf32>
    %45 = tpu.matmul %44, %5, %cst_40 {dimension_numbers = #tpu.dot_dimension_numbers<[1], [0], [0], [1], [0, 0, 1, 1], [], []>} : vector<32x128xbf16>, vector<128x128xbf16>, vector<32x128xf32> -> vector<32x128xf32>
    %46 = vector.broadcast %6 : vector<1x128xf32> to vector<32x128xf32>
    %47 = arith.addf %45, %46 : vector<32x128xf32>
    %cst_41 = arith.constant 0.000000e+00 : f32
    %48 = vector.broadcast %cst_41 : f32 to vector<32x128xf32>
    %49 = arith.maximumf %47, %48 : vector<32x128xf32>
    %50 = arith.truncf %43 : vector<32x128xf32> to vector<32x128xbf16>
    %cst_42 = arith.constant dense<0.000000e+00> : vector<32x8xf32>
    %51 = tpu.matmul %50, %7, %cst_42 {dimension_numbers = #tpu.dot_dimension_numbers<[1], [0], [0], [1], [0, 0, 1, 1], [], []>} : vector<32x128xbf16>, vector<128x8xbf16>, vector<32x8xf32> -> vector<32x8xf32>
    %52 = vector.broadcast %8 : vector<1x8xf32> to vector<32x8xf32>
    %53 = arith.addf %51, %52 : vector<32x8xf32>
    %cst_43 = arith.constant dense<0xFF800000> : vector<32xf32>
    %54 = vector.multi_reduction <maximumf>, %53, %cst_43 [1] : vector<32x8xf32> to vector<32xf32>
    %55 = vector.shape_cast %54 : vector<32xf32> to vector<32x1xf32>
    %56 = vector.broadcast %55 : vector<32x1xf32> to vector<32x8xf32>
    %57 = arith.subf %53, %56 : vector<32x8xf32>
    %58 = math.exp %57 : vector<32x8xf32>
    %cst_44 = arith.constant dense<0.000000e+00> : vector<32xf32>
    %59 = vector.multi_reduction <add>, %58, %cst_44 [1] : vector<32x8xf32> to vector<32xf32>
    %60 = vector.shape_cast %59 : vector<32xf32> to vector<32x1xf32>
    %61 = vector.broadcast %60 : vector<32x1xf32> to vector<32x8xf32>
    %62 = arith.divf %58, %61 : vector<32x8xf32>
    %63 = arith.truncf %62 : vector<32x8xf32> to vector<32x8xbf16>
    %64 = arith.truncf %49 : vector<32x128xf32> to vector<32x128xbf16>
    %cst_45 = arith.constant dense<0.000000e+00> : vector<8x128xf32>
    %65 = tpu.matmul %63, %64, %cst_45 {dimension_numbers = #tpu.dot_dimension_numbers<[0], [0], [1], [1], [0, 1, 1, 1], [], []>} : vector<32x8xbf16>, vector<32x128xbf16>, vector<8x128xf32> -> vector<8x128xf32>
    %66 = arith.truncf %11 : vector<32x32xf32> to vector<32x32xbf16>
    %67 = arith.truncf %62 : vector<32x8xf32> to vector<32x8xbf16>
    %cst_46 = arith.constant dense<0.000000e+00> : vector<32x8xf32>
    %68 = tpu.matmul %66, %67, %cst_46 {dimension_numbers = #tpu.dot_dimension_numbers<[1], [0], [0], [1], [0, 0, 1, 1], [], []>} : vector<32x32xbf16>, vector<32x8xbf16>, vector<32x8xf32> -> vector<32x8xf32>
    %69 = arith.truncf %62 : vector<32x8xf32> to vector<32x8xbf16>
    %70 = arith.truncf %68 : vector<32x8xf32> to vector<32x8xbf16>
    %cst_47 = arith.constant dense<0.000000e+00> : vector<8x8xf32>
    %71 = tpu.matmul %69, %70, %cst_47 {dimension_numbers = #tpu.dot_dimension_numbers<[0], [0], [1], [1], [0, 1, 1, 1], [], []>} : vector<32x8xbf16>, vector<32x8xbf16>, vector<8x8xf32> -> vector<8x8xf32>
    %72 = tpu.iota {dimensions = array<i32: 0>} : vector<8x4xi32>
    %73 = tpu.iota {dimensions = array<i32: 1>} : vector<8x4xi32>
    %c0_i32 = arith.constant 0 : i32
    %74 = vector.broadcast %c0_i32 : i32 to vector<8x4xi32>
    %75 = arith.addi %73, %74 : vector<8x4xi32>
    %76 = arith.cmpi eq, %72, %75 : vector<8x4xi32>
    %77 = arith.extui %76 : vector<8x4xi1> to vector<8x4xi32>
    %78 = arith.sitofp %77 : vector<8x4xi32> to vector<8x4xf32>
    %79 = arith.truncf %78 : vector<8x4xf32> to vector<8x4xbf16>
    %80 = arith.truncf %65 : vector<8x128xf32> to vector<8x128xbf16>
    %cst_48 = arith.constant dense<0.000000e+00> : vector<4x128xf32>
    %81 = tpu.matmul %79, %80, %cst_48 {dimension_numbers = #tpu.dot_dimension_numbers<[0], [0], [1], [1], [0, 1, 1, 1], [], []>} : vector<8x4xbf16>, vector<8x128xbf16>, vector<4x128xf32> -> vector<4x128xf32>
    %82 = arith.truncf %71 : vector<8x8xf32> to vector<8x8xbf16>
    %83 = arith.truncf %78 : vector<8x4xf32> to vector<8x4xbf16>
    %cst_49 = arith.constant dense<0.000000e+00> : vector<8x4xf32>
    %84 = tpu.matmul %82, %83, %cst_49 {dimension_numbers = #tpu.dot_dimension_numbers<[1], [0], [0], [1], [0, 0, 1, 1], [], []>} : vector<8x8xbf16>, vector<8x4xbf16>, vector<8x4xf32> -> vector<8x4xf32>
    %85 = arith.truncf %78 : vector<8x4xf32> to vector<8x4xbf16>
    %86 = arith.truncf %84 : vector<8x4xf32> to vector<8x4xbf16>
    %cst_50 = arith.constant dense<0.000000e+00> : vector<4x4xf32>
    %87 = tpu.matmul %85, %86, %cst_50 {dimension_numbers = #tpu.dot_dimension_numbers<[0], [0], [1], [1], [0, 1, 1, 1], [], []>} : vector<8x4xbf16>, vector<8x4xbf16>, vector<4x4xf32> -> vector<4x4xf32>
    %88 = arith.truncf %87 : vector<4x4xf32> to vector<4x4xbf16>
    %89 = arith.truncf %81 : vector<4x128xf32> to vector<4x128xbf16>
    %cst_51 = arith.constant dense<0.000000e+00> : vector<4x128xf32>
    %90 = tpu.matmul %88, %89, %cst_51 {dimension_numbers = #tpu.dot_dimension_numbers<[1], [0], [0], [1], [0, 0, 1, 1], [], []>} : vector<4x4xbf16>, vector<4x128xbf16>, vector<4x128xf32> -> vector<4x128xf32>
    %c0_52 = arith.constant 0 : index
    %c0_53 = arith.constant 0 : index
    %c0_54 = arith.constant 0 : index
    %91 = vector.load %arg11[%c0_52, %c0_53, %c0_54] : memref<2x128x128xbf16, #tpu.memory_space<vmem>>, vector<1x128x128xbf16>
    %92 = vector.shape_cast %91 : vector<1x128x128xbf16> to vector<128x128xbf16>
    %93 = arith.truncf %90 : vector<4x128xf32> to vector<4x128xbf16>
    %cst_55 = arith.constant dense<0.000000e+00> : vector<4x128xf32>
    %94 = tpu.matmul %93, %92, %cst_55 {dimension_numbers = #tpu.dot_dimension_numbers<[1], [0], [0], [1], [0, 0, 1, 1], [], []>} : vector<4x128xbf16>, vector<128x128xbf16>, vector<4x128xf32> -> vector<4x128xf32>
    %c0_56 = arith.constant 0 : index
    %c0_57 = arith.constant 0 : index
    %c0_58 = arith.constant 0 : index
    %95 = vector.load %arg12[%c0_56, %c0_57, %c0_58] : memref<2x1x128xf32, #tpu.memory_space<vmem>>, vector<1x1x128xf32>
    %96 = vector.shape_cast %95 : vector<1x1x128xf32> to vector<1x128xf32>
    %97 = vector.broadcast %96 : vector<1x128xf32> to vector<4x128xf32>
    %98 = arith.addf %94, %97 : vector<4x128xf32>
    %cst_59 = arith.constant 0.000000e+00 : f32
    %99 = vector.broadcast %cst_59 : f32 to vector<4x128xf32>
    %100 = arith.maximumf %98, %99 : vector<4x128xf32>
    %101 = arith.truncf %87 : vector<4x4xf32> to vector<4x4xbf16>
    %102 = arith.truncf %100 : vector<4x128xf32> to vector<4x128xbf16>
    %cst_60 = arith.constant dense<0.000000e+00> : vector<4x128xf32>
    %103 = tpu.matmul %101, %102, %cst_60 {dimension_numbers = #tpu.dot_dimension_numbers<[1], [0], [0], [1], [0, 0, 1, 1], [], []>} : vector<4x4xbf16>, vector<4x128xbf16>, vector<4x128xf32> -> vector<4x128xf32>
    %c1_61 = arith.constant 1 : index
    %c0_62 = arith.constant 0 : index
    %c0_63 = arith.constant 0 : index
    %104 = vector.load %arg11[%c1_61, %c0_62, %c0_63] : memref<2x128x128xbf16, #tpu.memory_space<vmem>>, vector<1x128x128xbf16>
    %105 = vector.shape_cast %104 : vector<1x128x128xbf16> to vector<128x128xbf16>
    %106 = arith.truncf %103 : vector<4x128xf32> to vector<4x128xbf16>
    %cst_64 = arith.constant dense<0.000000e+00> : vector<4x128xf32>
    %107 = tpu.matmul %106, %105, %cst_64 {dimension_numbers = #tpu.dot_dimension_numbers<[1], [0], [0], [1], [0, 0, 1, 1], [], []>} : vector<4x128xbf16>, vector<128x128xbf16>, vector<4x128xf32> -> vector<4x128xf32>
    %c1_65 = arith.constant 1 : index
    %c0_66 = arith.constant 0 : index
    %c0_67 = arith.constant 0 : index
    %108 = vector.load %arg12[%c1_65, %c0_66, %c0_67] : memref<2x1x128xf32, #tpu.memory_space<vmem>>, vector<1x1x128xf32>
    %109 = vector.shape_cast %108 : vector<1x1x128xf32> to vector<1x128xf32>
    %110 = vector.broadcast %109 : vector<1x128xf32> to vector<4x128xf32>
    %111 = arith.addf %107, %110 : vector<4x128xf32>
    %cst_68 = arith.constant 0.000000e+00 : f32
    %112 = vector.broadcast %cst_68 : f32 to vector<4x128xf32>
    %113 = arith.maximumf %111, %112 : vector<4x128xf32>
    %114 = arith.truncf %87 : vector<4x4xf32> to vector<4x4xbf16>
    %115 = arith.truncf %113 : vector<4x128xf32> to vector<4x128xbf16>
    %cst_69 = arith.constant dense<0.000000e+00> : vector<4x128xf32>
    %116 = tpu.matmul %114, %115, %cst_69 {dimension_numbers = #tpu.dot_dimension_numbers<[1], [0], [0], [1], [0, 0, 1, 1], [], []>} : vector<4x4xbf16>, vector<4x128xbf16>, vector<4x128xf32> -> vector<4x128xf32>
    %c0_70 = arith.constant 0 : index
    %c0_71 = arith.constant 0 : index
    %117 = vector.load %arg13[%c0_70, %c0_71] : memref<128x128xbf16, #tpu.memory_space<vmem>>, vector<128x128xbf16>
    %118 = arith.truncf %116 : vector<4x128xf32> to vector<4x128xbf16>
    %cst_72 = arith.constant dense<0.000000e+00> : vector<4x128xf32>
    %119 = tpu.matmul %118, %117, %cst_72 {dimension_numbers = #tpu.dot_dimension_numbers<[1], [0], [0], [1], [0, 0, 1, 1], [], []>} : vector<4x128xbf16>, vector<128x128xbf16>, vector<4x128xf32> -> vector<4x128xf32>
    %c0_73 = arith.constant 0 : index
    %c0_74 = arith.constant 0 : index
    %120 = vector.load %arg14[%c0_73, %c0_74] : memref<1x128xf32, #tpu.memory_space<vmem>>, vector<1x128xf32>
    %121 = vector.broadcast %120 : vector<1x128xf32> to vector<4x128xf32>
    %122 = arith.addf %119, %121 : vector<4x128xf32>
    %cst_75 = arith.constant 0.000000e+00 : f32
    %123 = vector.broadcast %cst_75 : f32 to vector<4x128xf32>
    %124 = arith.maximumf %122, %123 : vector<4x128xf32>
    %c0_76 = arith.constant 0 : index
    %c0_77 = arith.constant 0 : index
    %125 = vector.load %arg15[%c0_76, %c0_77] : memref<128x2xbf16, #tpu.memory_space<vmem>>, vector<128x2xbf16>
    %126 = arith.truncf %116 : vector<4x128xf32> to vector<4x128xbf16>
    %cst_78 = arith.constant dense<0.000000e+00> : vector<4x2xf32>
    %127 = tpu.matmul %126, %125, %cst_78 {dimension_numbers = #tpu.dot_dimension_numbers<[1], [0], [0], [1], [0, 0, 1, 1], [], []>} : vector<4x128xbf16>, vector<128x2xbf16>, vector<4x2xf32> -> vector<4x2xf32>
    %c0_79 = arith.constant 0 : index
    %c0_80 = arith.constant 0 : index
    %128 = vector.load %arg16[%c0_79, %c0_80] : memref<1x2xf32, #tpu.memory_space<vmem>>, vector<1x2xf32>
    %129 = vector.broadcast %128 : vector<1x2xf32> to vector<4x2xf32>
    %130 = arith.addf %127, %129 : vector<4x2xf32>
    %cst_81 = arith.constant dense<0xFF800000> : vector<4xf32>
    %131 = vector.multi_reduction <maximumf>, %130, %cst_81 [1] : vector<4x2xf32> to vector<4xf32>
    %132 = vector.shape_cast %131 : vector<4xf32> to vector<4x1xf32>
    %133 = vector.broadcast %132 : vector<4x1xf32> to vector<4x2xf32>
    %134 = arith.subf %130, %133 : vector<4x2xf32>
    %135 = math.exp %134 : vector<4x2xf32>
    %cst_82 = arith.constant dense<0.000000e+00> : vector<4xf32>
    %136 = vector.multi_reduction <add>, %135, %cst_82 [1] : vector<4x2xf32> to vector<4xf32>
    %137 = vector.shape_cast %136 : vector<4xf32> to vector<4x1xf32>
    %138 = vector.broadcast %137 : vector<4x1xf32> to vector<4x2xf32>
    %139 = arith.divf %135, %138 : vector<4x2xf32>
    %140 = arith.truncf %139 : vector<4x2xf32> to vector<4x2xbf16>
    %141 = arith.truncf %124 : vector<4x128xf32> to vector<4x128xbf16>
    %cst_83 = arith.constant dense<0.000000e+00> : vector<2x128xf32>
    %142 = tpu.matmul %140, %141, %cst_83 {dimension_numbers = #tpu.dot_dimension_numbers<[0], [0], [1], [1], [0, 1, 1, 1], [], []>} : vector<4x2xbf16>, vector<4x128xbf16>, vector<2x128xf32> -> vector<2x128xf32>
    %143 = arith.truncf %87 : vector<4x4xf32> to vector<4x4xbf16>
    %144 = arith.truncf %139 : vector<4x2xf32> to vector<4x2xbf16>
    %cst_84 = arith.constant dense<0.000000e+00> : vector<4x2xf32>
    %145 = tpu.matmul %143, %144, %cst_84 {dimension_numbers = #tpu.dot_dimension_numbers<[1], [0], [0], [1], [0, 0, 1, 1], [], []>} : vector<4x4xbf16>, vector<4x2xbf16>, vector<4x2xf32> -> vector<4x2xf32>
    %146 = arith.truncf %139 : vector<4x2xf32> to vector<4x2xbf16>
    %147 = arith.truncf %145 : vector<4x2xf32> to vector<4x2xbf16>
    %cst_85 = arith.constant dense<0.000000e+00> : vector<2x2xf32>
    %148 = tpu.matmul %146, %147, %cst_85 {dimension_numbers = #tpu.dot_dimension_numbers<[0], [0], [1], [1], [0, 1, 1, 1], [], []>} : vector<4x2xbf16>, vector<4x2xbf16>, vector<2x2xf32> -> vector<2x2xf32>
    %149 = arith.truncf %148 : vector<2x2xf32> to vector<2x2xbf16>
    %150 = arith.truncf %142 : vector<2x128xf32> to vector<2x128xbf16>
    %cst_86 = arith.constant dense<0.000000e+00> : vector<2x128xf32>
    %151 = tpu.matmul %149, %150, %cst_86 {dimension_numbers = #tpu.dot_dimension_numbers<[1], [0], [0], [1], [0, 0, 1, 1], [], []>} : vector<2x2xbf16>, vector<2x128xbf16>, vector<2x128xf32> -> vector<2x128xf32>
    %c0_87 = arith.constant 0 : index
    %c0_88 = arith.constant 0 : index
    %c0_89 = arith.constant 0 : index
    %152 = vector.load %arg17[%c0_87, %c0_88, %c0_89] : memref<2x128x128xbf16, #tpu.memory_space<vmem>>, vector<1x128x128xbf16>
    %153 = vector.shape_cast %152 : vector<1x128x128xbf16> to vector<128x128xbf16>
    %154 = arith.truncf %151 : vector<2x128xf32> to vector<2x128xbf16>
    %cst_90 = arith.constant dense<0.000000e+00> : vector<2x128xf32>
    %155 = tpu.matmul %154, %153, %cst_90 {dimension_numbers = #tpu.dot_dimension_numbers<[1], [0], [0], [1], [0, 0, 1, 1], [], []>} : vector<2x128xbf16>, vector<128x128xbf16>, vector<2x128xf32> -> vector<2x128xf32>
    %c0_91 = arith.constant 0 : index
    %c0_92 = arith.constant 0 : index
    %c0_93 = arith.constant 0 : index
    %156 = vector.load %arg18[%c0_91, %c0_92, %c0_93] : memref<2x1x128xf32, #tpu.memory_space<vmem>>, vector<1x1x128xf32>
    %157 = vector.shape_cast %156 : vector<1x1x128xf32> to vector<1x128xf32>
    %158 = vector.broadcast %157 : vector<1x128xf32> to vector<2x128xf32>
    %159 = arith.addf %155, %158 : vector<2x128xf32>
    %cst_94 = arith.constant 0.000000e+00 : f32
    %160 = vector.broadcast %cst_94 : f32 to vector<2x128xf32>
    %161 = arith.maximumf %159, %160 : vector<2x128xf32>
    %162 = arith.truncf %148 : vector<2x2xf32> to vector<2x2xbf16>
    %163 = arith.truncf %161 : vector<2x128xf32> to vector<2x128xbf16>
    %cst_95 = arith.constant dense<0.000000e+00> : vector<2x128xf32>
    %164 = tpu.matmul %162, %163, %cst_95 {dimension_numbers = #tpu.dot_dimension_numbers<[1], [0], [0], [1], [0, 0, 1, 1], [], []>} : vector<2x2xbf16>, vector<2x128xbf16>, vector<2x128xf32> -> vector<2x128xf32>
    %c1_96 = arith.constant 1 : index
    %c0_97 = arith.constant 0 : index
    %c0_98 = arith.constant 0 : index
    %165 = vector.load %arg17[%c1_96, %c0_97, %c0_98] : memref<2x128x128xbf16, #tpu.memory_space<vmem>>, vector<1x128x128xbf16>
    %166 = vector.shape_cast %165 : vector<1x128x128xbf16> to vector<128x128xbf16>
    %167 = arith.truncf %164 : vector<2x128xf32> to vector<2x128xbf16>
    %cst_99 = arith.constant dense<0.000000e+00> : vector<2x128xf32>
    %168 = tpu.matmul %167, %166, %cst_99 {dimension_numbers = #tpu.dot_dimension_numbers<[1], [0], [0], [1], [0, 0, 1, 1], [], []>} : vector<2x128xbf16>, vector<128x128xbf16>, vector<2x128xf32> -> vector<2x128xf32>
    %c1_100 = arith.constant 1 : index
    %c0_101 = arith.constant 0 : index
    %c0_102 = arith.constant 0 : index
    %169 = vector.load %arg18[%c1_100, %c0_101, %c0_102] : memref<2x1x128xf32, #tpu.memory_space<vmem>>, vector<1x1x128xf32>
    %170 = vector.shape_cast %169 : vector<1x1x128xf32> to vector<1x128xf32>
    %171 = vector.broadcast %170 : vector<1x128xf32> to vector<2x128xf32>
    %172 = arith.addf %168, %171 : vector<2x128xf32>
    %cst_103 = arith.constant 0.000000e+00 : f32
    %173 = vector.broadcast %cst_103 : f32 to vector<2x128xf32>
    %174 = arith.maximumf %172, %173 : vector<2x128xf32>
    %cst_104 = arith.constant dense<0xFF800000> : vector<128xf32>
    %175 = vector.multi_reduction <maximumf>, %174, %cst_104 [0] : vector<2x128xf32> to vector<128xf32>
    %176 = vector.shape_cast %175 : vector<128xf32> to vector<1x128xf32>
    %c4_i32 = arith.constant 4 : i32
    %177 = vector.broadcast %c4_i32 : i32 to vector<8x4xi32>
    %178 = arith.addi %73, %177 : vector<8x4xi32>
    %179 = arith.cmpi eq, %72, %178 : vector<8x4xi32>
    %180 = arith.extui %179 : vector<8x4xi1> to vector<8x4xi32>
    %181 = arith.sitofp %180 : vector<8x4xi32> to vector<8x4xf32>
    %182 = arith.truncf %181 : vector<8x4xf32> to vector<8x4xbf16>
    %183 = arith.truncf %65 : vector<8x128xf32> to vector<8x128xbf16>
    %cst_105 = arith.constant dense<0.000000e+00> : vector<4x128xf32>
    %184 = tpu.matmul %182, %183, %cst_105 {dimension_numbers = #tpu.dot_dimension_numbers<[0], [0], [1], [1], [0, 1, 1, 1], [], []>} : vector<8x4xbf16>, vector<8x128xbf16>, vector<4x128xf32> -> vector<4x128xf32>
    %185 = arith.truncf %71 : vector<8x8xf32> to vector<8x8xbf16>
    %186 = arith.truncf %181 : vector<8x4xf32> to vector<8x4xbf16>
    %cst_106 = arith.constant dense<0.000000e+00> : vector<8x4xf32>
    %187 = tpu.matmul %185, %186, %cst_106 {dimension_numbers = #tpu.dot_dimension_numbers<[1], [0], [0], [1], [0, 0, 1, 1], [], []>} : vector<8x8xbf16>, vector<8x4xbf16>, vector<8x4xf32> -> vector<8x4xf32>
    %188 = arith.truncf %181 : vector<8x4xf32> to vector<8x4xbf16>
    %189 = arith.truncf %187 : vector<8x4xf32> to vector<8x4xbf16>
    %cst_107 = arith.constant dense<0.000000e+00> : vector<4x4xf32>
    %190 = tpu.matmul %188, %189, %cst_107 {dimension_numbers = #tpu.dot_dimension_numbers<[0], [0], [1], [1], [0, 1, 1, 1], [], []>} : vector<8x4xbf16>, vector<8x4xbf16>, vector<4x4xf32> -> vector<4x4xf32>
    %191 = arith.truncf %190 : vector<4x4xf32> to vector<4x4xbf16>
    %192 = arith.truncf %184 : vector<4x128xf32> to vector<4x128xbf16>
    %cst_108 = arith.constant dense<0.000000e+00> : vector<4x128xf32>
    %193 = tpu.matmul %191, %192, %cst_108 {dimension_numbers = #tpu.dot_dimension_numbers<[1], [0], [0], [1], [0, 0, 1, 1], [], []>} : vector<4x4xbf16>, vector<4x128xbf16>, vector<4x128xf32> -> vector<4x128xf32>
    %c0_109 = arith.constant 0 : index
    %c0_110 = arith.constant 0 : index
    %c0_111 = arith.constant 0 : index
    %194 = vector.load %arg11[%c0_109, %c0_110, %c0_111] : memref<2x128x128xbf16, #tpu.memory_space<vmem>>, vector<1x128x128xbf16>
    %195 = vector.shape_cast %194 : vector<1x128x128xbf16> to vector<128x128xbf16>
    %196 = arith.truncf %193 : vector<4x128xf32> to vector<4x128xbf16>
    %cst_112 = arith.constant dense<0.000000e+00> : vector<4x128xf32>
    %197 = tpu.matmul %196, %195, %cst_112 {dimension_numbers = #tpu.dot_dimension_numbers<[1], [0], [0], [1], [0, 0, 1, 1], [], []>} : vector<4x128xbf16>, vector<128x128xbf16>, vector<4x128xf32> -> vector<4x128xf32>
    %c0_113 = arith.constant 0 : index
    %c0_114 = arith.constant 0 : index
    %c0_115 = arith.constant 0 : index
    %198 = vector.load %arg12[%c0_113, %c0_114, %c0_115] : memref<2x1x128xf32, #tpu.memory_space<vmem>>, vector<1x1x128xf32>
    %199 = vector.shape_cast %198 : vector<1x1x128xf32> to vector<1x128xf32>
    %200 = vector.broadcast %199 : vector<1x128xf32> to vector<4x128xf32>
    %201 = arith.addf %197, %200 : vector<4x128xf32>
    %cst_116 = arith.constant 0.000000e+00 : f32
    %202 = vector.broadcast %cst_116 : f32 to vector<4x128xf32>
    %203 = arith.maximumf %201, %202 : vector<4x128xf32>
    %204 = arith.truncf %190 : vector<4x4xf32> to vector<4x4xbf16>
    %205 = arith.truncf %203 : vector<4x128xf32> to vector<4x128xbf16>
    %cst_117 = arith.constant dense<0.000000e+00> : vector<4x128xf32>
    %206 = tpu.matmul %204, %205, %cst_117 {dimension_numbers = #tpu.dot_dimension_numbers<[1], [0], [0], [1], [0, 0, 1, 1], [], []>} : vector<4x4xbf16>, vector<4x128xbf16>, vector<4x128xf32> -> vector<4x128xf32>
    %c1_118 = arith.constant 1 : index
    %c0_119 = arith.constant 0 : index
    %c0_120 = arith.constant 0 : index
    %207 = vector.load %arg11[%c1_118, %c0_119, %c0_120] : memref<2x128x128xbf16, #tpu.memory_space<vmem>>, vector<1x128x128xbf16>
    %208 = vector.shape_cast %207 : vector<1x128x128xbf16> to vector<128x128xbf16>
    %209 = arith.truncf %206 : vector<4x128xf32> to vector<4x128xbf16>
    %cst_121 = arith.constant dense<0.000000e+00> : vector<4x128xf32>
    %210 = tpu.matmul %209, %208, %cst_121 {dimension_numbers = #tpu.dot_dimension_numbers<[1], [0], [0], [1], [0, 0, 1, 1], [], []>} : vector<4x128xbf16>, vector<128x128xbf16>, vector<4x128xf32> -> vector<4x128xf32>
    %c1_122 = arith.constant 1 : index
    %c0_123 = arith.constant 0 : index
    %c0_124 = arith.constant 0 : index
    %211 = vector.load %arg12[%c1_122, %c0_123, %c0_124] : memref<2x1x128xf32, #tpu.memory_space<vmem>>, vector<1x1x128xf32>
    %212 = vector.shape_cast %211 : vector<1x1x128xf32> to vector<1x128xf32>
    %213 = vector.broadcast %212 : vector<1x128xf32> to vector<4x128xf32>
    %214 = arith.addf %210, %213 : vector<4x128xf32>
    %cst_125 = arith.constant 0.000000e+00 : f32
    %215 = vector.broadcast %cst_125 : f32 to vector<4x128xf32>
    %216 = arith.maximumf %214, %215 : vector<4x128xf32>
    %217 = arith.truncf %190 : vector<4x4xf32> to vector<4x4xbf16>
    %218 = arith.truncf %216 : vector<4x128xf32> to vector<4x128xbf16>
    %cst_126 = arith.constant dense<0.000000e+00> : vector<4x128xf32>
    %219 = tpu.matmul %217, %218, %cst_126 {dimension_numbers = #tpu.dot_dimension_numbers<[1], [0], [0], [1], [0, 0, 1, 1], [], []>} : vector<4x4xbf16>, vector<4x128xbf16>, vector<4x128xf32> -> vector<4x128xf32>
    %c0_127 = arith.constant 0 : index
    %c0_128 = arith.constant 0 : index
    %220 = vector.load %arg13[%c0_127, %c0_128] : memref<128x128xbf16, #tpu.memory_space<vmem>>, vector<128x128xbf16>
    %221 = arith.truncf %219 : vector<4x128xf32> to vector<4x128xbf16>
    %cst_129 = arith.constant dense<0.000000e+00> : vector<4x128xf32>
    %222 = tpu.matmul %221, %220, %cst_129 {dimension_numbers = #tpu.dot_dimension_numbers<[1], [0], [0], [1], [0, 0, 1, 1], [], []>} : vector<4x128xbf16>, vector<128x128xbf16>, vector<4x128xf32> -> vector<4x128xf32>
    %c0_130 = arith.constant 0 : index
    %c0_131 = arith.constant 0 : index
    %223 = vector.load %arg14[%c0_130, %c0_131] : memref<1x128xf32, #tpu.memory_space<vmem>>, vector<1x128xf32>
    %224 = vector.broadcast %223 : vector<1x128xf32> to vector<4x128xf32>
    %225 = arith.addf %222, %224 : vector<4x128xf32>
    %cst_132 = arith.constant 0.000000e+00 : f32
    %226 = vector.broadcast %cst_132 : f32 to vector<4x128xf32>
    %227 = arith.maximumf %225, %226 : vector<4x128xf32>
    %c0_133 = arith.constant 0 : index
    %c0_134 = arith.constant 0 : index
    %228 = vector.load %arg15[%c0_133, %c0_134] : memref<128x2xbf16, #tpu.memory_space<vmem>>, vector<128x2xbf16>
    %229 = arith.truncf %219 : vector<4x128xf32> to vector<4x128xbf16>
    %cst_135 = arith.constant dense<0.000000e+00> : vector<4x2xf32>
    %230 = tpu.matmul %229, %228, %cst_135 {dimension_numbers = #tpu.dot_dimension_numbers<[1], [0], [0], [1], [0, 0, 1, 1], [], []>} : vector<4x128xbf16>, vector<128x2xbf16>, vector<4x2xf32> -> vector<4x2xf32>
    %c0_136 = arith.constant 0 : index
    %c0_137 = arith.constant 0 : index
    %231 = vector.load %arg16[%c0_136, %c0_137] : memref<1x2xf32, #tpu.memory_space<vmem>>, vector<1x2xf32>
    %232 = vector.broadcast %231 : vector<1x2xf32> to vector<4x2xf32>
    %233 = arith.addf %230, %232 : vector<4x2xf32>
    %cst_138 = arith.constant dense<0xFF800000> : vector<4xf32>
    %234 = vector.multi_reduction <maximumf>, %233, %cst_138 [1] : vector<4x2xf32> to vector<4xf32>
    %235 = vector.shape_cast %234 : vector<4xf32> to vector<4x1xf32>
    %236 = vector.broadcast %235 : vector<4x1xf32> to vector<4x2xf32>
    %237 = arith.subf %233, %236 : vector<4x2xf32>
    %238 = math.exp %237 : vector<4x2xf32>
    %cst_139 = arith.constant dense<0.000000e+00> : vector<4xf32>
    %239 = vector.multi_reduction <add>, %238, %cst_139 [1] : vector<4x2xf32> to vector<4xf32>
    %240 = vector.shape_cast %239 : vector<4xf32> to vector<4x1xf32>
    %241 = vector.broadcast %240 : vector<4x1xf32> to vector<4x2xf32>
    %242 = arith.divf %238, %241 : vector<4x2xf32>
    %243 = arith.truncf %242 : vector<4x2xf32> to vector<4x2xbf16>
    %244 = arith.truncf %227 : vector<4x128xf32> to vector<4x128xbf16>
    %cst_140 = arith.constant dense<0.000000e+00> : vector<2x128xf32>
    %245 = tpu.matmul %243, %244, %cst_140 {dimension_numbers = #tpu.dot_dimension_numbers<[0], [0], [1], [1], [0, 1, 1, 1], [], []>} : vector<4x2xbf16>, vector<4x128xbf16>, vector<2x128xf32> -> vector<2x128xf32>
    %246 = arith.truncf %190 : vector<4x4xf32> to vector<4x4xbf16>
    %247 = arith.truncf %242 : vector<4x2xf32> to vector<4x2xbf16>
    %cst_141 = arith.constant dense<0.000000e+00> : vector<4x2xf32>
    %248 = tpu.matmul %246, %247, %cst_141 {dimension_numbers = #tpu.dot_dimension_numbers<[1], [0], [0], [1], [0, 0, 1, 1], [], []>} : vector<4x4xbf16>, vector<4x2xbf16>, vector<4x2xf32> -> vector<4x2xf32>
    %249 = arith.truncf %242 : vector<4x2xf32> to vector<4x2xbf16>
    %250 = arith.truncf %248 : vector<4x2xf32> to vector<4x2xbf16>
    %cst_142 = arith.constant dense<0.000000e+00> : vector<2x2xf32>
    %251 = tpu.matmul %249, %250, %cst_142 {dimension_numbers = #tpu.dot_dimension_numbers<[0], [0], [1], [1], [0, 1, 1, 1], [], []>} : vector<4x2xbf16>, vector<4x2xbf16>, vector<2x2xf32> -> vector<2x2xf32>
    %252 = arith.truncf %251 : vector<2x2xf32> to vector<2x2xbf16>
    %253 = arith.truncf %245 : vector<2x128xf32> to vector<2x128xbf16>
    %cst_143 = arith.constant dense<0.000000e+00> : vector<2x128xf32>
    %254 = tpu.matmul %252, %253, %cst_143 {dimension_numbers = #tpu.dot_dimension_numbers<[1], [0], [0], [1], [0, 0, 1, 1], [], []>} : vector<2x2xbf16>, vector<2x128xbf16>, vector<2x128xf32> -> vector<2x128xf32>
    %c0_144 = arith.constant 0 : index
    %c0_145 = arith.constant 0 : index
    %c0_146 = arith.constant 0 : index
    %255 = vector.load %arg17[%c0_144, %c0_145, %c0_146] : memref<2x128x128xbf16, #tpu.memory_space<vmem>>, vector<1x128x128xbf16>
    %256 = vector.shape_cast %255 : vector<1x128x128xbf16> to vector<128x128xbf16>
    %257 = arith.truncf %254 : vector<2x128xf32> to vector<2x128xbf16>
    %cst_147 = arith.constant dense<0.000000e+00> : vector<2x128xf32>
    %258 = tpu.matmul %257, %256, %cst_147 {dimension_numbers = #tpu.dot_dimension_numbers<[1], [0], [0], [1], [0, 0, 1, 1], [], []>} : vector<2x128xbf16>, vector<128x128xbf16>, vector<2x128xf32> -> vector<2x128xf32>
    %c0_148 = arith.constant 0 : index
    %c0_149 = arith.constant 0 : index
    %c0_150 = arith.constant 0 : index
    %259 = vector.load %arg18[%c0_148, %c0_149, %c0_150] : memref<2x1x128xf32, #tpu.memory_space<vmem>>, vector<1x1x128xf32>
    %260 = vector.shape_cast %259 : vector<1x1x128xf32> to vector<1x128xf32>
    %261 = vector.broadcast %260 : vector<1x128xf32> to vector<2x128xf32>
    %262 = arith.addf %258, %261 : vector<2x128xf32>
    %cst_151 = arith.constant 0.000000e+00 : f32
    %263 = vector.broadcast %cst_151 : f32 to vector<2x128xf32>
    %264 = arith.maximumf %262, %263 : vector<2x128xf32>
    %265 = arith.truncf %251 : vector<2x2xf32> to vector<2x2xbf16>
    %266 = arith.truncf %264 : vector<2x128xf32> to vector<2x128xbf16>
    %cst_152 = arith.constant dense<0.000000e+00> : vector<2x128xf32>
    %267 = tpu.matmul %265, %266, %cst_152 {dimension_numbers = #tpu.dot_dimension_numbers<[1], [0], [0], [1], [0, 0, 1, 1], [], []>} : vector<2x2xbf16>, vector<2x128xbf16>, vector<2x128xf32> -> vector<2x128xf32>
    %c1_153 = arith.constant 1 : index
    %c0_154 = arith.constant 0 : index
    %c0_155 = arith.constant 0 : index
    %268 = vector.load %arg17[%c1_153, %c0_154, %c0_155] : memref<2x128x128xbf16, #tpu.memory_space<vmem>>, vector<1x128x128xbf16>
    %269 = vector.shape_cast %268 : vector<1x128x128xbf16> to vector<128x128xbf16>
    %270 = arith.truncf %267 : vector<2x128xf32> to vector<2x128xbf16>
    %cst_156 = arith.constant dense<0.000000e+00> : vector<2x128xf32>
    %271 = tpu.matmul %270, %269, %cst_156 {dimension_numbers = #tpu.dot_dimension_numbers<[1], [0], [0], [1], [0, 0, 1, 1], [], []>} : vector<2x128xbf16>, vector<128x128xbf16>, vector<2x128xf32> -> vector<2x128xf32>
    %c1_157 = arith.constant 1 : index
    %c0_158 = arith.constant 0 : index
    %c0_159 = arith.constant 0 : index
    %272 = vector.load %arg18[%c1_157, %c0_158, %c0_159] : memref<2x1x128xf32, #tpu.memory_space<vmem>>, vector<1x1x128xf32>
    %273 = vector.shape_cast %272 : vector<1x1x128xf32> to vector<1x128xf32>
    %274 = vector.broadcast %273 : vector<1x128xf32> to vector<2x128xf32>
    %275 = arith.addf %271, %274 : vector<2x128xf32>
    %cst_160 = arith.constant 0.000000e+00 : f32
    %276 = vector.broadcast %cst_160 : f32 to vector<2x128xf32>
    %277 = arith.maximumf %275, %276 : vector<2x128xf32>
    %cst_161 = arith.constant dense<0xFF800000> : vector<128xf32>
    %278 = vector.multi_reduction <maximumf>, %277, %cst_161 [0] : vector<2x128xf32> to vector<128xf32>
    %279 = vector.shape_cast %278 : vector<128xf32> to vector<1x128xf32>
    %280 = tpu.concatenate %176, %279 in 0 : vector<1x128xf32>, vector<1x128xf32> -> vector<2x128xf32>
    %281 = arith.truncf %280 : vector<2x128xf32> to vector<2x128xbf16>
    %cst_162 = arith.constant dense<0.000000e+00> : vector<2x128xf32>
    %282 = tpu.matmul %281, %9, %cst_162 {dimension_numbers = #tpu.dot_dimension_numbers<[1], [0], [0], [1], [0, 0, 1, 1], [], []>} : vector<2x128xbf16>, vector<128x128xbf16>, vector<2x128xf32> -> vector<2x128xf32>
    %283 = vector.broadcast %10 : vector<1x128xf32> to vector<2x128xf32>
    %284 = arith.addf %282, %283 : vector<2x128xf32>
    %c0_163 = arith.constant 0 : index
    %c0_164 = arith.constant 0 : index
    %285 = vector.load %arg21[%c0_163, %c0_164] : memref<2x128xf32, #tpu.memory_space<vmem>>, vector<2x128xf32>
    tpu.vector_store %arg21[%c0_163, %c0_164], %284 {strides = array<i32>} : memref<2x128xf32, #tpu.memory_space<vmem>>, vector<2x128xf32>,
    return
  }
}

</mosaic_0001>

<llo_original>
// kernel: diffpool_forward.1
$region0: #{diffpool_forward.1}
  #allocation0 [shape = 'u32[]', space=smem, size = 0x4, offset = 0x4, fixed_abs, tag = 'smem constant byte address 0x4 - core index']
  #allocation1 [shape = 'u32[144,128]{1,0:T(1,128)}', space=vmem, size = 0x12000, scoped, tag = 'internal scratch']
  %s0 = inlined_call_operand.vmem [shape: bf16[64,32], index: 0, kind: input, shape index: {}]
  %s1 = inlined_call_operand.vmem [shape: bf16[64,32], index: 1, kind: input, shape index: {}]
  %s2 = inlined_call_operand.vmem [shape: bf16[32,16], index: 2, kind: input, shape index: {}]
  %s3 = inlined_call_operand.vmem [shape: bf16[16,128], index: 3, kind: input, shape index: {}]
  %s4 = inlined_call_operand.hbm [shape: f32[1,128], index: 4, kind: input, shape index: {}]
  %s5 = inlined_call_operand.vmem [shape: bf16[2,128,128], index: 5, kind: input, shape index: {}]
  %s6 = inlined_call_operand.vmem [shape: f32[2,1,128], index: 6, kind: input, shape index: {}]
  %s7 = inlined_call_operand.hbm [shape: bf16[128,128], index: 7, kind: input, shape index: {}]
  %s8 = inlined_call_operand.hbm [shape: f32[1,128], index: 8, kind: input, shape index: {}]
  %s9 = inlined_call_operand.vmem [shape: bf16[128,8], index: 9, kind: input, shape index: {}]
  %s10 = inlined_call_operand.hbm [shape: f32[1,8], index: 10, kind: input, shape index: {}]
  %s11 = inlined_call_operand.vmem [shape: bf16[2,128,128], index: 11, kind: input, shape index: {}]
  %s12 = inlined_call_operand.hbm [shape: f32[2,1,128], index: 12, kind: input, shape index: {}]
  %s13 = inlined_call_operand.hbm [shape: bf16[128,128], index: 13, kind: input, shape index: {}]
  %s14 = inlined_call_operand.hbm [shape: f32[1,128], index: 14, kind: input, shape index: {}]
  %s15 = inlined_call_operand.vmem [shape: bf16[128,2], index: 15, kind: input, shape index: {}]
  %s16 = inlined_call_operand.vmem [shape: f32[1,2], index: 16, kind: input, shape index: {}]
  %s17 = inlined_call_operand.hbm [shape: bf16[2,128,128], index: 17, kind: input, shape index: {}]
  %s18 = inlined_call_operand.vmem [shape: f32[2,1,128], index: 18, kind: input, shape index: {}]
  %s19 = inlined_call_operand.hbm [shape: bf16[128,128], index: 19, kind: input, shape index: {}]
  %s20 = inlined_call_operand.hbm [shape: f32[1,128], index: 20, kind: input, shape index: {}]
  %s21 = inlined_call_operand.hbm [shape: f32[2,128], index: 21, kind: output, shape index: {}]
  %s22 = sld [smem:[#allocation0]]
  $region134: #{diffpool_forward.1} parent=0
    _
  %s24 = ssub.s32 1, %s22
  %s25 = scalar_select 0, %s24, %s22
  $region1: #{diffpool_forward.1} parent=0
    #allocation2 [shape = 'u8[512]{0}', space=vmem, size = 0x400, scoped, tag = 'input window, operand 4, single buffered']
    #allocation3 [shape = 's32[1]{0}', space=sflag, size = 0x4, scoped, tag = 'scoped memory for diffpool_forward.1']
    #allocation4 [shape = 's32[1]{0}', space=sflag, size = 0x4, scoped, tag = 'scoped memory for diffpool_forward.1']
    #allocation5 [shape = 'u8[32768]{0}', space=vmem, size = 0x8000, scoped, tag = 'input window, operand 7, single buffered']
    #allocation6 [shape = 's32[1]{0}', space=sflag, size = 0x4, scoped, tag = 'scoped memory for diffpool_forward.1']
    #allocation7 [shape = 'u8[512]{0}', space=vmem, size = 0x400, scoped, tag = 'input window, operand 8, single buffered']
    #allocation8 [shape = 'u8[512]{0}', space=vmem, size = 0x400, scoped, tag = 'input window, operand 10, single buffered']
    #allocation9 [shape = 's32[1]{0}', space=sflag, size = 0x4, scoped, tag = 'scoped memory for diffpool_forward.1']
    #allocation10 [shape = 'u8[1024]{0}', space=vmem, size = 0x400, scoped, tag = 'input window, operand 12, single buffered']
    #allocation11 [shape = 'u8[32768]{0}', space=vmem, size = 0x8000, scoped, tag = 'input window, operand 13, single buffered']
    #allocation12 [shape = 's32[1]{0}', space=sflag, size = 0x4, scoped, tag = 'scoped memory for diffpool_forward.1']
    #allocation13 [shape = 'u8[512]{0}', space=vmem, size = 0x400, scoped, tag = 'input window, operand 14, single buffered']
    #allocation14 [shape = 'u8[65536]{0}', space=vmem, size = 0x10000, scoped, tag = 'input window, operand 17, single buffered']
    #allocation15 [shape = 's32[1]{0}', space=sflag, size = 0x4, scoped, tag = 'scoped memory for diffpool_forward.1']
    #allocation16 [shape = 'u8[32768]{0}', space=vmem, size = 0x8000, scoped, tag = 'input window, operand 19, single buffered']
    #allocation17 [shape = 'u8[512]{0}', space=vmem, size = 0x400, scoped, tag = 'input window, operand 20, single buffered']
    #allocation18 [shape = 's32[1]{0}', space=sflag, size = 0x4, scoped, tag = 'scoped memory for diffpool_forward.1']
    #allocation19 [shape = 'u8[1024]{0}', space=vmem, size = 0x400, scoped, tag = 'output window, operand 0, single buffered']
    %26 = vsyncpa [#allocation3], 0
    %27 = vsyncpa [#allocation6], 0
    %28 = vsyncpa [#allocation9], 0
    %29 = vsyncpa [#allocation12], 0
    %30 = vsyncpa [#allocation15], 0
    %31 = vsyncpa [#allocation18], 0
    %32 = vsyncpa [#allocation4], 0
    // Predicated region
    $region2: #{diffpool_forward.1} parent=1 // pred_check
      _
    $region3: #{diffpool_forward.1} parent=1 // pred_check_branch
      %34 = sbr.rel (0) target = $region5
    $region4: #{diffpool_forward.1} parent=1 // pred_region
      _
    $region5: #{diffpool_forward.1} parent=1 // pred_fallthru
      _
    // Predicated region
    $region6: #{diffpool_forward.1} parent=1 // pred_check
      _
    $region7: #{diffpool_forward.1} parent=1 // pred_check_branch
      %36 = sbr.rel (0) target = $region9
    $region8: #{diffpool_forward.1} parent=1 // pred_region
      _
    $region9: #{diffpool_forward.1} parent=1 // pred_fallthru
      _
    // Predicated region
    $region10: #{diffpool_forward.1} parent=1 // pred_check
      _
    $region11: #{diffpool_forward.1} parent=1 // pred_check_branch
      %38 = sbr.rel (0) target = $region13
    $region12: #{diffpool_forward.1} parent=1 // pred_region
      _
    $region13: #{diffpool_forward.1} parent=1 // pred_fallthru
      _
    // Predicated region
    $region14: #{diffpool_forward.1} parent=1 // pred_check
      _
    $region15: #{diffpool_forward.1} parent=1 // pred_check_branch
      %40 = sbr.rel (0) target = $region17
    $region16: #{diffpool_forward.1} parent=1 // pred_region
      _
    $region17: #{diffpool_forward.1} parent=1 // pred_fallthru
      _
    // Predicated region
    $region18: #{diffpool_forward.1} parent=1 // pred_check
      _
    $region19: #{diffpool_forward.1} parent=1 // pred_check_branch
      %42 = sbr.rel (0) target = $region21
    $region20: #{diffpool_forward.1} parent=1 // pred_region
      %s44 = ssub.s32 16, 16
      %45 = vsyncadd [#allocation3], %s44
      %s47 = sshll.u32 [#allocation2], 4
      %s48 = int_to_ptr.vmem [resolvable:$true] %s47
      %50 = dma.hbm_to_vmem [thread:$0]  %s4, 16, %s48, [#allocation3]
    $region21: #{diffpool_forward.1} parent=1 // pred_fallthru
      _
    // Predicated region
    $region22: #{diffpool_forward.1} parent=1 // pred_check
      _
    $region23: #{diffpool_forward.1} parent=1 // pred_check_branch
      %52 = sbr.rel (0) target = $region25
    $region24: #{diffpool_forward.1} parent=1 // pred_region
      _
    $region25: #{diffpool_forward.1} parent=1 // pred_fallthru
      _
    // Predicated region
    $region26: #{diffpool_forward.1} parent=1 // pred_check
      _
    $region27: #{diffpool_forward.1} parent=1 // pred_check_branch
      %54 = sbr.rel (0) target = $region29
    $region28: #{diffpool_forward.1} parent=1 // pred_region
      _
    $region29: #{diffpool_forward.1} parent=1 // pred_fallthru
      _
    // Predicated region
    $region30: #{diffpool_forward.1} parent=1 // pred_check
      _
    $region31: #{diffpool_forward.1} parent=1 // pred_check_branch
      %56 = sbr.rel (0) target = $region33
    $region32: #{diffpool_forward.1} parent=1 // pred_region
      %s58 = ssub.s32 1024, 1024
      %59 = vsyncadd [#allocation6], %s58
      %s60 = sshll.u32 [#allocation5], 4
      %s61 = int_to_ptr.vmem [resolvable:$true] %s60
      %66 = dma.hbm_to_vmem [thread:$0]  %s7, 1024, %s61, [#allocation6], 64, 64, 4
    $region33: #{diffpool_forward.1} parent=1 // pred_fallthru
      _
    // Predicated region
    $region34: #{diffpool_forward.1} parent=1 // pred_check
      _
    $region35: #{diffpool_forward.1} parent=1 // pred_check_branch
      %68 = sbr.rel (0) target = $region37
    $region36: #{diffpool_forward.1} parent=1 // pred_region
      %s70 = ssub.s32 16, 16
      %71 = vsyncadd [#allocation6], %s70
      %s73 = sshll.u32 [#allocation7], 4
      %s74 = int_to_ptr.vmem [resolvable:$true] %s73
      %76 = dma.hbm_to_vmem [thread:$0]  %s8, 16, %s74, [#allocation6]
    $region37: #{diffpool_forward.1} parent=1 // pred_fallthru
      _
    // Predicated region
    $region38: #{diffpool_forward.1} parent=1 // pred_check
      _
    $region39: #{diffpool_forward.1} parent=1 // pred_check_branch
      %78 = sbr.rel (0) target = $region41
    $region40: #{diffpool_forward.1} parent=1 // pred_region
      _
    $region41: #{diffpool_forward.1} parent=1 // pred_fallthru
      _
    // Predicated region
    $region42: #{diffpool_forward.1} parent=1 // pred_check
      _
    $region43: #{diffpool_forward.1} parent=1 // pred_check_branch
      %80 = sbr.rel (0) target = $region45
    $region44: #{diffpool_forward.1} parent=1 // pred_region
      %s82 = ssub.s32 16, 16
      %83 = vsyncadd [#allocation9], %s82
      %s85 = sshll.u32 [#allocation8], 4
      %s86 = int_to_ptr.vmem [resolvable:$true] %s85
      %88 = dma.hbm_to_vmem [thread:$0]  %s10, 16, %s86, [#allocation9]
    $region45: #{diffpool_forward.1} parent=1 // pred_fallthru
      _
    // Predicated region
    $region46: #{diffpool_forward.1} parent=1 // pred_check
      _
    $region47: #{diffpool_forward.1} parent=1 // pred_check_branch
      %90 = sbr.rel (0) target = $region49
    $region48: #{diffpool_forward.1} parent=1 // pred_region
      _
    $region49: #{diffpool_forward.1} parent=1 // pred_fallthru
      _
    // Predicated region
    $region50: #{diffpool_forward.1} parent=1 // pred_check
      _
    $region51: #{diffpool_forward.1} parent=1 // pred_check_branch
      %92 = sbr.rel (0) target = $region53
    $region52: #{diffpool_forward.1} parent=1 // pred_region
      %s94 = ssub.s32 32, 32
      %95 = vsyncadd [#allocation9], %s94
      %s96 = sshll.u32 [#allocation10], 4
      %s97 = int_to_ptr.vmem [resolvable:$true] %s96
      %102 = dma.hbm_to_vmem [thread:$0]  %s12, 32, %s97, [#allocation9], 16, 16, 1
    $region53: #{diffpool_forward.1} parent=1 // pred_fallthru
      _
    // Predicated region
    $region54: #{diffpool_forward.1} parent=1 // pred_check
      _
    $region55: #{diffpool_forward.1} parent=1 // pred_check_branch
      %104 = sbr.rel (0) target = $region57
    $region56: #{diffpool_forward.1} parent=1 // pred_region
      %s106 = ssub.s32 1024, 1024
      %107 = vsyncadd [#allocation12], %s106
      %s108 = sshll.u32 [#allocation11], 4
      %s109 = int_to_ptr.vmem [resolvable:$true] %s108
      %114 = dma.hbm_to_vmem [thread:$0]  %s13, 1024, %s109, [#allocation12], 64, 64, 4
    $region57: #{diffpool_forward.1} parent=1 // pred_fallthru
      _
    // Predicated region
    $region58: #{diffpool_forward.1} parent=1 // pred_check
      _
    $region59: #{diffpool_forward.1} parent=1 // pred_check_branch
      %116 = sbr.rel (0) target = $region61
    $region60: #{diffpool_forward.1} parent=1 // pred_region
      %s118 = ssub.s32 16, 16
      %119 = vsyncadd [#allocation12], %s118
      %s121 = sshll.u32 [#allocation13], 4
      %s122 = int_to_ptr.vmem [resolvable:$true] %s121
      %124 = dma.hbm_to_vmem [thread:$0]  %s14, 16, %s122, [#allocation12]
    $region61: #{diffpool_forward.1} parent=1 // pred_fallthru
      _
    // Predicated region
    $region62: #{diffpool_forward.1} parent=1 // pred_check
      _
    $region63: #{diffpool_forward.1} parent=1 // pred_check_branch
      %126 = sbr.rel (0) target = $region65
    $region64: #{diffpool_forward.1} parent=1 // pred_region
      _
    $region65: #{diffpool_forward.1} parent=1 // pred_fallthru
      _
    // Predicated region
    $region66: #{diffpool_forward.1} parent=1 // pred_check
      _
    $region67: #{diffpool_forward.1} parent=1 // pred_check_branch
      %128 = sbr.rel (0) target = $region69
    $region68: #{diffpool_forward.1} parent=1 // pred_region
      _
    $region69: #{diffpool_forward.1} parent=1 // pred_fallthru
      _
    // Predicated region
    $region70: #{diffpool_forward.1} parent=1 // pred_check
      _
    $region71: #{diffpool_forward.1} parent=1 // pred_check_branch
      %130 = sbr.rel (0) target = $region73
    $region72: #{diffpool_forward.1} parent=1 // pred_region
      %s132 = ssub.s32 2048, 2048
      %133 = vsyncadd [#allocation15], %s132
      %s134 = sshll.u32 [#allocation14], 4
      %s135 = int_to_ptr.vmem [resolvable:$true] %s134
      %140 = dma.hbm_to_vmem [thread:$0]  %s17, 2048, %s135, [#allocation15], 64, 64, 4
    $region73: #{diffpool_forward.1} parent=1 // pred_fallthru
      _
    // Predicated region
    $region74: #{diffpool_forward.1} parent=1 // pred_check
      _
    $region75: #{diffpool_forward.1} parent=1 // pred_check_branch
      %142 = sbr.rel (0) target = $region77
    $region76: #{diffpool_forward.1} parent=1 // pred_region
      _
    $region77: #{diffpool_forward.1} parent=1 // pred_fallthru
      _
    // Predicated region
    $region78: #{diffpool_forward.1} parent=1 // pred_check
      _
    $region79: #{diffpool_forward.1} parent=1 // pred_check_branch
      %144 = sbr.rel (0) target = $region81
    $region80: #{diffpool_forward.1} parent=1 // pred_region
      %s146 = ssub.s32 1024, 1024
      %147 = vsyncadd [#allocation15], %s146
      %s148 = sshll.u32 [#allocation16], 4
      %s149 = int_to_ptr.vmem [resolvable:$true] %s148
      %154 = dma.hbm_to_vmem [thread:$0]  %s19, 1024, %s149, [#allocation15], 64, 64, 4
    $region81: #{diffpool_forward.1} parent=1 // pred_fallthru
      _
    // Predicated region
    $region82: #{diffpool_forward.1} parent=1 // pred_check
      _
    $region83: #{diffpool_forward.1} parent=1 // pred_check_branch
      %156 = sbr.rel (0) target = $region85
    $region84: #{diffpool_forward.1} parent=1 // pred_region
      %s158 = ssub.s32 16, 16
      %159 = vsyncadd [#allocation18], %s158
      %s161 = sshll.u32 [#allocation17], 4
      %s162 = int_to_ptr.vmem [resolvable:$true] %s161
      %164 = dma.hbm_to_vmem [thread:$0]  %s20, 16, %s162, [#allocation18]
    $region85: #{diffpool_forward.1} parent=1 // pred_fallthru
      _
    // Predicated region
    $region86: #{diffpool_forward.1} parent=1 // pred_check
      _
    $region87: #{diffpool_forward.1} parent=1 // pred_check_branch
      %166 = sbr.rel (0) target = $region89
    $region88: #{diffpool_forward.1} parent=1 // pred_region
      %167 = dma.done [#allocation3], 16
    $region89: #{diffpool_forward.1} parent=1 // pred_fallthru
      _
    // Predicated region
    $region90: #{diffpool_forward.1} parent=1 // pred_check
      _
    $region91: #{diffpool_forward.1} parent=1 // pred_check_branch
      %169 = sbr.rel (0) target = $region93
    $region92: #{diffpool_forward.1} parent=1 // pred_region
      %170 = dma.done [#allocation6], 1024
    $region93: #{diffpool_forward.1} parent=1 // pred_fallthru
      _
    // Predicated region
    $region94: #{diffpool_forward.1} parent=1 // pred_check
      _
    $region95: #{diffpool_forward.1} parent=1 // pred_check_branch
      %172 = sbr.rel (0) target = $region97
    $region96: #{diffpool_forward.1} parent=1 // pred_region
      %173 = dma.done [#allocation6], 16
    $region97: #{diffpool_forward.1} parent=1 // pred_fallthru
      _
    // Predicated region
    $region98: #{diffpool_forward.1} parent=1 // pred_check
      _
    $region99: #{diffpool_forward.1} parent=1 // pred_check_branch
      %175 = sbr.rel (0) target = $region101
    $region100: #{diffpool_forward.1} parent=1 // pred_region
      %176 = dma.done [#allocation9], 16
    $region101: #{diffpool_forward.1} parent=1 // pred_fallthru
      _
    // Predicated region
    $region102: #{diffpool_forward.1} parent=1 // pred_check
      _
    $region103: #{diffpool_forward.1} parent=1 // pred_check_branch
      %178 = sbr.rel (0) target = $region105
    $region104: #{diffpool_forward.1} parent=1 // pred_region
      %179 = dma.done [#allocation9], 32
    $region105: #{diffpool_forward.1} parent=1 // pred_fallthru
      _
    // Predicated region
    $region106: #{diffpool_forward.1} parent=1 // pred_check
      _
    $region107: #{diffpool_forward.1} parent=1 // pred_check_branch
      %181 = sbr.rel (0) target = $region109
    $region108: #{diffpool_forward.1} parent=1 // pred_region
      %182 = dma.done [#allocation12], 1024
    $region109: #{diffpool_forward.1} parent=1 // pred_fallthru
      _
    // Predicated region
    $region110: #{diffpool_forward.1} parent=1 // pred_check
      _
    $region111: #{diffpool_forward.1} parent=1 // pred_check_branch
      %184 = sbr.rel (0) target = $region113
    $region112: #{diffpool_forward.1} parent=1 // pred_region
      %185 = dma.done [#allocation12], 16
    $region113: #{diffpool_forward.1} parent=1 // pred_fallthru
      _
    // Predicated region
    $region114: #{diffpool_forward.1} parent=1 // pred_check
      _
    $region115: #{diffpool_forward.1} parent=1 // pred_check_branch
      %187 = sbr.rel (0) target = $region117
    $region116: #{diffpool_forward.1} parent=1 // pred_region
      %188 = dma.done [#allocation15], 2048
    $region117: #{diffpool_forward.1} parent=1 // pred_fallthru
      _
    // Predicated region
    $region118: #{diffpool_forward.1} parent=1 // pred_check
      _
    $region119: #{diffpool_forward.1} parent=1 // pred_check_branch
      %190 = sbr.rel (0) target = $region121
    $region120: #{diffpool_forward.1} parent=1 // pred_region
      %191 = dma.done [#allocation15], 1024
    $region121: #{diffpool_forward.1} parent=1 // pred_fallthru
      _
    // Predicated region
    $region122: #{diffpool_forward.1} parent=1 // pred_check
      _
    $region123: #{diffpool_forward.1} parent=1 // pred_check_branch
      %193 = sbr.rel (0) target = $region125
    $region124: #{diffpool_forward.1} parent=1 // pred_region
      %194 = dma.done [#allocation18], 16
    $region125: #{diffpool_forward.1} parent=1 // pred_fallthru
      _
    %v196 = vld [vmem:[%s0] sm:$0xf]
    %v197 = vld [vmem:[%s0 + $0x4] sm:$0xf]
    %v198 = vld [vmem:[%s0 + $0x8] sm:$0xf]
    %v199 = vld [vmem:[%s0 + $0xc] sm:$0xf]
    %v200 = vld [vmem:[%s0 + $0x10] sm:$0xf]
    %v201 = vld [vmem:[%s0 + $0x14] sm:$0xf]
    %v202 = vld [vmem:[%s0 + $0x18] sm:$0xf]
    %v203 = vld [vmem:[%s0 + $0x1c] sm:$0xf]
    %v204 = vld [vmem:[%s1] sm:$0xf]
    %v205 = vld [vmem:[%s1 + $0x4] sm:$0xf]
    %v206 = vld [vmem:[%s1 + $0x8] sm:$0xf]
    %v207 = vld [vmem:[%s1 + $0xc] sm:$0xf]
    %v208 = vld [vmem:[%s1 + $0x10] sm:$0xf]
    %v209 = vld [vmem:[%s1 + $0x14] sm:$0xf]
    %v210 = vld [vmem:[%s1 + $0x18] sm:$0xf]
    %v211 = vld [vmem:[%s1 + $0x1c] sm:$0xf]
    %v212 = vld [vmem:[%s2] sm:$0xf]
    %v213 = vld [vmem:[%s2 + $0x4] sm:$0xf]
    %v214 = vld [vmem:[%s2 + $0x8] sm:$0xf]
    %v215 = vld [vmem:[%s2 + $0xc] sm:$0xf]
    %v216 = vld [vmem:[%s3] sm:$0xf]
    %v217 = vld [vmem:[%s3 + $0x4] sm:$0xf]
    %v218 = vld [vmem:[#allocation2] sm:$0x1]
    %v219 = vld [vmem:[#allocation5] sm:$0xf]
    %v220 = vld [vmem:[#allocation5 + $0x4] sm:$0xf]
    %v221 = vld [vmem:[#allocation5 + $0x8] sm:$0xf]
    %v222 = vld [vmem:[#allocation5 + $0xc] sm:$0xf]
    %v223 = vld [vmem:[#allocation5 + $0x10] sm:$0xf]
    %v224 = vld [vmem:[#allocation5 + $0x14] sm:$0xf]
    %v225 = vld [vmem:[#allocation5 + $0x18] sm:$0xf]
    %v226 = vld [vmem:[#allocation5 + $0x1c] sm:$0xf]
    %v227 = vld [vmem:[#allocation5 + $0x20] sm:$0xf]
    %v228 = vld [vmem:[#allocation5 + $0x24] sm:$0xf]
    %v229 = vld [vmem:[#allocation5 + $0x28] sm:$0xf]
    %v230 = vld [vmem:[#allocation5 + $0x2c] sm:$0xf]
    %v231 = vld [vmem:[#allocation5 + $0x30] sm:$0xf]
    %v232 = vld [vmem:[#allocation5 + $0x34] sm:$0xf]
    %v233 = vld [vmem:[#allocation5 + $0x38] sm:$0xf]
    %v234 = vld [vmem:[#allocation5 + $0x3c] sm:$0xf]
    %v235 = vld [vmem:[#allocation7] sm:$0x1]
    %v236 = vld [vmem:[%s9] sm:$0xf]
    %v237 = vld [vmem:[%s9 + $0x4] sm:$0xf]
    %v238 = vld [vmem:[%s9 + $0x8] sm:$0xf]
    %v239 = vld [vmem:[%s9 + $0xc] sm:$0xf]
    %v240 = vld [vmem:[%s9 + $0x10] sm:$0xf]
    %v241 = vld [vmem:[%s9 + $0x14] sm:$0xf]
    %v242 = vld [vmem:[%s9 + $0x18] sm:$0xf]
    %v243 = vld [vmem:[%s9 + $0x1c] sm:$0xf]
    %v244 = vld [vmem:[%s9 + $0x20] sm:$0xf]
    %v245 = vld [vmem:[%s9 + $0x24] sm:$0xf]
    %v246 = vld [vmem:[%s9 + $0x28] sm:$0xf]
    %v247 = vld [vmem:[%s9 + $0x2c] sm:$0xf]
    %v248 = vld [vmem:[%s9 + $0x30] sm:$0xf]
    %v249 = vld [vmem:[%s9 + $0x34] sm:$0xf]
    %v250 = vld [vmem:[%s9 + $0x38] sm:$0xf]
    %v251 = vld [vmem:[%s9 + $0x3c] sm:$0xf]
    %v252 = vld [vmem:[#allocation8] sm:$0x1]
    %v253 = vld [vmem:[#allocation16] sm:$0xf]
    %v254 = vld [vmem:[#allocation16 + $0x4] sm:$0xf]
    %v255 = vld [vmem:[#allocation16 + $0x8] sm:$0xf]
    %v256 = vld [vmem:[#allocation16 + $0xc] sm:$0xf]
    %v257 = vld [vmem:[#allocation16 + $0x10] sm:$0xf]
    %v258 = vld [vmem:[#allocation16 + $0x14] sm:$0xf]
    %v259 = vld [vmem:[#allocation16 + $0x18] sm:$0xf]
    %v260 = vld [vmem:[#allocation16 + $0x1c] sm:$0xf]
    %v261 = vld [vmem:[#allocation16 + $0x20] sm:$0xf]
    %v262 = vld [vmem:[#allocation16 + $0x24] sm:$0xf]
    %v263 = vld [vmem:[#allocation16 + $0x28] sm:$0xf]
    %v264 = vld [vmem:[#allocation16 + $0x2c] sm:$0xf]
    %v265 = vld [vmem:[#allocation16 + $0x30] sm:$0xf]
    %v266 = vld [vmem:[#allocation16 + $0x34] sm:$0xf]
    %v267 = vld [vmem:[#allocation16 + $0x38] sm:$0xf]
    %v268 = vld [vmem:[#allocation16 + $0x3c] sm:$0xf]
    %v269 = vld [vmem:[#allocation17] sm:$0x1]
    %v278 = vunpack.c.l.b16 %v196
    %v279 = vunpack.c.l.b16 %v197
    %v280 = vunpack.c.l.b16 %v198
    %v281 = vunpack.c.l.b16 %v199
    %v282 = vunpack.c.l.b16 %v200
    %v283 = vunpack.c.l.b16 %v201
    %v284 = vunpack.c.l.b16 %v202
    %v285 = vunpack.c.l.b16 %v203
    %v286 = vpack.c.b16 %v279, %v278
    %v287 = vpack.c.b16 %v281, %v280
    %v288 = vpack.c.b16 %v283, %v282
    %v289 = vpack.c.b16 %v285, %v284
    %294 = vxpose.xlu0.c.b16.start [1/8] %v286, 128
    %295 = vxpose.xlu0.c.b16.cont [2/8] %v287, 128
    %296 = vxpose.xlu0.c.b16.cont [3/8] %v288, 128
    %297 = vxpose.xlu0.c.b16.cont [4/8] %v289, 128
    %298 = vxpose.xlu0.c.b16.cont [5/8] 0, 128
    %299 = vxpose.xlu0.c.b16.cont [6/8] 0, 128
    %300 = vxpose.xlu0.c.b16.cont [7/8] 0, 128
    %301 = vxpose.xlu0.c.b16.end [8/8] 0, 128
    %v302 = vpop.trf.xlu0
    %v303 = vpop.trf.xlu0
    %v304 = vpop.trf.xlu0
    %v305 = vpop.trf.xlu0
    %v306 = vpop.trf.xlu0
    %v307 = vpop.trf.xlu0
    %v308 = vpop.trf.xlu0
    %v309 = vpop.trf.xlu0
    %v318 = vunpack.c.l.b16 %v204
    %v319 = vunpack.c.l.b16 %v205
    %v320 = vunpack.c.l.b16 %v206
    %v321 = vunpack.c.l.b16 %v207
    %v322 = vunpack.c.l.b16 %v208
    %v323 = vunpack.c.l.b16 %v209
    %v324 = vunpack.c.l.b16 %v210
    %v325 = vunpack.c.l.b16 %v211
    %v326 = vpack.c.b16 %v319, %v318
    %v327 = vpack.c.b16 %v321, %v320
    %v328 = vpack.c.b16 %v323, %v322
    %v329 = vpack.c.b16 %v325, %v324
    %vm334 = vcmask 523264
    %v336 = vsel %vm334, %v302, 0
    %v339 = vsel %vm334, %v303, 0
    %341 = vmatprep.subr.bf16.mxu0 0
    %342 = vmatpush1.bf16.msra.mxu0 0
    %343 = vmatprep.subr.bf16.mxu0 0
    %344 = vmatpush1.bf16.msra.mxu0 0
    %345 = vmatprep.subr.bf16.mxu0 0
    %346 = vmatpush1.bf16.msra.mxu0 0
    %347 = vmatprep.subr.bf16.mxu0 0
    %348 = vmatpush1.bf16.msra.mxu0 0
    %349 = vmatprep.subr.bf16.mxu0 0
    %350 = vmatpush1.bf16.msra.mxu0 %v329
    %351 = vmatprep.subr.bf16.mxu0 0
    %352 = vmatpush1.bf16.msra.mxu0 %v328
    %353 = vmatprep.subr.bf16.mxu0 0
    %354 = vmatpush1.bf16.msra.mxu0 %v327
    %355 = vmatprep.subr.bf16.mxu0 0
    %356 = vmatpush1.bf16.msra.mxu0 %v326
    %357 = vmatprep.subr.bf16.mxu0 0
    %358 = vmatpush2.bf16.msra.mxu0 0
    %359 = vmatprep.subr.bf16.mxu0 0
    %360 = vmatpush2.bf16.msra.mxu0 0
    %361 = vmatprep.subr.bf16.mxu0 0
    %362 = vmatpush2.bf16.msra.mxu0 0
    %363 = vmatprep.subr.bf16.mxu0 0
    %364 = vmatpush2.bf16.msra.mxu0 0
    %365 = vmatprep.subr.bf16.mxu0 0
    %366 = vmatpush2.bf16.msra.mxu0 0
    %367 = vmatprep.subr.bf16.mxu0 0
    %368 = vmatpush2.bf16.msra.mxu0 0
    %369 = vmatprep.subr.bf16.mxu0 0
    %370 = vmatpush2.bf16.msra.mxu0 0
    %371 = vmatprep.subr.bf16.mxu0 0
    %372 = vmatpush2.bf16.msra.mxu0 0
    %373 = vmatprep.mubr.bf16.mxu0 0
    %374 = vmatmul.mubr.bf16.gmra.mxu0 %v336
    %v375 = vpop.f32.mrf.mxu0
    %v376 = vadd.f32 0.0, %v375
    %v377 = vpop.f32.mrf.mxu0
    %v378 = vpop.f32.mrf.mxu0
    %v379 = vadd.f32 0.0, %v378
    %v380 = vpop.f32.mrf.mxu0
    %381 = vmatprep.mubr.bf16.mxu0 0
    %382 = vmatmul.mubr.bf16.gmra.mxu0 %v339
    %v383 = vpop.f32.mrf.mxu0
    %v384 = vadd.f32 0.0, %v383
    %v385 = vpop.f32.mrf.mxu0
    %v386 = vpop.f32.mrf.mxu0
    %v387 = vadd.f32 0.0, %v386
    %v388 = vpop.f32.mrf.mxu0
    %389 = vdwg.mxu0
    %v391 = vlaneseq
    %v392 = vshrl.u32 %v391, 7
    %v393 = vsub.s32 0, %v392
    %v394 = vrot.slane %v218, %v393
    %v400 = vunpack.c.l.b16 %v212
    %v401 = vunpack.c.l.b16 %v213
    %v402 = vunpack.c.l.b16 %v214
    %v403 = vunpack.c.l.b16 %v215
    %v404 = vpack.c.b16 %v401, %v400
    %v405 = vpack.c.b16 %v403, %v402
    %v408 = vunpack.c.l.b16 %v216
    %v409 = vunpack.c.l.b16 %v217
    %v410 = vpack.c.b16 %v409, %v408
    %vm412 = vcmask 130048
    %v414 = vsel %vm412, %v404, 0
    %v417 = vsel %vm412, %v405, 0
    %419 = vmatprep.subr.bf16.mxu0 0
    %420 = vmatpush1.bf16.msra.mxu0 0
    %421 = vmatprep.subr.bf16.mxu0 0
    %422 = vmatpush1.bf16.msra.mxu0 0
    %423 = vmatprep.subr.bf16.mxu0 0
    %424 = vmatpush1.bf16.msra.mxu0 0
    %425 = vmatprep.subr.bf16.mxu0 0
    %426 = vmatpush1.bf16.msra.mxu0 0
    %427 = vmatprep.subr.bf16.mxu0 0
    %428 = vmatpush1.bf16.msra.mxu0 0
    %429 = vmatprep.subr.bf16.mxu0 0
    %430 = vmatpush1.bf16.msra.mxu0 0
    %431 = vmatprep.subr.bf16.mxu0 0
    %432 = vmatpush1.bf16.msra.mxu0 0
    %433 = vmatprep.subr.bf16.mxu0 0
    %434 = vmatpush1.bf16.msra.mxu0 %v410
    %435 = vmatprep.subr.bf16.mxu0 0
    %436 = vmatpush2.bf16.msra.mxu0 0
    %437 = vmatprep.subr.bf16.mxu0 0
    %438 = vmatpush2.bf16.msra.mxu0 0
    %439 = vmatprep.subr.bf16.mxu0 0
    %440 = vmatpush2.bf16.msra.mxu0 0
    %441 = vmatprep.subr.bf16.mxu0 0
    %442 = vmatpush2.bf16.msra.mxu0 0
    %443 = vmatprep.subr.bf16.mxu0 0
    %444 = vmatpush2.bf16.msra.mxu0 0
    %445 = vmatprep.subr.bf16.mxu0 0
    %446 = vmatpush2.bf16.msra.mxu0 0
    %447 = vmatprep.subr.bf16.mxu0 0
    %448 = vmatpush2.bf16.msra.mxu0 0
    %449 = vmatprep.subr.bf16.mxu0 0
    %450 = vmatpush2.bf16.msra.mxu0 0
    %451 = vmatprep.mubr.bf16.mxu0 0
    %452 = vmatmul.mubr.bf16.gmra.mxu0 %v414
    %v453 = vpop.f32.mrf.mxu0
    %v454 = vadd.f32 %v394, %v453
    %v455 = vpop.f32.mrf.mxu0
    %v456 = vpop.f32.mrf.mxu0
    %v457 = vadd.f32 %v394, %v456
    %v458 = vpop.f32.mrf.mxu0
    %459 = vmatprep.mubr.bf16.mxu0 0
    %460 = vmatmul.mubr.bf16.gmra.mxu0 %v417
    %v461 = vpop.f32.mrf.mxu0
    %v462 = vadd.f32 %v394, %v461
    %v463 = vpop.f32.mrf.mxu0
    %v464 = vpop.f32.mrf.mxu0
    %v465 = vadd.f32 %v394, %v464
    %v466 = vpop.f32.mrf.mxu0
    %467 = vdwg.mxu0
    %v468 = vpack.c.bf16 %v379, %v376
    %v469 = vpack.c.bf16 %v387, %v384
    %v470 = vpack.c.bf16 %v457, %v454
    %v471 = vpack.c.bf16 %v465, %v462
    %vm472 = vcmask 261120
    %v474 = vsel %vm472, %v468, 0
    %v477 = vsel %vm472, %v469, 0
    %479 = vmatprep.subr.bf16.mxu0 0
    %480 = vmatpush1.bf16.msra.mxu0 0
    %481 = vmatprep.subr.bf16.mxu0 0
    %482 = vmatpush1.bf16.msra.mxu0 0
    %483 = vmatprep.subr.bf16.mxu0 0
    %484 = vmatpush1.bf16.msra.mxu0 0
    %485 = vmatprep.subr.bf16.mxu0 0
    %486 = vmatpush1.bf16.msra.mxu0 0
    %487 = vmatprep.subr.bf16.mxu0 0
    %488 = vmatpush1.bf16.msra.mxu0 0
    %489 = vmatprep.subr.bf16.mxu0 0
    %490 = vmatpush1.bf16.msra.mxu0 0
    %491 = vmatprep.subr.bf16.mxu0 0
    %492 = vmatpush1.bf16.msra.mxu0 %v471
    %493 = vmatprep.subr.bf16.mxu0 0
    %494 = vmatpush1.bf16.msra.mxu0 %v470
    %495 = vmatprep.subr.bf16.mxu0 0
    %496 = vmatpush2.bf16.msra.mxu0 0
    %497 = vmatprep.subr.bf16.mxu0 0
    %498 = vmatpush2.bf16.msra.mxu0 0
    %499 = vmatprep.subr.bf16.mxu0 0
    %500 = vmatpush2.bf16.msra.mxu0 0
    %501 = vmatprep.subr.bf16.mxu0 0
    %502 = vmatpush2.bf16.msra.mxu0 0
    %503 = vmatprep.subr.bf16.mxu0 0
    %504 = vmatpush2.bf16.msra.mxu0 0
    %505 = vmatprep.subr.bf16.mxu0 0
    %506 = vmatpush2.bf16.msra.mxu0 0
    %507 = vmatprep.subr.bf16.mxu0 0
    %508 = vmatpush2.bf16.msra.mxu0 0
    %509 = vmatprep.subr.bf16.mxu0 0
    %510 = vmatpush2.bf16.msra.mxu0 0
    %511 = vmatprep.mubr.bf16.mxu0 0
    %512 = vmatmul.mubr.bf16.gmra.mxu0 %v474
    %v513 = vpop.f32.mrf.mxu0
    %v514 = vadd.f32 0.0, %v513
    %v515 = vpop.f32.mrf.mxu0
    %v516 = vpop.f32.mrf.mxu0
    %v517 = vadd.f32 0.0, %v516
    %v518 = vpop.f32.mrf.mxu0
    %519 = vmatprep.mubr.bf16.mxu0 0
    %520 = vmatmul.mubr.bf16.gmra.mxu0 %v477
    %v521 = vpop.f32.mrf.mxu0
    %v522 = vadd.f32 0.0, %v521
    %v523 = vpop.f32.mrf.mxu0
    %v524 = vpop.f32.mrf.mxu0
    %v525 = vadd.f32 0.0, %v524
    %v526 = vpop.f32.mrf.mxu0
    %527 = vdwg.mxu0
    %v528 = vld [vmem:[%s5] sm:$0xf]
    %v529 = vld [vmem:[%s5 + $0x4] sm:$0xf]
    %v530 = vld [vmem:[%s5 + $0x8] sm:$0xf]
    %v531 = vld [vmem:[%s5 + $0xc] sm:$0xf]
    %v532 = vld [vmem:[%s5 + $0x10] sm:$0xf]
    %v533 = vld [vmem:[%s5 + $0x14] sm:$0xf]
    %v534 = vld [vmem:[%s5 + $0x18] sm:$0xf]
    %v535 = vld [vmem:[%s5 + $0x1c] sm:$0xf]
    %v536 = vld [vmem:[%s5 + $0x20] sm:$0xf]
    %v537 = vld [vmem:[%s5 + $0x24] sm:$0xf]
    %v538 = vld [vmem:[%s5 + $0x28] sm:$0xf]
    %v539 = vld [vmem:[%s5 + $0x2c] sm:$0xf]
    %v540 = vld [vmem:[%s5 + $0x30] sm:$0xf]
    %v541 = vld [vmem:[%s5 + $0x34] sm:$0xf]
    %v542 = vld [vmem:[%s5 + $0x38] sm:$0xf]
    %v543 = vld [vmem:[%s5 + $0x3c] sm:$0xf]
    %v544 = vpack.c.bf16 %v517, %v514
    %v545 = vpack.c.bf16 %v525, %v522
    %v546 = vld [vmem:[%s6] sm:$0x1]
    %v548 = vlaneseq
    %v549 = vshrl.u32 %v548, 7
    %v550 = vsub.s32 0, %v549
    %v551 = vrot.slane %v546, %v550
    %v569 = vunpack.c.l.b16 %v528
    %v570 = vunpack.c.l.b16 %v529
    %v571 = vunpack.c.l.b16 %v530
    %v572 = vunpack.c.l.b16 %v531
    %v573 = vunpack.c.l.b16 %v532
    %v574 = vunpack.c.l.b16 %v533
    %v575 = vunpack.c.l.b16 %v534
    %v576 = vunpack.c.l.b16 %v535
    %v577 = vunpack.c.l.b16 %v536
    %v578 = vunpack.c.l.b16 %v537
    %v579 = vunpack.c.l.b16 %v538
    %v580 = vunpack.c.l.b16 %v539
    %v581 = vunpack.c.l.b16 %v540
    %v582 = vunpack.c.l.b16 %v541
    %v583 = vunpack.c.l.b16 %v542
    %v584 = vunpack.c.l.b16 %v543
    %v585 = vpack.c.b16 %v570, %v569
    %v586 = vpack.c.b16 %v572, %v571
    %v587 = vpack.c.b16 %v574, %v573
    %v588 = vpack.c.b16 %v576, %v575
    %v589 = vpack.c.b16 %v578, %v577
    %v590 = vpack.c.b16 %v580, %v579
    %v591 = vpack.c.b16 %v582, %v581
    %v592 = vpack.c.b16 %v584, %v583
    %601 = vmatprep.subr.bf16.mxu0 0
    %602 = vmatpush1.bf16.msra.mxu0 %v592
    %603 = vmatprep.subr.bf16.mxu0 0
    %604 = vmatpush1.bf16.msra.mxu0 %v591
    %605 = vmatprep.subr.bf16.mxu0 0
    %606 = vmatpush1.bf16.msra.mxu0 %v590
    %607 = vmatprep.subr.bf16.mxu0 0
    %608 = vmatpush1.bf16.msra.mxu0 %v589
    %609 = vmatprep.subr.bf16.mxu0 0
    %610 = vmatpush1.bf16.msra.mxu0 %v588
    %611 = vmatprep.subr.bf16.mxu0 0
    %612 = vmatpush1.bf16.msra.mxu0 %v587
    %613 = vmatprep.subr.bf16.mxu0 0
    %614 = vmatpush1.bf16.msra.mxu0 %v586
    %615 = vmatprep.subr.bf16.mxu0 0
    %616 = vmatpush1.bf16.msra.mxu0 %v585
    %617 = vmatprep.subr.bf16.mxu0 0
    %618 = vmatpush2.bf16.msra.mxu0 0
    %619 = vmatprep.subr.bf16.mxu0 0
    %620 = vmatpush2.bf16.msra.mxu0 0
    %621 = vmatprep.subr.bf16.mxu0 0
    %622 = vmatpush2.bf16.msra.mxu0 0
    %623 = vmatprep.subr.bf16.mxu0 0
    %624 = vmatpush2.bf16.msra.mxu0 0
    %625 = vmatprep.subr.bf16.mxu0 0
    %626 = vmatpush2.bf16.msra.mxu0 0
    %627 = vmatprep.subr.bf16.mxu0 0
    %628 = vmatpush2.bf16.msra.mxu0 0
    %629 = vmatprep.subr.bf16.mxu0 0
    %630 = vmatpush2.bf16.msra.mxu0 0
    %631 = vmatprep.subr.bf16.mxu0 0
    %632 = vmatpush2.bf16.msra.mxu0 0
    %633 = vmatprep.mubr.bf16.mxu0 0
    %634 = vmatmul.mubr.bf16.gmra.mxu0 %v544
    %v635 = vpop.f32.mrf.mxu0
    %v636 = vadd.f32 %v551, %v635
    %v637 = vpop.f32.mrf.mxu0
    %v638 = vpop.f32.mrf.mxu0
    %v639 = vadd.f32 %v551, %v638
    %v640 = vpop.f32.mrf.mxu0
    %641 = vmatprep.mubr.bf16.mxu0 0
    %642 = vmatmul.mubr.bf16.gmra.mxu0 %v545
    %v643 = vpop.f32.mrf.mxu0
    %v644 = vadd.f32 %v551, %v643
    %v645 = vpop.f32.mrf.mxu0
    %v646 = vpop.f32.mrf.mxu0
    %v647 = vadd.f32 %v551, %v646
    %v648 = vpop.f32.mrf.mxu0
    %649 = vdwg.mxu0
    %v650 = vmax.f32 %v636, 0.0
    %v651 = vmax.f32 %v639, 0.0
    %v652 = vmax.f32 %v644, 0.0
    %v653 = vmax.f32 %v647, 0.0
    %v654 = vpack.c.bf16 %v651, %v650
    %v655 = vpack.c.bf16 %v653, %v652
    %656 = vmatprep.subr.bf16.mxu0 0
    %657 = vmatpush1.bf16.msra.mxu0 0
    %658 = vmatprep.subr.bf16.mxu0 0
    %659 = vmatpush1.bf16.msra.mxu0 0
    %660 = vmatprep.subr.bf16.mxu0 0
    %661 = vmatpush1.bf16.msra.mxu0 0
    %662 = vmatprep.subr.bf16.mxu0 0
    %663 = vmatpush1.bf16.msra.mxu0 0
    %664 = vmatprep.subr.bf16.mxu0 0
    %665 = vmatpush1.bf16.msra.mxu0 0
    %666 = vmatprep.subr.bf16.mxu0 0
    %667 = vmatpush1.bf16.msra.mxu0 0
    %668 = vmatprep.subr.bf16.mxu0 0
    %669 = vmatpush1.bf16.msra.mxu0 %v655
    %670 = vmatprep.subr.bf16.mxu0 0
    %671 = vmatpush1.bf16.msra.mxu0 %v654
    %672 = vmatprep.subr.bf16.mxu0 0
    %673 = vmatpush2.bf16.msra.mxu0 0
    %674 = vmatprep.subr.bf16.mxu0 0
    %675 = vmatpush2.bf16.msra.mxu0 0
    %676 = vmatprep.subr.bf16.mxu0 0
    %677 = vmatpush2.bf16.msra.mxu0 0
    %678 = vmatprep.subr.bf16.mxu0 0
    %679 = vmatpush2.bf16.msra.mxu0 0
    %680 = vmatprep.subr.bf16.mxu0 0
    %681 = vmatpush2.bf16.msra.mxu0 0
    %682 = vmatprep.subr.bf16.mxu0 0
    %683 = vmatpush2.bf16.msra.mxu0 0
    %684 = vmatprep.subr.bf16.mxu0 0
    %685 = vmatpush2.bf16.msra.mxu0 0
    %686 = vmatprep.subr.bf16.mxu0 0
    %687 = vmatpush2.bf16.msra.mxu0 0
    %688 = vmatprep.mubr.bf16.mxu0 0
    %689 = vmatmul.mubr.bf16.gmra.mxu0 %v474
    %v690 = vpop.f32.mrf.mxu0
    %v691 = vadd.f32 0.0, %v690
    %v692 = vpop.f32.mrf.mxu0
    %v693 = vpop.f32.mrf.mxu0
    %v694 = vadd.f32 0.0, %v693
    %v695 = vpop.f32.mrf.mxu0
    %696 = vmatprep.mubr.bf16.mxu0 0
    %697 = vmatmul.mubr.bf16.gmra.mxu0 %v477
    %v698 = vpop.f32.mrf.mxu0
    %v699 = vadd.f32 0.0, %v698
    %v700 = vpop.f32.mrf.mxu0
    %v701 = vpop.f32.mrf.mxu0
    %v702 = vadd.f32 0.0, %v701
    %v703 = vpop.f32.mrf.mxu0
    %704 = vdwg.mxu0
    %s705 = scalar_lea.vmem %s5, 64
    %v706 = vld [vmem:[%s705] sm:$0xf]
    %v707 = vld [vmem:[%s705 + $0x4] sm:$0xf]
    %v708 = vld [vmem:[%s705 + $0x8] sm:$0xf]
    %v709 = vld [vmem:[%s705 + $0xc] sm:$0xf]
    %v710 = vld [vmem:[%s705 + $0x10] sm:$0xf]
    %v711 = vld [vmem:[%s705 + $0x14] sm:$0xf]
    %v712 = vld [vmem:[%s705 + $0x18] sm:$0xf]
    %v713 = vld [vmem:[%s705 + $0x1c] sm:$0xf]
    %v714 = vld [vmem:[%s705 + $0x20] sm:$0xf]
    %v715 = vld [vmem:[%s705 + $0x24] sm:$0xf]
    %v716 = vld [vmem:[%s705 + $0x28] sm:$0xf]
    %v717 = vld [vmem:[%s705 + $0x2c] sm:$0xf]
    %v718 = vld [vmem:[%s705 + $0x30] sm:$0xf]
    %v719 = vld [vmem:[%s705 + $0x34] sm:$0xf]
    %v720 = vld [vmem:[%s705 + $0x38] sm:$0xf]
    %v721 = vld [vmem:[%s705 + $0x3c] sm:$0xf]
    %v722 = vpack.c.bf16 %v694, %v691
    %v723 = vpack.c.bf16 %v702, %v699
    %s724 = scalar_lea.vmem %s6, 1
    %v725 = vld [vmem:[%s724] sm:$0x1]
    %v727 = vlaneseq
    %v728 = vshrl.u32 %v727, 7
    %v729 = vsub.s32 0, %v728
    %v730 = vrot.slane %v725, %v729
    %v748 = vunpack.c.l.b16 %v706
    %v749 = vunpack.c.l.b16 %v707
    %v750 = vunpack.c.l.b16 %v708
    %v751 = vunpack.c.l.b16 %v709
    %v752 = vunpack.c.l.b16 %v710
    %v753 = vunpack.c.l.b16 %v711
    %v754 = vunpack.c.l.b16 %v712
    %v755 = vunpack.c.l.b16 %v713
    %v756 = vunpack.c.l.b16 %v714
    %v757 = vunpack.c.l.b16 %v715
    %v758 = vunpack.c.l.b16 %v716
    %v759 = vunpack.c.l.b16 %v717
    %v760 = vunpack.c.l.b16 %v718
    %v761 = vunpack.c.l.b16 %v719
    %v762 = vunpack.c.l.b16 %v720
    %v763 = vunpack.c.l.b16 %v721
    %v764 = vpack.c.b16 %v749, %v748
    %v765 = vpack.c.b16 %v751, %v750
    %v766 = vpack.c.b16 %v753, %v752
    %v767 = vpack.c.b16 %v755, %v754
    %v768 = vpack.c.b16 %v757, %v756
    %v769 = vpack.c.b16 %v759, %v758
    %v770 = vpack.c.b16 %v761, %v760
    %v771 = vpack.c.b16 %v763, %v762
    %780 = vmatprep.subr.bf16.mxu0 0
    %781 = vmatpush1.bf16.msra.mxu0 %v771
    %782 = vmatprep.subr.bf16.mxu0 0
    %783 = vmatpush1.bf16.msra.mxu0 %v770
    %784 = vmatprep.subr.bf16.mxu0 0
    %785 = vmatpush1.bf16.msra.mxu0 %v769
    %786 = vmatprep.subr.bf16.mxu0 0
    %787 = vmatpush1.bf16.msra.mxu0 %v768
    %788 = vmatprep.subr.bf16.mxu0 0
    %789 = vmatpush1.bf16.msra.mxu0 %v767
    %790 = vmatprep.subr.bf16.mxu0 0
    %791 = vmatpush1.bf16.msra.mxu0 %v766
    %792 = vmatprep.subr.bf16.mxu0 0
    %793 = vmatpush1.bf16.msra.mxu0 %v765
    %794 = vmatprep.subr.bf16.mxu0 0
    %795 = vmatpush1.bf16.msra.mxu0 %v764
    %796 = vmatprep.subr.bf16.mxu0 0
    %797 = vmatpush2.bf16.msra.mxu0 0
    %798 = vmatprep.subr.bf16.mxu0 0
    %799 = vmatpush2.bf16.msra.mxu0 0
    %800 = vmatprep.subr.bf16.mxu0 0
    %801 = vmatpush2.bf16.msra.mxu0 0
    %802 = vmatprep.subr.bf16.mxu0 0
    %803 = vmatpush2.bf16.msra.mxu0 0
    %804 = vmatprep.subr.bf16.mxu0 0
    %805 = vmatpush2.bf16.msra.mxu0 0
    %806 = vmatprep.subr.bf16.mxu0 0
    %807 = vmatpush2.bf16.msra.mxu0 0
    %808 = vmatprep.subr.bf16.mxu0 0
    %809 = vmatpush2.bf16.msra.mxu0 0
    %810 = vmatprep.subr.bf16.mxu0 0
    %811 = vmatpush2.bf16.msra.mxu0 0
    %812 = vmatprep.mubr.bf16.mxu0 0
    %813 = vmatmul.mubr.bf16.gmra.mxu0 %v722
    %v814 = vpop.f32.mrf.mxu0
    %v815 = vadd.f32 %v730, %v814
    %v816 = vpop.f32.mrf.mxu0
    %v817 = vpop.f32.mrf.mxu0
    %v818 = vadd.f32 %v730, %v817
    %v819 = vpop.f32.mrf.mxu0
    %820 = vmatprep.mubr.bf16.mxu0 0
    %821 = vmatmul.mubr.bf16.gmra.mxu0 %v723
    %v822 = vpop.f32.mrf.mxu0
    %v823 = vadd.f32 %v730, %v822
    %v824 = vpop.f32.mrf.mxu0
    %v825 = vpop.f32.mrf.mxu0
    %v826 = vadd.f32 %v730, %v825
    %v827 = vpop.f32.mrf.mxu0
    %828 = vdwg.mxu0
    %v829 = vmax.f32 %v815, 0.0
    %v830 = vmax.f32 %v818, 0.0
    %v831 = vmax.f32 %v823, 0.0
    %v832 = vmax.f32 %v826, 0.0
    %v833 = vpack.c.bf16 %v830, %v829
    %v834 = vpack.c.bf16 %v832, %v831
    %835 = vmatprep.subr.bf16.mxu0 0
    %836 = vmatpush1.bf16.msra.mxu0 0
    %837 = vmatprep.subr.bf16.mxu0 0
    %838 = vmatpush1.bf16.msra.mxu0 0
    %839 = vmatprep.subr.bf16.mxu0 0
    %840 = vmatpush1.bf16.msra.mxu0 0
    %841 = vmatprep.subr.bf16.mxu0 0
    %842 = vmatpush1.bf16.msra.mxu0 0
    %843 = vmatprep.subr.bf16.mxu0 0
    %844 = vmatpush1.bf16.msra.mxu0 0
    %845 = vmatprep.subr.bf16.mxu0 0
    %846 = vmatpush1.bf16.msra.mxu0 0
    %847 = vmatprep.subr.bf16.mxu0 0
    %848 = vmatpush1.bf16.msra.mxu0 %v834
    %849 = vmatprep.subr.bf16.mxu0 0
    %850 = vmatpush1.bf16.msra.mxu0 %v833
    %851 = vmatprep.subr.bf16.mxu0 0
    %852 = vmatpush2.bf16.msra.mxu0 0
    %853 = vmatprep.subr.bf16.mxu0 0
    %854 = vmatpush2.bf16.msra.mxu0 0
    %855 = vmatprep.subr.bf16.mxu0 0
    %856 = vmatpush2.bf16.msra.mxu0 0
    %857 = vmatprep.subr.bf16.mxu0 0
    %858 = vmatpush2.bf16.msra.mxu0 0
    %859 = vmatprep.subr.bf16.mxu0 0
    %860 = vmatpush2.bf16.msra.mxu0 0
    %861 = vmatprep.subr.bf16.mxu0 0
    %862 = vmatpush2.bf16.msra.mxu0 0
    %863 = vmatprep.subr.bf16.mxu0 0
    %864 = vmatpush2.bf16.msra.mxu0 0
    %865 = vmatprep.subr.bf16.mxu0 0
    %866 = vmatpush2.bf16.msra.mxu0 0
    %867 = vmatprep.mubr.bf16.mxu0 0
    %868 = vmatmul.mubr.bf16.gmra.mxu0 %v474
    %v869 = vpop.f32.mrf.mxu0
    %v870 = vadd.f32 0.0, %v869
    %v871 = vpop.f32.mrf.mxu0
    %v872 = vpop.f32.mrf.mxu0
    %v873 = vadd.f32 0.0, %v872
    %v874 = vpop.f32.mrf.mxu0
    %875 = vmatprep.mubr.bf16.mxu0 0
    %876 = vmatmul.mubr.bf16.gmra.mxu0 %v477
    %v877 = vpop.f32.mrf.mxu0
    %v878 = vadd.f32 0.0, %v877
    %v879 = vpop.f32.mrf.mxu0
    %v880 = vpop.f32.mrf.mxu0
    %v881 = vadd.f32 0.0, %v880
    %v882 = vpop.f32.mrf.mxu0
    %883 = vdwg.mxu0
    %v884 = vpack.c.bf16 %v873, %v870
    %v885 = vpack.c.bf16 %v881, %v878
    %v887 = vlaneseq
    %v888 = vshrl.u32 %v887, 7
    %v889 = vsub.s32 0, %v888
    %v890 = vrot.slane %v235, %v889
    %v908 = vunpack.c.l.b16 %v219
    %v909 = vunpack.c.l.b16 %v220
    %v910 = vunpack.c.l.b16 %v221
    %v911 = vunpack.c.l.b16 %v222
    %v912 = vunpack.c.l.b16 %v223
    %v913 = vunpack.c.l.b16 %v224
    %v914 = vunpack.c.l.b16 %v225
    %v915 = vunpack.c.l.b16 %v226
    %v916 = vunpack.c.l.b16 %v227
    %v917 = vunpack.c.l.b16 %v228
    %v918 = vunpack.c.l.b16 %v229
    %v919 = vunpack.c.l.b16 %v230
    %v920 = vunpack.c.l.b16 %v231
    %v921 = vunpack.c.l.b16 %v232
    %v922 = vunpack.c.l.b16 %v233
    %v923 = vunpack.c.l.b16 %v234
    %v924 = vpack.c.b16 %v909, %v908
    %v925 = vpack.c.b16 %v911, %v910
    %v926 = vpack.c.b16 %v913, %v912
    %v927 = vpack.c.b16 %v915, %v914
    %v928 = vpack.c.b16 %v917, %v916
    %v929 = vpack.c.b16 %v919, %v918
    %v930 = vpack.c.b16 %v921, %v920
    %v931 = vpack.c.b16 %v923, %v922
    %940 = vmatprep.subr.bf16.mxu0 0
    %941 = vmatpush1.bf16.msra.mxu0 %v931
    %942 = vmatprep.subr.bf16.mxu0 0
    %943 = vmatpush1.bf16.msra.mxu0 %v930
    %944 = vmatprep.subr.bf16.mxu0 0
    %945 = vmatpush1.bf16.msra.mxu0 %v929
    %946 = vmatprep.subr.bf16.mxu0 0
    %947 = vmatpush1.bf16.msra.mxu0 %v928
    %948 = vmatprep.subr.bf16.mxu0 0
    %949 = vmatpush1.bf16.msra.mxu0 %v927
    %950 = vmatprep.subr.bf16.mxu0 0
    %951 = vmatpush1.bf16.msra.mxu0 %v926
    %952 = vmatprep.subr.bf16.mxu0 0
    %953 = vmatpush1.bf16.msra.mxu0 %v925
    %954 = vmatprep.subr.bf16.mxu0 0
    %955 = vmatpush1.bf16.msra.mxu0 %v924
    %956 = vmatprep.subr.bf16.mxu0 0
    %957 = vmatpush2.bf16.msra.mxu0 0
    %958 = vmatprep.subr.bf16.mxu0 0
    %959 = vmatpush2.bf16.msra.mxu0 0
    %960 = vmatprep.subr.bf16.mxu0 0
    %961 = vmatpush2.bf16.msra.mxu0 0
    %962 = vmatprep.subr.bf16.mxu0 0
    %963 = vmatpush2.bf16.msra.mxu0 0
    %964 = vmatprep.subr.bf16.mxu0 0
    %965 = vmatpush2.bf16.msra.mxu0 0
    %966 = vmatprep.subr.bf16.mxu0 0
    %967 = vmatpush2.bf16.msra.mxu0 0
    %968 = vmatprep.subr.bf16.mxu0 0
    %969 = vmatpush2.bf16.msra.mxu0 0
    %970 = vmatprep.subr.bf16.mxu0 0
    %971 = vmatpush2.bf16.msra.mxu0 0
    %972 = vmatprep.mubr.bf16.mxu0 0
    %973 = vmatmul.mubr.bf16.gmra.mxu0 %v884
    %v974 = vpop.f32.mrf.mxu0
    %v975 = vadd.f32 %v890, %v974
    %v976 = vpop.f32.mrf.mxu0
    %v977 = vpop.f32.mrf.mxu0
    %v978 = vadd.f32 %v890, %v977
    %v979 = vpop.f32.mrf.mxu0
    %980 = vmatprep.mubr.bf16.mxu0 0
    %981 = vmatmul.mubr.bf16.gmra.mxu0 %v885
    %v982 = vpop.f32.mrf.mxu0
    %v983 = vadd.f32 %v890, %v982
    %v984 = vpop.f32.mrf.mxu0
    %v985 = vpop.f32.mrf.mxu0
    %v986 = vadd.f32 %v890, %v985
    %v987 = vpop.f32.mrf.mxu0
    %988 = vdwg.mxu0
    %v989 = vmax.f32 %v975, 0.0
    %v990 = vmax.f32 %v978, 0.0
    %v991 = vmax.f32 %v983, 0.0
    %v992 = vmax.f32 %v986, 0.0
    %v994 = vlaneseq
    %v995 = vshrl.u32 %v994, 7
    %v996 = vsub.s32 0, %v995
    %v997 = vrot.slane %v252, %v996
    %v1015 = vunpack.c.l.b16 %v236
    %v1016 = vunpack.c.l.b16 %v237
    %v1017 = vunpack.c.l.b16 %v238
    %v1018 = vunpack.c.l.b16 %v239
    %v1019 = vunpack.c.l.b16 %v240
    %v1020 = vunpack.c.l.b16 %v241
    %v1021 = vunpack.c.l.b16 %v242
    %v1022 = vunpack.c.l.b16 %v243
    %v1023 = vunpack.c.l.b16 %v244
    %v1024 = vunpack.c.l.b16 %v245
    %v1025 = vunpack.c.l.b16 %v246
    %v1026 = vunpack.c.l.b16 %v247
    %v1027 = vunpack.c.l.b16 %v248
    %v1028 = vunpack.c.l.b16 %v249
    %v1029 = vunpack.c.l.b16 %v250
    %v1030 = vunpack.c.l.b16 %v251
    %v1031 = vpack.c.b16 %v1016, %v1015
    %v1032 = vpack.c.b16 %v1018, %v1017
    %v1033 = vpack.c.b16 %v1020, %v1019
    %v1034 = vpack.c.b16 %v1022, %v1021
    %v1035 = vpack.c.b16 %v1024, %v1023
    %v1036 = vpack.c.b16 %v1026, %v1025
    %v1037 = vpack.c.b16 %v1028, %v1027
    %v1038 = vpack.c.b16 %v1030, %v1029
    %1047 = vmatprep.subr.bf16.mxu0 0
    %1048 = vmatpush1.bf16.msra.mxu0 %v1038
    %1049 = vmatprep.subr.bf16.mxu0 0
    %1050 = vmatpush1.bf16.msra.mxu0 %v1037
    %1051 = vmatprep.subr.bf16.mxu0 0
    %1052 = vmatpush1.bf16.msra.mxu0 %v1036
    %1053 = vmatprep.subr.bf16.mxu0 0
    %1054 = vmatpush1.bf16.msra.mxu0 %v1035
    %1055 = vmatprep.subr.bf16.mxu0 0
    %1056 = vmatpush1.bf16.msra.mxu0 %v1034
    %1057 = vmatprep.subr.bf16.mxu0 0
    %1058 = vmatpush1.bf16.msra.mxu0 %v1033
    %1059 = vmatprep.subr.bf16.mxu0 0
    %1060 = vmatpush1.bf16.msra.mxu0 %v1032
    %1061 = vmatprep.subr.bf16.mxu0 0
    %1062 = vmatpush1.bf16.msra.mxu0 %v1031
    %1063 = vmatprep.subr.bf16.mxu0 0
    %1064 = vmatpush2.bf16.msra.mxu0 0
    %1065 = vmatprep.subr.bf16.mxu0 0
    %1066 = vmatpush2.bf16.msra.mxu0 0
    %1067 = vmatprep.subr.bf16.mxu0 0
    %1068 = vmatpush2.bf16.msra.mxu0 0
    %1069 = vmatprep.subr.bf16.mxu0 0
    %1070 = vmatpush2.bf16.msra.mxu0 0
    %1071 = vmatprep.subr.bf16.mxu0 0
    %1072 = vmatpush2.bf16.msra.mxu0 0
    %1073 = vmatprep.subr.bf16.mxu0 0
    %1074 = vmatpush2.bf16.msra.mxu0 0
    %1075 = vmatprep.subr.bf16.mxu0 0
    %1076 = vmatpush2.bf16.msra.mxu0 0
    %1077 = vmatprep.subr.bf16.mxu0 0
    %1078 = vmatpush2.bf16.msra.mxu0 0
    %1079 = vmatprep.mubr.bf16.mxu0 0
    %1080 = vmatmul.mubr.bf16.gmra.mxu0 %v884
    %v1081 = vpop.f32.mrf.mxu0
    %v1082 = vadd.f32 %v997, %v1081
    %v1083 = vpop.f32.mrf.mxu0
    %v1084 = vpop.f32.mrf.mxu0
    %v1085 = vadd.f32 %v997, %v1084
    %v1086 = vpop.f32.mrf.mxu0
    %1087 = vmatprep.mubr.bf16.mxu0 0
    %1088 = vmatmul.mubr.bf16.gmra.mxu0 %v885
    %v1089 = vpop.f32.mrf.mxu0
    %v1090 = vadd.f32 %v997, %v1089
    %v1091 = vpop.f32.mrf.mxu0
    %v1092 = vpop.f32.mrf.mxu0
    %v1093 = vadd.f32 %v997, %v1092
    %v1094 = vpop.f32.mrf.mxu0
    %1095 = vdwg.mxu0
    %vm1096 = vcmask 64512
    %v1097 = vsel %vm1096, %v1082, -inf
    %1098 = vmax.xlane.f32.xlu0 %v1097
    %v1099 = vpop.xlane.xlu0 %1098
    %v1100 = vsel %vm1096, %v1085, -inf
    %1101 = vmax.xlane.f32.xlu0 %v1100
    %v1102 = vpop.xlane.xlu0 %1101
    %v1103 = vsel %vm1096, %v1090, -inf
    %1104 = vmax.xlane.f32.xlu0 %v1103
    %v1105 = vpop.xlane.xlu0 %1104
    %v1106 = vsel %vm1096, %v1093, -inf
    %1107 = vmax.xlane.f32.xlu0 %v1106
    %v1108 = vpop.xlane.xlu0 %1107
    %v1109 = vsub.f32 %v1082, %v1099
    %v1110 = vsub.f32 %v1085, %v1102
    %v1111 = vsub.f32 %v1090, %v1105
    %v1112 = vsub.f32 %v1093, %v1108
    %v1113 = vmul.f32 %v1109, 1.442695
    %v1114 = vpow.pop %v1113
    %v1115 = vmul.f32 %v1110, 1.442695
    %v1116 = vpow.pop %v1115
    %v1117 = vmul.f32 %v1111, 1.442695
    %v1118 = vpow.pop %v1117
    %v1119 = vmul.f32 %v1112, 1.442695
    %v1120 = vpow.pop %v1119
    %v1121 = vsel %vm1096, %v1114, 0.0
    %1122 = vadd.xlane.f32.xlu0 %v1121
    %v1123 = vpop.xlane.xlu0 %1122
    %v1124 = vsel %vm1096, %v1116, 0.0
    %1125 = vadd.xlane.f32.xlu0 %v1124
    %v1126 = vpop.xlane.xlu0 %1125
    %v1127 = vsel %vm1096, %v1118, 0.0
    %1128 = vadd.xlane.f32.xlu0 %v1127
    %v1129 = vpop.xlane.xlu0 %1128
    %v1130 = vsel %vm1096, %v1120, 0.0
    %1131 = vadd.xlane.f32.xlu0 %v1130
    %v1132 = vpop.xlane.xlu0 %1131
    %v1133 = vrcp.pop %v1123
    %v1134 = vmul.f32 %v1114, %v1133
    %v1135 = vrcp.pop %v1126
    %v1136 = vmul.f32 %v1116, %v1135
    %v1137 = vrcp.pop %v1129
    %v1138 = vmul.f32 %v1118, %v1137
    %v1139 = vrcp.pop %v1132
    %v1140 = vmul.f32 %v1120, %v1139
    %v1141 = vpack.c.bf16 %v1136, %v1134
    %v1142 = vpack.c.bf16 %v1140, %v1138
    %v1143 = vpack.c.bf16 %v990, %v989
    %v1144 = vpack.c.bf16 %v992, %v991
    %1145 = vxpose.xlu0.c.b16.start [1/8] %v1141, 128
    %1146 = vxpose.xlu0.c.b16.cont [2/8] %v1142, 128
    %1147 = vxpose.xlu0.c.b16.cont [3/8] 0, 128
    %1148 = vxpose.xlu0.c.b16.cont [4/8] 0, 128
    %1149 = vxpose.xlu0.c.b16.cont [5/8] 0, 128
    %1150 = vxpose.xlu0.c.b16.cont [6/8] 0, 128
    %1151 = vxpose.xlu0.c.b16.cont [7/8] 0, 128
    %1152 = vxpose.xlu0.c.b16.end [8/8] 0, 128
    %v1153 = vpop.trf.xlu0
    %v1154 = vpop.trf.xlu0
    %v1155 = vpop.trf.xlu0
    %v1156 = vpop.trf.xlu0
    %v1157 = vpop.trf.xlu0
    %v1158 = vpop.trf.xlu0
    %v1159 = vpop.trf.xlu0
    %v1160 = vpop.trf.xlu0
    %v1162 = vsel %vm472, %v1153, 0
    %1164 = vmatprep.subr.bf16.mxu0 0
    %1165 = vmatpush1.bf16.msra.mxu0 0
    %1166 = vmatprep.subr.bf16.mxu0 0
    %1167 = vmatpush1.bf16.msra.mxu0 0
    %1168 = vmatprep.subr.bf16.mxu0 0
    %1169 = vmatpush1.bf16.msra.mxu0 0
    %1170 = vmatprep.subr.bf16.mxu0 0
    %1171 = vmatpush1.bf16.msra.mxu0 0
    %1172 = vmatprep.subr.bf16.mxu0 0
    %1173 = vmatpush1.bf16.msra.mxu0 0
    %1174 = vmatprep.subr.bf16.mxu0 0
    %1175 = vmatpush1.bf16.msra.mxu0 0
    %1176 = vmatprep.subr.bf16.mxu0 0
    %1177 = vmatpush1.bf16.msra.mxu0 %v1144
    %1178 = vmatprep.subr.bf16.mxu0 0
    %1179 = vmatpush1.bf16.msra.mxu0 %v1143
    %1180 = vmatprep.subr.bf16.mxu0 0
    %1181 = vmatpush2.bf16.msra.mxu0 0
    %1182 = vmatprep.subr.bf16.mxu0 0
    %1183 = vmatpush2.bf16.msra.mxu0 0
    %1184 = vmatprep.subr.bf16.mxu0 0
    %1185 = vmatpush2.bf16.msra.mxu0 0
    %1186 = vmatprep.subr.bf16.mxu0 0
    %1187 = vmatpush2.bf16.msra.mxu0 0
    %1188 = vmatprep.subr.bf16.mxu0 0
    %1189 = vmatpush2.bf16.msra.mxu0 0
    %1190 = vmatprep.subr.bf16.mxu0 0
    %1191 = vmatpush2.bf16.msra.mxu0 0
    %1192 = vmatprep.subr.bf16.mxu0 0
    %1193 = vmatpush2.bf16.msra.mxu0 0
    %1194 = vmatprep.subr.bf16.mxu0 0
    %1195 = vmatpush2.bf16.msra.mxu0 0
    %1196 = vmatprep.mubr.bf16.mxu0 0
    %1197 = vmatmul.mubr.bf16.gmra.mxu0 %v1162
    %v1198 = vpop.f32.mrf.mxu0
    %v1199 = vadd.f32 0.0, %v1198
    %v1200 = vpop.f32.mrf.mxu0
    %v1201 = vpop.f32.mrf.mxu0
    %v1202 = vpop.f32.mrf.mxu0
    %1203 = vdwg.mxu0
    %1204 = vmatprep.subr.bf16.mxu0 0
    %1205 = vmatpush1.bf16.msra.mxu0 0
    %1206 = vmatprep.subr.bf16.mxu0 0
    %1207 = vmatpush1.bf16.msra.mxu0 0
    %1208 = vmatprep.subr.bf16.mxu0 0
    %1209 = vmatpush1.bf16.msra.mxu0 0
    %1210 = vmatprep.subr.bf16.mxu0 0
    %1211 = vmatpush1.bf16.msra.mxu0 0
    %1212 = vmatprep.subr.bf16.mxu0 0
    %1213 = vmatpush1.bf16.msra.mxu0 0
    %1214 = vmatprep.subr.bf16.mxu0 0
    %1215 = vmatpush1.bf16.msra.mxu0 0
    %1216 = vmatprep.subr.bf16.mxu0 0
    %1217 = vmatpush1.bf16.msra.mxu0 %v1142
    %1218 = vmatprep.subr.bf16.mxu0 0
    %1219 = vmatpush1.bf16.msra.mxu0 %v1141
    %1220 = vmatprep.subr.bf16.mxu0 0
    %1221 = vmatpush2.bf16.msra.mxu0 0
    %1222 = vmatprep.subr.bf16.mxu0 0
    %1223 = vmatpush2.bf16.msra.mxu0 0
    %1224 = vmatprep.subr.bf16.mxu0 0
    %1225 = vmatpush2.bf16.msra.mxu0 0
    %1226 = vmatprep.subr.bf16.mxu0 0
    %1227 = vmatpush2.bf16.msra.mxu0 0
    %1228 = vmatprep.subr.bf16.mxu0 0
    %1229 = vmatpush2.bf16.msra.mxu0 0
    %1230 = vmatprep.subr.bf16.mxu0 0
    %1231 = vmatpush2.bf16.msra.mxu0 0
    %1232 = vmatprep.subr.bf16.mxu0 0
    %1233 = vmatpush2.bf16.msra.mxu0 0
    %1234 = vmatprep.subr.bf16.mxu0 0
    %1235 = vmatpush2.bf16.msra.mxu0 0
    %1236 = vmatprep.mubr.bf16.mxu0 0
    %1237 = vmatmul.mubr.bf16.gmra.mxu0 %v474
    %v1238 = vpop.f32.mrf.mxu0
    %v1239 = vadd.f32 0.0, %v1238
    %v1240 = vpop.f32.mrf.mxu0
    %v1241 = vpop.f32.mrf.mxu0
    %v1242 = vadd.f32 0.0, %v1241
    %v1243 = vpop.f32.mrf.mxu0
    %1244 = vmatprep.mubr.bf16.mxu0 0
    %1245 = vmatmul.mubr.bf16.gmra.mxu0 %v477
    %v1246 = vpop.f32.mrf.mxu0
    %v1247 = vadd.f32 0.0, %v1246
    %v1248 = vpop.f32.mrf.mxu0
    %v1249 = vpop.f32.mrf.mxu0
    %v1250 = vadd.f32 0.0, %v1249
    %v1251 = vpop.f32.mrf.mxu0
    %1252 = vdwg.mxu0
    %v1253 = vpack.c.bf16 %v1242, %v1239
    %v1254 = vpack.c.bf16 %v1250, %v1247
    %1255 = vmatprep.subr.bf16.mxu0 0
    %1256 = vmatpush1.bf16.msra.mxu0 0
    %1257 = vmatprep.subr.bf16.mxu0 0
    %1258 = vmatpush1.bf16.msra.mxu0 0
    %1259 = vmatprep.subr.bf16.mxu0 0
    %1260 = vmatpush1.bf16.msra.mxu0 0
    %1261 = vmatprep.subr.bf16.mxu0 0
    %1262 = vmatpush1.bf16.msra.mxu0 0
    %1263 = vmatprep.subr.bf16.mxu0 0
    %1264 = vmatpush1.bf16.msra.mxu0 0
    %1265 = vmatprep.subr.bf16.mxu0 0
    %1266 = vmatpush1.bf16.msra.mxu0 0
    %1267 = vmatprep.subr.bf16.mxu0 0
    %1268 = vmatpush1.bf16.msra.mxu0 %v1254
    %1269 = vmatprep.subr.bf16.mxu0 0
    %1270 = vmatpush1.bf16.msra.mxu0 %v1253
    %1271 = vmatprep.subr.bf16.mxu0 0
    %1272 = vmatpush2.bf16.msra.mxu0 0
    %1273 = vmatprep.subr.bf16.mxu0 0
    %1274 = vmatpush2.bf16.msra.mxu0 0
    %1275 = vmatprep.subr.bf16.mxu0 0
    %1276 = vmatpush2.bf16.msra.mxu0 0
    %1277 = vmatprep.subr.bf16.mxu0 0
    %1278 = vmatpush2.bf16.msra.mxu0 0
    %1279 = vmatprep.subr.bf16.mxu0 0
    %1280 = vmatpush2.bf16.msra.mxu0 0
    %1281 = vmatprep.subr.bf16.mxu0 0
    %1282 = vmatpush2.bf16.msra.mxu0 0
    %1283 = vmatprep.subr.bf16.mxu0 0
    %1284 = vmatpush2.bf16.msra.mxu0 0
    %1285 = vmatprep.subr.bf16.mxu0 0
    %1286 = vmatpush2.bf16.msra.mxu0 0
    %1287 = vmatprep.mubr.bf16.mxu0 0
    %1288 = vmatmul.mubr.bf16.gmra.mxu0 %v1162
    %v1289 = vpop.f32.mrf.mxu0
    %v1290 = vadd.f32 0.0, %v1289
    %v1291 = vpop.f32.mrf.mxu0
    %v1292 = vpop.f32.mrf.mxu0
    %v1293 = vpop.f32.mrf.mxu0
    %1294 = vdwg.mxu0
    %v1295 = vlaneseq
    %v1296 = vshrl.u32 %v1295, 7
    %v1297 = vlaneseq
    %v1298 = vand.u32 %v1297, 127
    %vm1299 = vcmp.eq.s32.totalorder %v1296, %v1298
    %v1300 = vsel %vm1299, 1, 0
    %v1301 = vcvt.s32.f32 %v1300
    %v1302 = vpack.c.bf16 %v1301, %v1301
    %v1303 = vpack.c.bf16 %v1199, %v1199
    %1304 = vxpose.xlu0.c.b16.start [1/8] %v1302, 128
    %1305 = vxpose.xlu0.c.b16.cont [2/8] 0, 128
    %1306 = vxpose.xlu0.c.b16.cont [3/8] 0, 128
    %1307 = vxpose.xlu0.c.b16.cont [4/8] 0, 128
    %1308 = vxpose.xlu0.c.b16.cont [5/8] 0, 128
    %1309 = vxpose.xlu0.c.b16.cont [6/8] 0, 128
    %1310 = vxpose.xlu0.c.b16.cont [7/8] 0, 128
    %1311 = vxpose.xlu0.c.b16.end [8/8] 0, 128
    %v1312 = vpop.trf.xlu0
    %v1313 = vpop.trf.xlu0
    %v1314 = vpop.trf.xlu0
    %v1315 = vpop.trf.xlu0
    %v1316 = vpop.trf.xlu0
    %v1317 = vpop.trf.xlu0
    %v1318 = vpop.trf.xlu0
    %v1319 = vpop.trf.xlu0
    %v1321 = vsel %vm1096, %v1312, 0
    %vm1323 = vcmask 1043456
    %v1325 = vsel %vm1323, %v1303, 0
    %1327 = vmatprep.subr.bf16.mxu0 0
    %1328 = vmatpush1.bf16.msra.mxu0 0
    %1329 = vmatprep.subr.bf16.mxu0 0
    %1330 = vmatpush1.bf16.msra.mxu0 0
    %1331 = vmatprep.subr.bf16.mxu0 0
    %1332 = vmatpush1.bf16.msra.mxu0 0
    %1333 = vmatprep.subr.bf16.mxu0 0
    %1334 = vmatpush1.bf16.msra.mxu0 0
    %1335 = vmatprep.subr.bf16.mxu0 0
    %1336 = vmatpush1.bf16.msra.mxu0 0
    %1337 = vmatprep.subr.bf16.mxu0 0
    %1338 = vmatpush1.bf16.msra.mxu0 0
    %1339 = vmatprep.subr.bf16.mxu0 0
    %1340 = vmatpush1.bf16.msra.mxu0 0
    %1341 = vmatprep.subr.bf16.mxu0 0
    %1342 = vmatpush1.bf16.msra.mxu0 %v1325
    %1343 = vmatprep.subr.bf16.mxu0 0
    %1344 = vmatpush2.bf16.msra.mxu0 0
    %1345 = vmatprep.subr.bf16.mxu0 0
    %1346 = vmatpush2.bf16.msra.mxu0 0
    %1347 = vmatprep.subr.bf16.mxu0 0
    %1348 = vmatpush2.bf16.msra.mxu0 0
    %1349 = vmatprep.subr.bf16.mxu0 0
    %1350 = vmatpush2.bf16.msra.mxu0 0
    %1351 = vmatprep.subr.bf16.mxu0 0
    %1352 = vmatpush2.bf16.msra.mxu0 0
    %1353 = vmatprep.subr.bf16.mxu0 0
    %1354 = vmatpush2.bf16.msra.mxu0 0
    %1355 = vmatprep.subr.bf16.mxu0 0
    %1356 = vmatpush2.bf16.msra.mxu0 0
    %1357 = vmatprep.subr.bf16.mxu0 0
    %1358 = vmatpush2.bf16.msra.mxu0 0
    %1359 = vmatprep.mubr.bf16.mxu0 0
    %1360 = vmatmul.mubr.bf16.gmra.mxu0 %v1321
    %v1361 = vpop.f32.mrf.mxu0
    %v1362 = vadd.f32 0.0, %v1361
    %v1363 = vpop.f32.mrf.mxu0
    %v1364 = vpop.f32.mrf.mxu0
    %v1365 = vpop.f32.mrf.mxu0
    %1366 = vdwg.mxu0
    %v1367 = vpack.c.bf16 %v1290, %v1290
    %v1369 = vsel %vm1096, %v1367, 0
    %v1372 = vsel %vm1323, %v1302, 0
    %1374 = vmatprep.subr.bf16.mxu0 0
    %1375 = vmatpush1.bf16.msra.mxu0 0
    %1376 = vmatprep.subr.bf16.mxu0 0
    %1377 = vmatpush1.bf16.msra.mxu0 0
    %1378 = vmatprep.subr.bf16.mxu0 0
    %1379 = vmatpush1.bf16.msra.mxu0 0
    %1380 = vmatprep.subr.bf16.mxu0 0
    %1381 = vmatpush1.bf16.msra.mxu0 0
    %1382 = vmatprep.subr.bf16.mxu0 0
    %1383 = vmatpush1.bf16.msra.mxu0 0
    %1384 = vmatprep.subr.bf16.mxu0 0
    %1385 = vmatpush1.bf16.msra.mxu0 0
    %1386 = vmatprep.subr.bf16.mxu0 0
    %1387 = vmatpush1.bf16.msra.mxu0 0
    %1388 = vmatprep.subr.bf16.mxu0 0
    %1389 = vmatpush1.bf16.msra.mxu0 %v1372
    %1390 = vmatprep.subr.bf16.mxu0 0
    %1391 = vmatpush2.bf16.msra.mxu0 0
    %1392 = vmatprep.subr.bf16.mxu0 0
    %1393 = vmatpush2.bf16.msra.mxu0 0
    %1394 = vmatprep.subr.bf16.mxu0 0
    %1395 = vmatpush2.bf16.msra.mxu0 0
    %1396 = vmatprep.subr.bf16.mxu0 0
    %1397 = vmatpush2.bf16.msra.mxu0 0
    %1398 = vmatprep.subr.bf16.mxu0 0
    %1399 = vmatpush2.bf16.msra.mxu0 0
    %1400 = vmatprep.subr.bf16.mxu0 0
    %1401 = vmatpush2.bf16.msra.mxu0 0
    %1402 = vmatprep.subr.bf16.mxu0 0
    %1403 = vmatpush2.bf16.msra.mxu0 0
    %1404 = vmatprep.subr.bf16.mxu0 0
    %1405 = vmatpush2.bf16.msra.mxu0 0
    %1406 = vmatprep.mubr.bf16.mxu0 0
    %1407 = vmatmul.mubr.bf16.gmra.mxu0 %v1369
    %v1408 = vpop.f32.mrf.mxu0
    %v1409 = vadd.f32 0.0, %v1408
    %v1410 = vpop.f32.mrf.mxu0
    %v1411 = vpop.f32.mrf.mxu0
    %v1412 = vpop.f32.mrf.mxu0
    %1413 = vdwg.mxu0
    %v1414 = vpack.c.bf16 %v1409, %v1409
    %v1416 = vsel %vm1323, %v1414, 0
    %1418 = vmatprep.subr.bf16.mxu0 0
    %1419 = vmatpush1.bf16.msra.mxu0 0
    %1420 = vmatprep.subr.bf16.mxu0 0
    %1421 = vmatpush1.bf16.msra.mxu0 0
    %1422 = vmatprep.subr.bf16.mxu0 0
    %1423 = vmatpush1.bf16.msra.mxu0 0
    %1424 = vmatprep.subr.bf16.mxu0 0
    %1425 = vmatpush1.bf16.msra.mxu0 0
    %1426 = vmatprep.subr.bf16.mxu0 0
    %1427 = vmatpush1.bf16.msra.mxu0 0
    %1428 = vmatprep.subr.bf16.mxu0 0
    %1429 = vmatpush1.bf16.msra.mxu0 0
    %1430 = vmatprep.subr.bf16.mxu0 0
    %1431 = vmatpush1.bf16.msra.mxu0 0
    %1432 = vmatprep.subr.bf16.mxu0 0
    %1433 = vmatpush1.bf16.msra.mxu0 %v1416
    %1434 = vmatprep.subr.bf16.mxu0 0
    %1435 = vmatpush2.bf16.msra.mxu0 0
    %1436 = vmatprep.subr.bf16.mxu0 0
    %1437 = vmatpush2.bf16.msra.mxu0 0
    %1438 = vmatprep.subr.bf16.mxu0 0
    %1439 = vmatpush2.bf16.msra.mxu0 0
    %1440 = vmatprep.subr.bf16.mxu0 0
    %1441 = vmatpush2.bf16.msra.mxu0 0
    %1442 = vmatprep.subr.bf16.mxu0 0
    %1443 = vmatpush2.bf16.msra.mxu0 0
    %1444 = vmatprep.subr.bf16.mxu0 0
    %1445 = vmatpush2.bf16.msra.mxu0 0
    %1446 = vmatprep.subr.bf16.mxu0 0
    %1447 = vmatpush2.bf16.msra.mxu0 0
    %1448 = vmatprep.subr.bf16.mxu0 0
    %1449 = vmatpush2.bf16.msra.mxu0 0
    %1450 = vmatprep.mubr.bf16.mxu0 0
    %1451 = vmatmul.mubr.bf16.gmra.mxu0 %v1321
    %v1452 = vpop.f32.mrf.mxu0
    %v1453 = vadd.f32 0.0, %v1452
    %v1454 = vpop.f32.mrf.mxu0
    %v1455 = vpop.f32.mrf.mxu0
    %v1456 = vpop.f32.mrf.mxu0
    %1457 = vdwg.mxu0
    %v1458 = vpack.c.bf16 %v1453, %v1453
    %v1459 = vpack.c.bf16 %v1362, %v1362
    %vm1460 = vcmask 31744
    %v1462 = vsel %vm1460, %v1458, 0
    %vm1464 = vcmask 1041408
    %v1466 = vsel %vm1464, %v1459, 0
    %1468 = vmatprep.subr.bf16.mxu0 0
    %1469 = vmatpush1.bf16.msra.mxu0 0
    %1470 = vmatprep.subr.bf16.mxu0 0
    %1471 = vmatpush1.bf16.msra.mxu0 0
    %1472 = vmatprep.subr.bf16.mxu0 0
    %1473 = vmatpush1.bf16.msra.mxu0 0
    %1474 = vmatprep.subr.bf16.mxu0 0
    %1475 = vmatpush1.bf16.msra.mxu0 0
    %1476 = vmatprep.subr.bf16.mxu0 0
    %1477 = vmatpush1.bf16.msra.mxu0 0
    %1478 = vmatprep.subr.bf16.mxu0 0
    %1479 = vmatpush1.bf16.msra.mxu0 0
    %1480 = vmatprep.subr.bf16.mxu0 0
    %1481 = vmatpush1.bf16.msra.mxu0 0
    %1482 = vmatprep.subr.bf16.mxu0 0
    %1483 = vmatpush1.bf16.msra.mxu0 %v1466
    %1484 = vmatprep.subr.bf16.mxu0 0
    %1485 = vmatpush2.bf16.msra.mxu0 0
    %1486 = vmatprep.subr.bf16.mxu0 0
    %1487 = vmatpush2.bf16.msra.mxu0 0
    %1488 = vmatprep.subr.bf16.mxu0 0
    %1489 = vmatpush2.bf16.msra.mxu0 0
    %1490 = vmatprep.subr.bf16.mxu0 0
    %1491 = vmatpush2.bf16.msra.mxu0 0
    %1492 = vmatprep.subr.bf16.mxu0 0
    %1493 = vmatpush2.bf16.msra.mxu0 0
    %1494 = vmatprep.subr.bf16.mxu0 0
    %1495 = vmatpush2.bf16.msra.mxu0 0
    %1496 = vmatprep.subr.bf16.mxu0 0
    %1497 = vmatpush2.bf16.msra.mxu0 0
    %1498 = vmatprep.subr.bf16.mxu0 0
    %1499 = vmatpush2.bf16.msra.mxu0 0
    %1500 = vmatprep.mubr.bf16.mxu0 0
    %1501 = vmatmul.mubr.bf16.gmra.mxu0 %v1462
    %v1502 = vpop.f32.mrf.mxu0
    %v1503 = vadd.f32 0.0, %v1502
    %v1504 = vpop.f32.mrf.mxu0
    %v1505 = vpop.f32.mrf.mxu0
    %v1506 = vpop.f32.mrf.mxu0
    %1507 = vdwg.mxu0
    %v1508 = vld [vmem:[%s11] sm:$0xf]
    %v1509 = vld [vmem:[%s11 + $0x4] sm:$0xf]
    %v1510 = vld [vmem:[%s11 + $0x8] sm:$0xf]
    %v1511 = vld [vmem:[%s11 + $0xc] sm:$0xf]
    %v1512 = vld [vmem:[%s11 + $0x10] sm:$0xf]
    %v1513 = vld [vmem:[%s11 + $0x14] sm:$0xf]
    %v1514 = vld [vmem:[%s11 + $0x18] sm:$0xf]
    %v1515 = vld [vmem:[%s11 + $0x1c] sm:$0xf]
    %v1516 = vld [vmem:[%s11 + $0x20] sm:$0xf]
    %v1517 = vld [vmem:[%s11 + $0x24] sm:$0xf]
    %v1518 = vld [vmem:[%s11 + $0x28] sm:$0xf]
    %v1519 = vld [vmem:[%s11 + $0x2c] sm:$0xf]
    %v1520 = vld [vmem:[%s11 + $0x30] sm:$0xf]
    %v1521 = vld [vmem:[%s11 + $0x34] sm:$0xf]
    %v1522 = vld [vmem:[%s11 + $0x38] sm:$0xf]
    %v1523 = vld [vmem:[%s11 + $0x3c] sm:$0xf]
    %v1524 = vpack.c.bf16 %v1503, %v1503
    %v1525 = vld [vmem:[#allocation10] sm:$0x1]
    %v1527 = vlaneseq
    %v1528 = vshrl.u32 %v1527, 7
    %v1529 = vsub.s32 0, %v1528
    %v1530 = vrot.slane %v1525, %v1529
    %v1548 = vunpack.c.l.b16 %v1508
    %v1549 = vunpack.c.l.b16 %v1509
    %v1550 = vunpack.c.l.b16 %v1510
    %v1551 = vunpack.c.l.b16 %v1511
    %v1552 = vunpack.c.l.b16 %v1512
    %v1553 = vunpack.c.l.b16 %v1513
    %v1554 = vunpack.c.l.b16 %v1514
    %v1555 = vunpack.c.l.b16 %v1515
    %v1556 = vunpack.c.l.b16 %v1516
    %v1557 = vunpack.c.l.b16 %v1517
    %v1558 = vunpack.c.l.b16 %v1518
    %v1559 = vunpack.c.l.b16 %v1519
    %v1560 = vunpack.c.l.b16 %v1520
    %v1561 = vunpack.c.l.b16 %v1521
    %v1562 = vunpack.c.l.b16 %v1522
    %v1563 = vunpack.c.l.b16 %v1523
    %v1564 = vpack.c.b16 %v1549, %v1548
    %v1565 = vpack.c.b16 %v1551, %v1550
    %v1566 = vpack.c.b16 %v1553, %v1552
    %v1567 = vpack.c.b16 %v1555, %v1554
    %v1568 = vpack.c.b16 %v1557, %v1556
    %v1569 = vpack.c.b16 %v1559, %v1558
    %v1570 = vpack.c.b16 %v1561, %v1560
    %v1571 = vpack.c.b16 %v1563, %v1562
    %1580 = vmatprep.subr.bf16.mxu0 0
    %1581 = vmatpush1.bf16.msra.mxu0 %v1571
    %1582 = vmatprep.subr.bf16.mxu0 0
    %1583 = vmatpush1.bf16.msra.mxu0 %v1570
    %1584 = vmatprep.subr.bf16.mxu0 0
    %1585 = vmatpush1.bf16.msra.mxu0 %v1569
    %1586 = vmatprep.subr.bf16.mxu0 0
    %1587 = vmatpush1.bf16.msra.mxu0 %v1568
    %1588 = vmatprep.subr.bf16.mxu0 0
    %1589 = vmatpush1.bf16.msra.mxu0 %v1567
    %1590 = vmatprep.subr.bf16.mxu0 0
    %1591 = vmatpush1.bf16.msra.mxu0 %v1566
    %1592 = vmatprep.subr.bf16.mxu0 0
    %1593 = vmatpush1.bf16.msra.mxu0 %v1565
    %1594 = vmatprep.subr.bf16.mxu0 0
    %1595 = vmatpush1.bf16.msra.mxu0 %v1564
    %1596 = vmatprep.subr.bf16.mxu0 0
    %1597 = vmatpush2.bf16.msra.mxu0 0
    %1598 = vmatprep.subr.bf16.mxu0 0
    %1599 = vmatpush2.bf16.msra.mxu0 0
    %1600 = vmatprep.subr.bf16.mxu0 0
    %1601 = vmatpush2.bf16.msra.mxu0 0
    %1602 = vmatprep.subr.bf16.mxu0 0
    %1603 = vmatpush2.bf16.msra.mxu0 0
    %1604 = vmatprep.subr.bf16.mxu0 0
    %1605 = vmatpush2.bf16.msra.mxu0 0
    %1606 = vmatprep.subr.bf16.mxu0 0
    %1607 = vmatpush2.bf16.msra.mxu0 0
    %1608 = vmatprep.subr.bf16.mxu0 0
    %1609 = vmatpush2.bf16.msra.mxu0 0
    %1610 = vmatprep.subr.bf16.mxu0 0
    %1611 = vmatpush2.bf16.msra.mxu0 0
    %1612 = vmatprep.mubr.bf16.mxu0 0
    %1613 = vmatmul.mubr.bf16.gmra.mxu0 %v1524
    %v1614 = vpop.f32.mrf.mxu0
    %v1615 = vadd.f32 %v1530, %v1614
    %v1616 = vpop.f32.mrf.mxu0
    %v1617 = vpop.f32.mrf.mxu0
    %v1618 = vpop.f32.mrf.mxu0
    %1619 = vdwg.mxu0
    %v1620 = vmax.f32 %v1615, 0.0
    %v1621 = vpack.c.bf16 %v1620, %v1620
    %v1623 = vsel %vm1464, %v1621, 0
    %1625 = vmatprep.subr.bf16.mxu0 0
    %1626 = vmatpush1.bf16.msra.mxu0 0
    %1627 = vmatprep.subr.bf16.mxu0 0
    %1628 = vmatpush1.bf16.msra.mxu0 0
    %1629 = vmatprep.subr.bf16.mxu0 0
    %1630 = vmatpush1.bf16.msra.mxu0 0
    %1631 = vmatprep.subr.bf16.mxu0 0
    %1632 = vmatpush1.bf16.msra.mxu0 0
    %1633 = vmatprep.subr.bf16.mxu0 0
    %1634 = vmatpush1.bf16.msra.mxu0 0
    %1635 = vmatprep.subr.bf16.mxu0 0
    %1636 = vmatpush1.bf16.msra.mxu0 0
    %1637 = vmatprep.subr.bf16.mxu0 0
    %1638 = vmatpush1.bf16.msra.mxu0 0
    %1639 = vmatprep.subr.bf16.mxu0 0
    %1640 = vmatpush1.bf16.msra.mxu0 %v1623
    %1641 = vmatprep.subr.bf16.mxu0 0
    %1642 = vmatpush2.bf16.msra.mxu0 0
    %1643 = vmatprep.subr.bf16.mxu0 0
    %1644 = vmatpush2.bf16.msra.mxu0 0
    %1645 = vmatprep.subr.bf16.mxu0 0
    %1646 = vmatpush2.bf16.msra.mxu0 0
    %1647 = vmatprep.subr.bf16.mxu0 0
    %1648 = vmatpush2.bf16.msra.mxu0 0
    %1649 = vmatprep.subr.bf16.mxu0 0
    %1650 = vmatpush2.bf16.msra.mxu0 0
    %1651 = vmatprep.subr.bf16.mxu0 0
    %1652 = vmatpush2.bf16.msra.mxu0 0
    %1653 = vmatprep.subr.bf16.mxu0 0
    %1654 = vmatpush2.bf16.msra.mxu0 0
    %1655 = vmatprep.subr.bf16.mxu0 0
    %1656 = vmatpush2.bf16.msra.mxu0 0
    %1657 = vmatprep.mubr.bf16.mxu0 0
    %1658 = vmatmul.mubr.bf16.gmra.mxu0 %v1462
    %v1659 = vpop.f32.mrf.mxu0
    %v1660 = vadd.f32 0.0, %v1659
    %v1661 = vpop.f32.mrf.mxu0
    %v1662 = vpop.f32.mrf.mxu0
    %v1663 = vpop.f32.mrf.mxu0
    %1664 = vdwg.mxu0
    %s1665 = scalar_lea.vmem %s11, 64
    %v1666 = vld [vmem:[%s1665] sm:$0xf]
    %v1667 = vld [vmem:[%s1665 + $0x4] sm:$0xf]
    %v1668 = vld [vmem:[%s1665 + $0x8] sm:$0xf]
    %v1669 = vld [vmem:[%s1665 + $0xc] sm:$0xf]
    %v1670 = vld [vmem:[%s1665 + $0x10] sm:$0xf]
    %v1671 = vld [vmem:[%s1665 + $0x14] sm:$0xf]
    %v1672 = vld [vmem:[%s1665 + $0x18] sm:$0xf]
    %v1673 = vld [vmem:[%s1665 + $0x1c] sm:$0xf]
    %v1674 = vld [vmem:[%s1665 + $0x20] sm:$0xf]
    %v1675 = vld [vmem:[%s1665 + $0x24] sm:$0xf]
    %v1676 = vld [vmem:[%s1665 + $0x28] sm:$0xf]
    %v1677 = vld [vmem:[%s1665 + $0x2c] sm:$0xf]
    %v1678 = vld [vmem:[%s1665 + $0x30] sm:$0xf]
    %v1679 = vld [vmem:[%s1665 + $0x34] sm:$0xf]
    %v1680 = vld [vmem:[%s1665 + $0x38] sm:$0xf]
    %v1681 = vld [vmem:[%s1665 + $0x3c] sm:$0xf]
    %v1682 = vpack.c.bf16 %v1660, %v1660
    %s1683 = scalar_lea.vmem [#allocation10], 1
    %v1684 = vld [vmem:[%s1683] sm:$0x1]
    %v1686 = vlaneseq
    %v1687 = vshrl.u32 %v1686, 7
    %v1688 = vsub.s32 0, %v1687
    %v1689 = vrot.slane %v1684, %v1688
    %v1707 = vunpack.c.l.b16 %v1666
    %v1708 = vunpack.c.l.b16 %v1667
    %v1709 = vunpack.c.l.b16 %v1668
    %v1710 = vunpack.c.l.b16 %v1669
    %v1711 = vunpack.c.l.b16 %v1670
    %v1712 = vunpack.c.l.b16 %v1671
    %v1713 = vunpack.c.l.b16 %v1672
    %v1714 = vunpack.c.l.b16 %v1673
    %v1715 = vunpack.c.l.b16 %v1674
    %v1716 = vunpack.c.l.b16 %v1675
    %v1717 = vunpack.c.l.b16 %v1676
    %v1718 = vunpack.c.l.b16 %v1677
    %v1719 = vunpack.c.l.b16 %v1678
    %v1720 = vunpack.c.l.b16 %v1679
    %v1721 = vunpack.c.l.b16 %v1680
    %v1722 = vunpack.c.l.b16 %v1681
    %v1723 = vpack.c.b16 %v1708, %v1707
    %v1724 = vpack.c.b16 %v1710, %v1709
    %v1725 = vpack.c.b16 %v1712, %v1711
    %v1726 = vpack.c.b16 %v1714, %v1713
    %v1727 = vpack.c.b16 %v1716, %v1715
    %v1728 = vpack.c.b16 %v1718, %v1717
    %v1729 = vpack.c.b16 %v1720, %v1719
    %v1730 = vpack.c.b16 %v1722, %v1721
    %1739 = vmatprep.subr.bf16.mxu0 0
    %1740 = vmatpush1.bf16.msra.mxu0 %v1730
    %1741 = vmatprep.subr.bf16.mxu0 0
    %1742 = vmatpush1.bf16.msra.mxu0 %v1729
    %1743 = vmatprep.subr.bf16.mxu0 0
    %1744 = vmatpush1.bf16.msra.mxu0 %v1728
    %1745 = vmatprep.subr.bf16.mxu0 0
    %1746 = vmatpush1.bf16.msra.mxu0 %v1727
    %1747 = vmatprep.subr.bf16.mxu0 0
    %1748 = vmatpush1.bf16.msra.mxu0 %v1726
    %1749 = vmatprep.subr.bf16.mxu0 0
    %1750 = vmatpush1.bf16.msra.mxu0 %v1725
    %1751 = vmatprep.subr.bf16.mxu0 0
    %1752 = vmatpush1.bf16.msra.mxu0 %v1724
    %1753 = vmatprep.subr.bf16.mxu0 0
    %1754 = vmatpush1.bf16.msra.mxu0 %v1723
    %1755 = vmatprep.subr.bf16.mxu0 0
    %1756 = vmatpush2.bf16.msra.mxu0 0
    %1757 = vmatprep.subr.bf16.mxu0 0
    %1758 = vmatpush2.bf16.msra.mxu0 0
    %1759 = vmatprep.subr.bf16.mxu0 0
    %1760 = vmatpush2.bf16.msra.mxu0 0
    %1761 = vmatprep.subr.bf16.mxu0 0
    %1762 = vmatpush2.bf16.msra.mxu0 0
    %1763 = vmatprep.subr.bf16.mxu0 0
    %1764 = vmatpush2.bf16.msra.mxu0 0
    %1765 = vmatprep.subr.bf16.mxu0 0
    %1766 = vmatpush2.bf16.msra.mxu0 0
    %1767 = vmatprep.subr.bf16.mxu0 0
    %1768 = vmatpush2.bf16.msra.mxu0 0
    %1769 = vmatprep.subr.bf16.mxu0 0
    %1770 = vmatpush2.bf16.msra.mxu0 0
    %1771 = vmatprep.mubr.bf16.mxu0 0
    %1772 = vmatmul.mubr.bf16.gmra.mxu0 %v1682
    %v1773 = vpop.f32.mrf.mxu0
    %v1774 = vadd.f32 %v1689, %v1773
    %v1775 = vpop.f32.mrf.mxu0
    %v1776 = vpop.f32.mrf.mxu0
    %v1777 = vpop.f32.mrf.mxu0
    %1778 = vdwg.mxu0
    %v1779 = vmax.f32 %v1774, 0.0
    %v1780 = vpack.c.bf16 %v1779, %v1779
    %v1782 = vsel %vm1464, %v1780, 0
    %1784 = vmatprep.subr.bf16.mxu0 0
    %1785 = vmatpush1.bf16.msra.mxu0 0
    %1786 = vmatprep.subr.bf16.mxu0 0
    %1787 = vmatpush1.bf16.msra.mxu0 0
    %1788 = vmatprep.subr.bf16.mxu0 0
    %1789 = vmatpush1.bf16.msra.mxu0 0
    %1790 = vmatprep.subr.bf16.mxu0 0
    %1791 = vmatpush1.bf16.msra.mxu0 0
    %1792 = vmatprep.subr.bf16.mxu0 0
    %1793 = vmatpush1.bf16.msra.mxu0 0
    %1794 = vmatprep.subr.bf16.mxu0 0
    %1795 = vmatpush1.bf16.msra.mxu0 0
    %1796 = vmatprep.subr.bf16.mxu0 0
    %1797 = vmatpush1.bf16.msra.mxu0 0
    %1798 = vmatprep.subr.bf16.mxu0 0
    %1799 = vmatpush1.bf16.msra.mxu0 %v1782
    %1800 = vmatprep.subr.bf16.mxu0 0
    %1801 = vmatpush2.bf16.msra.mxu0 0
    %1802 = vmatprep.subr.bf16.mxu0 0
    %1803 = vmatpush2.bf16.msra.mxu0 0
    %1804 = vmatprep.subr.bf16.mxu0 0
    %1805 = vmatpush2.bf16.msra.mxu0 0
    %1806 = vmatprep.subr.bf16.mxu0 0
    %1807 = vmatpush2.bf16.msra.mxu0 0
    %1808 = vmatprep.subr.bf16.mxu0 0
    %1809 = vmatpush2.bf16.msra.mxu0 0
    %1810 = vmatprep.subr.bf16.mxu0 0
    %1811 = vmatpush2.bf16.msra.mxu0 0
    %1812 = vmatprep.subr.bf16.mxu0 0
    %1813 = vmatpush2.bf16.msra.mxu0 0
    %1814 = vmatprep.subr.bf16.mxu0 0
    %1815 = vmatpush2.bf16.msra.mxu0 0
    %1816 = vmatprep.mubr.bf16.mxu0 0
    %1817 = vmatmul.mubr.bf16.gmra.mxu0 %v1462
    %v1818 = vpop.f32.mrf.mxu0
    %v1819 = vadd.f32 0.0, %v1818
    %v1820 = vpop.f32.mrf.mxu0
    %v1821 = vpop.f32.mrf.mxu0
    %v1822 = vpop.f32.mrf.mxu0
    %1823 = vdwg.mxu0
    %v1824 = vld [vmem:[#allocation11] sm:$0xf]
    %v1825 = vld [vmem:[#allocation11 + $0x4] sm:$0xf]
    %v1826 = vld [vmem:[#allocation11 + $0x8] sm:$0xf]
    %v1827 = vld [vmem:[#allocation11 + $0xc] sm:$0xf]
    %v1828 = vld [vmem:[#allocation11 + $0x10] sm:$0xf]
    %v1829 = vld [vmem:[#allocation11 + $0x14] sm:$0xf]
    %v1830 = vld [vmem:[#allocation11 + $0x18] sm:$0xf]
    %v1831 = vld [vmem:[#allocation11 + $0x1c] sm:$0xf]
    %v1832 = vld [vmem:[#allocation11 + $0x20] sm:$0xf]
    %v1833 = vld [vmem:[#allocation11 + $0x24] sm:$0xf]
    %v1834 = vld [vmem:[#allocation11 + $0x28] sm:$0xf]
    %v1835 = vld [vmem:[#allocation11 + $0x2c] sm:$0xf]
    %v1836 = vld [vmem:[#allocation11 + $0x30] sm:$0xf]
    %v1837 = vld [vmem:[#allocation11 + $0x34] sm:$0xf]
    %v1838 = vld [vmem:[#allocation11 + $0x38] sm:$0xf]
    %v1839 = vld [vmem:[#allocation11 + $0x3c] sm:$0xf]
    %v1840 = vpack.c.bf16 %v1819, %v1819
    %v1841 = vld [vmem:[#allocation13] sm:$0x1]
    %v1843 = vlaneseq
    %v1844 = vshrl.u32 %v1843, 7
    %v1845 = vsub.s32 0, %v1844
    %v1846 = vrot.slane %v1841, %v1845
    %v1864 = vunpack.c.l.b16 %v1824
    %v1865 = vunpack.c.l.b16 %v1825
    %v1866 = vunpack.c.l.b16 %v1826
    %v1867 = vunpack.c.l.b16 %v1827
    %v1868 = vunpack.c.l.b16 %v1828
    %v1869 = vunpack.c.l.b16 %v1829
    %v1870 = vunpack.c.l.b16 %v1830
    %v1871 = vunpack.c.l.b16 %v1831
    %v1872 = vunpack.c.l.b16 %v1832
    %v1873 = vunpack.c.l.b16 %v1833
    %v1874 = vunpack.c.l.b16 %v1834
    %v1875 = vunpack.c.l.b16 %v1835
    %v1876 = vunpack.c.l.b16 %v1836
    %v1877 = vunpack.c.l.b16 %v1837
    %v1878 = vunpack.c.l.b16 %v1838
    %v1879 = vunpack.c.l.b16 %v1839
    %v1880 = vpack.c.b16 %v1865, %v1864
    %v1881 = vpack.c.b16 %v1867, %v1866
    %v1882 = vpack.c.b16 %v1869, %v1868
    %v1883 = vpack.c.b16 %v1871, %v1870
    %v1884 = vpack.c.b16 %v1873, %v1872
    %v1885 = vpack.c.b16 %v1875, %v1874
    %v1886 = vpack.c.b16 %v1877, %v1876
    %v1887 = vpack.c.b16 %v1879, %v1878
    %1896 = vmatprep.subr.bf16.mxu0 0
    %1897 = vmatpush1.bf16.msra.mxu0 %v1887
    %1898 = vmatprep.subr.bf16.mxu0 0
    %1899 = vmatpush1.bf16.msra.mxu0 %v1886
    %1900 = vmatprep.subr.bf16.mxu0 0
    %1901 = vmatpush1.bf16.msra.mxu0 %v1885
    %1902 = vmatprep.subr.bf16.mxu0 0
    %1903 = vmatpush1.bf16.msra.mxu0 %v1884
    %1904 = vmatprep.subr.bf16.mxu0 0
    %1905 = vmatpush1.bf16.msra.mxu0 %v1883
    %1906 = vmatprep.subr.bf16.mxu0 0
    %1907 = vmatpush1.bf16.msra.mxu0 %v1882
    %1908 = vmatprep.subr.bf16.mxu0 0
    %1909 = vmatpush1.bf16.msra.mxu0 %v1881
    %1910 = vmatprep.subr.bf16.mxu0 0
    %1911 = vmatpush1.bf16.msra.mxu0 %v1880
    %1912 = vmatprep.subr.bf16.mxu0 0
    %1913 = vmatpush2.bf16.msra.mxu0 0
    %1914 = vmatprep.subr.bf16.mxu0 0
    %1915 = vmatpush2.bf16.msra.mxu0 0
    %1916 = vmatprep.subr.bf16.mxu0 0
    %1917 = vmatpush2.bf16.msra.mxu0 0
    %1918 = vmatprep.subr.bf16.mxu0 0
    %1919 = vmatpush2.bf16.msra.mxu0 0
    %1920 = vmatprep.subr.bf16.mxu0 0
    %1921 = vmatpush2.bf16.msra.mxu0 0
    %1922 = vmatprep.subr.bf16.mxu0 0
    %1923 = vmatpush2.bf16.msra.mxu0 0
    %1924 = vmatprep.subr.bf16.mxu0 0
    %1925 = vmatpush2.bf16.msra.mxu0 0
    %1926 = vmatprep.subr.bf16.mxu0 0
    %1927 = vmatpush2.bf16.msra.mxu0 0
    %1928 = vmatprep.mubr.bf16.mxu0 0
    %1929 = vmatmul.mubr.bf16.gmra.mxu0 %v1840
    %v1930 = vpop.f32.mrf.mxu0
    %v1931 = vadd.f32 %v1846, %v1930
    %v1932 = vpop.f32.mrf.mxu0
    %v1933 = vpop.f32.mrf.mxu0
    %v1934 = vpop.f32.mrf.mxu0
    %1935 = vdwg.mxu0
    %v1936 = vmax.f32 %v1931, 0.0
    %v1937 = vld [vmem:[%s15] sm:$0xf]
    %v1938 = vld [vmem:[%s15 + $0x4] sm:$0xf]
    %v1939 = vld [vmem:[%s15 + $0x8] sm:$0xf]
    %v1940 = vld [vmem:[%s15 + $0xc] sm:$0xf]
    %v1941 = vld [vmem:[%s15 + $0x10] sm:$0xf]
    %v1942 = vld [vmem:[%s15 + $0x14] sm:$0xf]
    %v1943 = vld [vmem:[%s15 + $0x18] sm:$0xf]
    %v1944 = vld [vmem:[%s15 + $0x1c] sm:$0xf]
    %v1945 = vld [vmem:[%s15 + $0x20] sm:$0xf]
    %v1946 = vld [vmem:[%s15 + $0x24] sm:$0xf]
    %v1947 = vld [vmem:[%s15 + $0x28] sm:$0xf]
    %v1948 = vld [vmem:[%s15 + $0x2c] sm:$0xf]
    %v1949 = vld [vmem:[%s15 + $0x30] sm:$0xf]
    %v1950 = vld [vmem:[%s15 + $0x34] sm:$0xf]
    %v1951 = vld [vmem:[%s15 + $0x38] sm:$0xf]
    %v1952 = vld [vmem:[%s15 + $0x3c] sm:$0xf]
    %v1953 = vld [vmem:[%s16] sm:$0x1]
    %v1955 = vlaneseq
    %v1956 = vshrl.u32 %v1955, 7
    %v1957 = vsub.s32 0, %v1956
    %v1958 = vrot.slane %v1953, %v1957
    %v1976 = vunpack.c.l.b16 %v1937
    %v1977 = vunpack.c.l.b16 %v1938
    %v1978 = vunpack.c.l.b16 %v1939
    %v1979 = vunpack.c.l.b16 %v1940
    %v1980 = vunpack.c.l.b16 %v1941
    %v1981 = vunpack.c.l.b16 %v1942
    %v1982 = vunpack.c.l.b16 %v1943
    %v1983 = vunpack.c.l.b16 %v1944
    %v1984 = vunpack.c.l.b16 %v1945
    %v1985 = vunpack.c.l.b16 %v1946
    %v1986 = vunpack.c.l.b16 %v1947
    %v1987 = vunpack.c.l.b16 %v1948
    %v1988 = vunpack.c.l.b16 %v1949
    %v1989 = vunpack.c.l.b16 %v1950
    %v1990 = vunpack.c.l.b16 %v1951
    %v1991 = vunpack.c.l.b16 %v1952
    %v1992 = vpack.c.b16 %v1977, %v1976
    %v1993 = vpack.c.b16 %v1979, %v1978
    %v1994 = vpack.c.b16 %v1981, %v1980
    %v1995 = vpack.c.b16 %v1983, %v1982
    %v1996 = vpack.c.b16 %v1985, %v1984
    %v1997 = vpack.c.b16 %v1987, %v1986
    %v1998 = vpack.c.b16 %v1989, %v1988
    %v1999 = vpack.c.b16 %v1991, %v1990
    %2008 = vmatprep.subr.bf16.mxu0 0
    %2009 = vmatpush1.bf16.msra.mxu0 %v1999
    %2010 = vmatprep.subr.bf16.mxu0 0
    %2011 = vmatpush1.bf16.msra.mxu0 %v1998
    %2012 = vmatprep.subr.bf16.mxu0 0
    %2013 = vmatpush1.bf16.msra.mxu0 %v1997
    %2014 = vmatprep.subr.bf16.mxu0 0
    %2015 = vmatpush1.bf16.msra.mxu0 %v1996
    %2016 = vmatprep.subr.bf16.mxu0 0
    %2017 = vmatpush1.bf16.msra.mxu0 %v1995
    %2018 = vmatprep.subr.bf16.mxu0 0
    %2019 = vmatpush1.bf16.msra.mxu0 %v1994
    %2020 = vmatprep.subr.bf16.mxu0 0
    %2021 = vmatpush1.bf16.msra.mxu0 %v1993
    %2022 = vmatprep.subr.bf16.mxu0 0
    %2023 = vmatpush1.bf16.msra.mxu0 %v1992
    %2024 = vmatprep.subr.bf16.mxu0 0
    %2025 = vmatpush2.bf16.msra.mxu0 0
    %2026 = vmatprep.subr.bf16.mxu0 0
    %2027 = vmatpush2.bf16.msra.mxu0 0
    %2028 = vmatprep.subr.bf16.mxu0 0
    %2029 = vmatpush2.bf16.msra.mxu0 0
    %2030 = vmatprep.subr.bf16.mxu0 0
    %2031 = vmatpush2.bf16.msra.mxu0 0
    %2032 = vmatprep.subr.bf16.mxu0 0
    %2033 = vmatpush2.bf16.msra.mxu0 0
    %2034 = vmatprep.subr.bf16.mxu0 0
    %2035 = vmatpush2.bf16.msra.mxu0 0
    %2036 = vmatprep.subr.bf16.mxu0 0
    %2037 = vmatpush2.bf16.msra.mxu0 0
    %2038 = vmatprep.subr.bf16.mxu0 0
    %2039 = vmatpush2.bf16.msra.mxu0 0
    %2040 = vmatprep.mubr.bf16.mxu0 0
    %2041 = vmatmul.mubr.bf16.gmra.mxu0 %v1840
    %v2042 = vpop.f32.mrf.mxu0
    %v2043 = vadd.f32 %v1958, %v2042
    %v2044 = vpop.f32.mrf.mxu0
    %v2045 = vpop.f32.mrf.mxu0
    %v2046 = vpop.f32.mrf.mxu0
    %2047 = vdwg.mxu0
    %vm2048 = vcmask 11264
    %v2049 = vsel %vm2048, %v2043, -inf
    %2050 = vmax.xlane.f32.xlu0 %v2049
    %v2051 = vpop.xlane.xlu0 %2050
    %v2052 = vsub.f32 %v2043, %v2051
    %v2053 = vmul.f32 %v2052, 1.442695
    %v2054 = vpow.pop %v2053
    %v2055 = vsel %vm2048, %v2054, 0.0
    %2056 = vadd.xlane.f32.xlu0 %v2055
    %v2057 = vpop.xlane.xlu0 %2056
    %v2058 = vrcp.pop %v2057
    %v2059 = vmul.f32 %v2054, %v2058
    %v2060 = vpack.c.bf16 %v2059, %v2059
    %v2061 = vpack.c.bf16 %v1936, %v1936
    %2062 = vxpose.xlu0.c.b16.start [1/8] %v2060, 128
    %2063 = vxpose.xlu0.c.b16.cont [2/8] 0, 128
    %2064 = vxpose.xlu0.c.b16.cont [3/8] 0, 128
    %2065 = vxpose.xlu0.c.b16.cont [4/8] 0, 128
    %2066 = vxpose.xlu0.c.b16.cont [5/8] 0, 128
    %2067 = vxpose.xlu0.c.b16.cont [6/8] 0, 128
    %2068 = vxpose.xlu0.c.b16.cont [7/8] 0, 128
    %2069 = vxpose.xlu0.c.b16.end [8/8] 0, 128
    %v2070 = vpop.trf.xlu0
    %v2071 = vpop.trf.xlu0
    %v2072 = vpop.trf.xlu0
    %v2073 = vpop.trf.xlu0
    %v2074 = vpop.trf.xlu0
    %v2075 = vpop.trf.xlu0
    %v2076 = vpop.trf.xlu0
    %v2077 = vpop.trf.xlu0
    %v2079 = vsel %vm1460, %v2070, 0
    %v2082 = vsel %vm1464, %v2061, 0
    %2084 = vmatprep.subr.bf16.mxu0 0
    %2085 = vmatpush1.bf16.msra.mxu0 0
    %2086 = vmatprep.subr.bf16.mxu0 0
    %2087 = vmatpush1.bf16.msra.mxu0 0
    %2088 = vmatprep.subr.bf16.mxu0 0
    %2089 = vmatpush1.bf16.msra.mxu0 0
    %2090 = vmatprep.subr.bf16.mxu0 0
    %2091 = vmatpush1.bf16.msra.mxu0 0
    %2092 = vmatprep.subr.bf16.mxu0 0
    %2093 = vmatpush1.bf16.msra.mxu0 0
    %2094 = vmatprep.subr.bf16.mxu0 0
    %2095 = vmatpush1.bf16.msra.mxu0 0
    %2096 = vmatprep.subr.bf16.mxu0 0
    %2097 = vmatpush1.bf16.msra.mxu0 0
    %2098 = vmatprep.subr.bf16.mxu0 0
    %2099 = vmatpush1.bf16.msra.mxu0 %v2082
    %2100 = vmatprep.subr.bf16.mxu0 0
    %2101 = vmatpush2.bf16.msra.mxu0 0
    %2102 = vmatprep.subr.bf16.mxu0 0
    %2103 = vmatpush2.bf16.msra.mxu0 0
    %2104 = vmatprep.subr.bf16.mxu0 0
    %2105 = vmatpush2.bf16.msra.mxu0 0
    %2106 = vmatprep.subr.bf16.mxu0 0
    %2107 = vmatpush2.bf16.msra.mxu0 0
    %2108 = vmatprep.subr.bf16.mxu0 0
    %2109 = vmatpush2.bf16.msra.mxu0 0
    %2110 = vmatprep.subr.bf16.mxu0 0
    %2111 = vmatpush2.bf16.msra.mxu0 0
    %2112 = vmatprep.subr.bf16.mxu0 0
    %2113 = vmatpush2.bf16.msra.mxu0 0
    %2114 = vmatprep.subr.bf16.mxu0 0
    %2115 = vmatpush2.bf16.msra.mxu0 0
    %2116 = vmatprep.mubr.bf16.mxu0 0
    %2117 = vmatmul.mubr.bf16.gmra.mxu0 %v2079
    %v2118 = vpop.f32.mrf.mxu0
    %v2119 = vadd.f32 0.0, %v2118
    %v2120 = vpop.f32.mrf.mxu0
    %v2121 = vpop.f32.mrf.mxu0
    %v2122 = vpop.f32.mrf.mxu0
    %2123 = vdwg.mxu0
    %v2125 = vsel %vm1464, %v2060, 0
    %2127 = vmatprep.subr.bf16.mxu0 0
    %2128 = vmatpush1.bf16.msra.mxu0 0
    %2129 = vmatprep.subr.bf16.mxu0 0
    %2130 = vmatpush1.bf16.msra.mxu0 0
    %2131 = vmatprep.subr.bf16.mxu0 0
    %2132 = vmatpush1.bf16.msra.mxu0 0
    %2133 = vmatprep.subr.bf16.mxu0 0
    %2134 = vmatpush1.bf16.msra.mxu0 0
    %2135 = vmatprep.subr.bf16.mxu0 0
    %2136 = vmatpush1.bf16.msra.mxu0 0
    %2137 = vmatprep.subr.bf16.mxu0 0
    %2138 = vmatpush1.bf16.msra.mxu0 0
    %2139 = vmatprep.subr.bf16.mxu0 0
    %2140 = vmatpush1.bf16.msra.mxu0 0
    %2141 = vmatprep.subr.bf16.mxu0 0
    %2142 = vmatpush1.bf16.msra.mxu0 %v2125
    %2143 = vmatprep.subr.bf16.mxu0 0
    %2144 = vmatpush2.bf16.msra.mxu0 0
    %2145 = vmatprep.subr.bf16.mxu0 0
    %2146 = vmatpush2.bf16.msra.mxu0 0
    %2147 = vmatprep.subr.bf16.mxu0 0
    %2148 = vmatpush2.bf16.msra.mxu0 0
    %2149 = vmatprep.subr.bf16.mxu0 0
    %2150 = vmatpush2.bf16.msra.mxu0 0
    %2151 = vmatprep.subr.bf16.mxu0 0
    %2152 = vmatpush2.bf16.msra.mxu0 0
    %2153 = vmatprep.subr.bf16.mxu0 0
    %2154 = vmatpush2.bf16.msra.mxu0 0
    %2155 = vmatprep.subr.bf16.mxu0 0
    %2156 = vmatpush2.bf16.msra.mxu0 0
    %2157 = vmatprep.subr.bf16.mxu0 0
    %2158 = vmatpush2.bf16.msra.mxu0 0
    %2159 = vmatprep.mubr.bf16.mxu0 0
    %2160 = vmatmul.mubr.bf16.gmra.mxu0 %v1462
    %v2161 = vpop.f32.mrf.mxu0
    %v2162 = vadd.f32 0.0, %v2161
    %v2163 = vpop.f32.mrf.mxu0
    %v2164 = vpop.f32.mrf.mxu0
    %v2165 = vpop.f32.mrf.mxu0
    %2166 = vdwg.mxu0
    %v2167 = vpack.c.bf16 %v2162, %v2162
    %v2169 = vsel %vm1464, %v2167, 0
    %2171 = vmatprep.subr.bf16.mxu0 0
    %2172 = vmatpush1.bf16.msra.mxu0 0
    %2173 = vmatprep.subr.bf16.mxu0 0
    %2174 = vmatpush1.bf16.msra.mxu0 0
    %2175 = vmatprep.subr.bf16.mxu0 0
    %2176 = vmatpush1.bf16.msra.mxu0 0
    %2177 = vmatprep.subr.bf16.mxu0 0
    %2178 = vmatpush1.bf16.msra.mxu0 0
    %2179 = vmatprep.subr.bf16.mxu0 0
    %2180 = vmatpush1.bf16.msra.mxu0 0
    %2181 = vmatprep.subr.bf16.mxu0 0
    %2182 = vmatpush1.bf16.msra.mxu0 0
    %2183 = vmatprep.subr.bf16.mxu0 0
    %2184 = vmatpush1.bf16.msra.mxu0 0
    %2185 = vmatprep.subr.bf16.mxu0 0
    %2186 = vmatpush1.bf16.msra.mxu0 %v2169
    %2187 = vmatprep.subr.bf16.mxu0 0
    %2188 = vmatpush2.bf16.msra.mxu0 0
    %2189 = vmatprep.subr.bf16.mxu0 0
    %2190 = vmatpush2.bf16.msra.mxu0 0
    %2191 = vmatprep.subr.bf16.mxu0 0
    %2192 = vmatpush2.bf16.msra.mxu0 0
    %2193 = vmatprep.subr.bf16.mxu0 0
    %2194 = vmatpush2.bf16.msra.mxu0 0
    %2195 = vmatprep.subr.bf16.mxu0 0
    %2196 = vmatpush2.bf16.msra.mxu0 0
    %2197 = vmatprep.subr.bf16.mxu0 0
    %2198 = vmatpush2.bf16.msra.mxu0 0
    %2199 = vmatprep.subr.bf16.mxu0 0
    %2200 = vmatpush2.bf16.msra.mxu0 0
    %2201 = vmatprep.subr.bf16.mxu0 0
    %2202 = vmatpush2.bf16.msra.mxu0 0
    %2203 = vmatprep.mubr.bf16.mxu0 0
    %2204 = vmatmul.mubr.bf16.gmra.mxu0 %v2079
    %v2205 = vpop.f32.mrf.mxu0
    %v2206 = vadd.f32 0.0, %v2205
    %v2207 = vpop.f32.mrf.mxu0
    %v2208 = vpop.f32.mrf.mxu0
    %v2209 = vpop.f32.mrf.mxu0
    %2210 = vdwg.mxu0
    %v2211 = vpack.c.bf16 %v2206, %v2206
    %v2212 = vpack.c.bf16 %v2119, %v2119
    %vm2213 = vcmask 15360
    %v2215 = vsel %vm2213, %v2211, 0
    %vm2217 = vcmask 1040384
    %v2219 = vsel %vm2217, %v2212, 0
    %2221 = vmatprep.subr.bf16.mxu0 0
    %2222 = vmatpush1.bf16.msra.mxu0 0
    %2223 = vmatprep.subr.bf16.mxu0 0
    %2224 = vmatpush1.bf16.msra.mxu0 0
    %2225 = vmatprep.subr.bf16.mxu0 0
    %2226 = vmatpush1.bf16.msra.mxu0 0
    %2227 = vmatprep.subr.bf16.mxu0 0
    %2228 = vmatpush1.bf16.msra.mxu0 0
    %2229 = vmatprep.subr.bf16.mxu0 0
    %2230 = vmatpush1.bf16.msra.mxu0 0
    %2231 = vmatprep.subr.bf16.mxu0 0
    %2232 = vmatpush1.bf16.msra.mxu0 0
    %2233 = vmatprep.subr.bf16.mxu0 0
    %2234 = vmatpush1.bf16.msra.mxu0 0
    %2235 = vmatprep.subr.bf16.mxu0 0
    %2236 = vmatpush1.bf16.msra.mxu0 %v2219
    %2237 = vmatprep.subr.bf16.mxu0 0
    %2238 = vmatpush2.bf16.msra.mxu0 0
    %2239 = vmatprep.subr.bf16.mxu0 0
    %2240 = vmatpush2.bf16.msra.mxu0 0
    %2241 = vmatprep.subr.bf16.mxu0 0
    %2242 = vmatpush2.bf16.msra.mxu0 0
    %2243 = vmatprep.subr.bf16.mxu0 0
    %2244 = vmatpush2.bf16.msra.mxu0 0
    %2245 = vmatprep.subr.bf16.mxu0 0
    %2246 = vmatpush2.bf16.msra.mxu0 0
    %2247 = vmatprep.subr.bf16.mxu0 0
    %2248 = vmatpush2.bf16.msra.mxu0 0
    %2249 = vmatprep.subr.bf16.mxu0 0
    %2250 = vmatpush2.bf16.msra.mxu0 0
    %2251 = vmatprep.subr.bf16.mxu0 0
    %2252 = vmatpush2.bf16.msra.mxu0 0
    %2253 = vmatprep.mubr.bf16.mxu0 0
    %2254 = vmatmul.mubr.bf16.gmra.mxu0 %v2215
    %v2255 = vpop.f32.mrf.mxu0
    %v2256 = vadd.f32 0.0, %v2255
    %v2257 = vpop.f32.mrf.mxu0
    %v2258 = vpop.f32.mrf.mxu0
    %v2259 = vpop.f32.mrf.mxu0
    %2260 = vdwg.mxu0
    %v2261 = vld [vmem:[#allocation14] sm:$0xf]
    %v2262 = vld [vmem:[#allocation14 + $0x4] sm:$0xf]
    %v2263 = vld [vmem:[#allocation14 + $0x8] sm:$0xf]
    %v2264 = vld [vmem:[#allocation14 + $0xc] sm:$0xf]
    %v2265 = vld [vmem:[#allocation14 + $0x10] sm:$0xf]
    %v2266 = vld [vmem:[#allocation14 + $0x14] sm:$0xf]
    %v2267 = vld [vmem:[#allocation14 + $0x18] sm:$0xf]
    %v2268 = vld [vmem:[#allocation14 + $0x1c] sm:$0xf]
    %v2269 = vld [vmem:[#allocation14 + $0x20] sm:$0xf]
    %v2270 = vld [vmem:[#allocation14 + $0x24] sm:$0xf]
    %v2271 = vld [vmem:[#allocation14 + $0x28] sm:$0xf]
    %v2272 = vld [vmem:[#allocation14 + $0x2c] sm:$0xf]
    %v2273 = vld [vmem:[#allocation14 + $0x30] sm:$0xf]
    %v2274 = vld [vmem:[#allocation14 + $0x34] sm:$0xf]
    %v2275 = vld [vmem:[#allocation14 + $0x38] sm:$0xf]
    %v2276 = vld [vmem:[#allocation14 + $0x3c] sm:$0xf]
    %v2277 = vpack.c.bf16 %v2256, %v2256
    %v2278 = vld [vmem:[%s18] sm:$0x1]
    %v2280 = vlaneseq
    %v2281 = vshrl.u32 %v2280, 7
    %v2282 = vsub.s32 0, %v2281
    %v2283 = vrot.slane %v2278, %v2282
    %v2301 = vunpack.c.l.b16 %v2261
    %v2302 = vunpack.c.l.b16 %v2262
    %v2303 = vunpack.c.l.b16 %v2263
    %v2304 = vunpack.c.l.b16 %v2264
    %v2305 = vunpack.c.l.b16 %v2265
    %v2306 = vunpack.c.l.b16 %v2266
    %v2307 = vunpack.c.l.b16 %v2267
    %v2308 = vunpack.c.l.b16 %v2268
    %v2309 = vunpack.c.l.b16 %v2269
    %v2310 = vunpack.c.l.b16 %v2270
    %v2311 = vunpack.c.l.b16 %v2271
    %v2312 = vunpack.c.l.b16 %v2272
    %v2313 = vunpack.c.l.b16 %v2273
    %v2314 = vunpack.c.l.b16 %v2274
    %v2315 = vunpack.c.l.b16 %v2275
    %v2316 = vunpack.c.l.b16 %v2276
    %v2317 = vpack.c.b16 %v2302, %v2301
    %v2318 = vpack.c.b16 %v2304, %v2303
    %v2319 = vpack.c.b16 %v2306, %v2305
    %v2320 = vpack.c.b16 %v2308, %v2307
    %v2321 = vpack.c.b16 %v2310, %v2309
    %v2322 = vpack.c.b16 %v2312, %v2311
    %v2323 = vpack.c.b16 %v2314, %v2313
    %v2324 = vpack.c.b16 %v2316, %v2315
    %2333 = vmatprep.subr.bf16.mxu0 0
    %2334 = vmatpush1.bf16.msra.mxu0 %v2324
    %2335 = vmatprep.subr.bf16.mxu0 0
    %2336 = vmatpush1.bf16.msra.mxu0 %v2323
    %2337 = vmatprep.subr.bf16.mxu0 0
    %2338 = vmatpush1.bf16.msra.mxu0 %v2322
    %2339 = vmatprep.subr.bf16.mxu0 0
    %2340 = vmatpush1.bf16.msra.mxu0 %v2321
    %2341 = vmatprep.subr.bf16.mxu0 0
    %2342 = vmatpush1.bf16.msra.mxu0 %v2320
    %2343 = vmatprep.subr.bf16.mxu0 0
    %2344 = vmatpush1.bf16.msra.mxu0 %v2319
    %2345 = vmatprep.subr.bf16.mxu0 0
    %2346 = vmatpush1.bf16.msra.mxu0 %v2318
    %2347 = vmatprep.subr.bf16.mxu0 0
    %2348 = vmatpush1.bf16.msra.mxu0 %v2317
    %2349 = vmatprep.subr.bf16.mxu0 0
    %2350 = vmatpush2.bf16.msra.mxu0 0
    %2351 = vmatprep.subr.bf16.mxu0 0
    %2352 = vmatpush2.bf16.msra.mxu0 0
    %2353 = vmatprep.subr.bf16.mxu0 0
    %2354 = vmatpush2.bf16.msra.mxu0 0
    %2355 = vmatprep.subr.bf16.mxu0 0
    %2356 = vmatpush2.bf16.msra.mxu0 0
    %2357 = vmatprep.subr.bf16.mxu0 0
    %2358 = vmatpush2.bf16.msra.mxu0 0
    %2359 = vmatprep.subr.bf16.mxu0 0
    %2360 = vmatpush2.bf16.msra.mxu0 0
    %2361 = vmatprep.subr.bf16.mxu0 0
    %2362 = vmatpush2.bf16.msra.mxu0 0
    %2363 = vmatprep.subr.bf16.mxu0 0
    %2364 = vmatpush2.bf16.msra.mxu0 0
    %2365 = vmatprep.mubr.bf16.mxu0 0
    %2366 = vmatmul.mubr.bf16.gmra.mxu0 %v2277
    %v2367 = vpop.f32.mrf.mxu0
    %v2368 = vadd.f32 %v2283, %v2367
    %v2369 = vpop.f32.mrf.mxu0
    %v2370 = vpop.f32.mrf.mxu0
    %v2371 = vpop.f32.mrf.mxu0
    %2372 = vdwg.mxu0
    %v2373 = vmax.f32 %v2368, 0.0
    %v2374 = vpack.c.bf16 %v2373, %v2373
    %v2376 = vsel %vm2217, %v2374, 0
    %2378 = vmatprep.subr.bf16.mxu0 0
    %2379 = vmatpush1.bf16.msra.mxu0 0
    %2380 = vmatprep.subr.bf16.mxu0 0
    %2381 = vmatpush1.bf16.msra.mxu0 0
    %2382 = vmatprep.subr.bf16.mxu0 0
    %2383 = vmatpush1.bf16.msra.mxu0 0
    %2384 = vmatprep.subr.bf16.mxu0 0
    %2385 = vmatpush1.bf16.msra.mxu0 0
    %2386 = vmatprep.subr.bf16.mxu0 0
    %2387 = vmatpush1.bf16.msra.mxu0 0
    %2388 = vmatprep.subr.bf16.mxu0 0
    %2389 = vmatpush1.bf16.msra.mxu0 0
    %2390 = vmatprep.subr.bf16.mxu0 0
    %2391 = vmatpush1.bf16.msra.mxu0 0
    %2392 = vmatprep.subr.bf16.mxu0 0
    %2393 = vmatpush1.bf16.msra.mxu0 %v2376
    %2394 = vmatprep.subr.bf16.mxu0 0
    %2395 = vmatpush2.bf16.msra.mxu0 0
    %2396 = vmatprep.subr.bf16.mxu0 0
    %2397 = vmatpush2.bf16.msra.mxu0 0
    %2398 = vmatprep.subr.bf16.mxu0 0
    %2399 = vmatpush2.bf16.msra.mxu0 0
    %2400 = vmatprep.subr.bf16.mxu0 0
    %2401 = vmatpush2.bf16.msra.mxu0 0
    %2402 = vmatprep.subr.bf16.mxu0 0
    %2403 = vmatpush2.bf16.msra.mxu0 0
    %2404 = vmatprep.subr.bf16.mxu0 0
    %2405 = vmatpush2.bf16.msra.mxu0 0
    %2406 = vmatprep.subr.bf16.mxu0 0
    %2407 = vmatpush2.bf16.msra.mxu0 0
    %2408 = vmatprep.subr.bf16.mxu0 0
    %2409 = vmatpush2.bf16.msra.mxu0 0
    %2410 = vmatprep.mubr.bf16.mxu0 0
    %2411 = vmatmul.mubr.bf16.gmra.mxu0 %v2215
    %v2412 = vpop.f32.mrf.mxu0
    %v2413 = vadd.f32 0.0, %v2412
    %v2414 = vpop.f32.mrf.mxu0
    %v2415 = vpop.f32.mrf.mxu0
    %v2416 = vpop.f32.mrf.mxu0
    %2417 = vdwg.mxu0
    %s2418 = scalar_lea.vmem [#allocation14], 64
    %v2419 = vld [vmem:[%s2418] sm:$0xf]
    %v2420 = vld [vmem:[%s2418 + $0x4] sm:$0xf]
    %v2421 = vld [vmem:[%s2418 + $0x8] sm:$0xf]
    %v2422 = vld [vmem:[%s2418 + $0xc] sm:$0xf]
    %v2423 = vld [vmem:[%s2418 + $0x10] sm:$0xf]
    %v2424 = vld [vmem:[%s2418 + $0x14] sm:$0xf]
    %v2425 = vld [vmem:[%s2418 + $0x18] sm:$0xf]
    %v2426 = vld [vmem:[%s2418 + $0x1c] sm:$0xf]
    %v2427 = vld [vmem:[%s2418 + $0x20] sm:$0xf]
    %v2428 = vld [vmem:[%s2418 + $0x24] sm:$0xf]
    %v2429 = vld [vmem:[%s2418 + $0x28] sm:$0xf]
    %v2430 = vld [vmem:[%s2418 + $0x2c] sm:$0xf]
    %v2431 = vld [vmem:[%s2418 + $0x30] sm:$0xf]
    %v2432 = vld [vmem:[%s2418 + $0x34] sm:$0xf]
    %v2433 = vld [vmem:[%s2418 + $0x38] sm:$0xf]
    %v2434 = vld [vmem:[%s2418 + $0x3c] sm:$0xf]
    %v2435 = vpack.c.bf16 %v2413, %v2413
    %s2436 = scalar_lea.vmem %s18, 1
    %v2437 = vld [vmem:[%s2436] sm:$0x1]
    %v2439 = vlaneseq
    %v2440 = vshrl.u32 %v2439, 7
    %v2441 = vsub.s32 0, %v2440
    %v2442 = vrot.slane %v2437, %v2441
    %v2460 = vunpack.c.l.b16 %v2419
    %v2461 = vunpack.c.l.b16 %v2420
    %v2462 = vunpack.c.l.b16 %v2421
    %v2463 = vunpack.c.l.b16 %v2422
    %v2464 = vunpack.c.l.b16 %v2423
    %v2465 = vunpack.c.l.b16 %v2424
    %v2466 = vunpack.c.l.b16 %v2425
    %v2467 = vunpack.c.l.b16 %v2426
    %v2468 = vunpack.c.l.b16 %v2427
    %v2469 = vunpack.c.l.b16 %v2428
    %v2470 = vunpack.c.l.b16 %v2429
    %v2471 = vunpack.c.l.b16 %v2430
    %v2472 = vunpack.c.l.b16 %v2431
    %v2473 = vunpack.c.l.b16 %v2432
    %v2474 = vunpack.c.l.b16 %v2433
    %v2475 = vunpack.c.l.b16 %v2434
    %v2476 = vpack.c.b16 %v2461, %v2460
    %v2477 = vpack.c.b16 %v2463, %v2462
    %v2478 = vpack.c.b16 %v2465, %v2464
    %v2479 = vpack.c.b16 %v2467, %v2466
    %v2480 = vpack.c.b16 %v2469, %v2468
    %v2481 = vpack.c.b16 %v2471, %v2470
    %v2482 = vpack.c.b16 %v2473, %v2472
    %v2483 = vpack.c.b16 %v2475, %v2474
    %2492 = vmatprep.subr.bf16.mxu0 0
    %2493 = vmatpush1.bf16.msra.mxu0 %v2483
    %2494 = vmatprep.subr.bf16.mxu0 0
    %2495 = vmatpush1.bf16.msra.mxu0 %v2482
    %2496 = vmatprep.subr.bf16.mxu0 0
    %2497 = vmatpush1.bf16.msra.mxu0 %v2481
    %2498 = vmatprep.subr.bf16.mxu0 0
    %2499 = vmatpush1.bf16.msra.mxu0 %v2480
    %2500 = vmatprep.subr.bf16.mxu0 0
    %2501 = vmatpush1.bf16.msra.mxu0 %v2479
    %2502 = vmatprep.subr.bf16.mxu0 0
    %2503 = vmatpush1.bf16.msra.mxu0 %v2478
    %2504 = vmatprep.subr.bf16.mxu0 0
    %2505 = vmatpush1.bf16.msra.mxu0 %v2477
    %2506 = vmatprep.subr.bf16.mxu0 0
    %2507 = vmatpush1.bf16.msra.mxu0 %v2476
    %2508 = vmatprep.subr.bf16.mxu0 0
    %2509 = vmatpush2.bf16.msra.mxu0 0
    %2510 = vmatprep.subr.bf16.mxu0 0
    %2511 = vmatpush2.bf16.msra.mxu0 0
    %2512 = vmatprep.subr.bf16.mxu0 0
    %2513 = vmatpush2.bf16.msra.mxu0 0
    %2514 = vmatprep.subr.bf16.mxu0 0
    %2515 = vmatpush2.bf16.msra.mxu0 0
    %2516 = vmatprep.subr.bf16.mxu0 0
    %2517 = vmatpush2.bf16.msra.mxu0 0
    %2518 = vmatprep.subr.bf16.mxu0 0
    %2519 = vmatpush2.bf16.msra.mxu0 0
    %2520 = vmatprep.subr.bf16.mxu0 0
    %2521 = vmatpush2.bf16.msra.mxu0 0
    %2522 = vmatprep.subr.bf16.mxu0 0
    %2523 = vmatpush2.bf16.msra.mxu0 0
    %2524 = vmatprep.mubr.bf16.mxu0 0
    %2525 = vmatmul.mubr.bf16.gmra.mxu0 %v2435
    %v2526 = vpop.f32.mrf.mxu0
    %v2527 = vadd.f32 %v2442, %v2526
    %v2528 = vpop.f32.mrf.mxu0
    %v2529 = vpop.f32.mrf.mxu0
    %v2530 = vpop.f32.mrf.mxu0
    %2531 = vdwg.mxu0
    %v2532 = vmax.f32 %v2527, 0.0
    %v2533 = vsel %vm1464, %v2532, -inf
    %v2534 = vrot.slane %v2533, 4
    %v2535 = vmax.f32 %v2533, %v2534
    %v2536 = vrot.slane %v2535, 2
    %v2537 = vmax.f32 %v2535, %v2536
    %v2538 = vrot.slane %v2537, 1
    %v2539 = vmax.f32 %v2537, %v2538
    %v2540 = vadd.s32 %v1298, 4
    %vm2541 = vcmp.eq.s32.totalorder %v1296, %v2540
    %v2542 = vsel %vm2541, 1, 0
    %v2543 = vcvt.s32.f32 %v2542
    %v2544 = vpack.c.bf16 %v2543, %v2543
    %2545 = vxpose.xlu0.c.b16.start [1/8] %v2544, 128
    %2546 = vxpose.xlu0.c.b16.cont [2/8] 0, 128
    %2547 = vxpose.xlu0.c.b16.cont [3/8] 0, 128
    %2548 = vxpose.xlu0.c.b16.cont [4/8] 0, 128
    %2549 = vxpose.xlu0.c.b16.cont [5/8] 0, 128
    %2550 = vxpose.xlu0.c.b16.cont [6/8] 0, 128
    %2551 = vxpose.xlu0.c.b16.cont [7/8] 0, 128
    %2552 = vxpose.xlu0.c.b16.end [8/8] 0, 128
    %v2553 = vpop.trf.xlu0
    %v2554 = vpop.trf.xlu0
    %v2555 = vpop.trf.xlu0
    %v2556 = vpop.trf.xlu0
    %v2557 = vpop.trf.xlu0
    %v2558 = vpop.trf.xlu0
    %v2559 = vpop.trf.xlu0
    %v2560 = vpop.trf.xlu0
    %v2562 = vsel %vm1096, %v2553, 0
    %2564 = vmatprep.subr.bf16.mxu0 0
    %2565 = vmatpush1.bf16.msra.mxu0 0
    %2566 = vmatprep.subr.bf16.mxu0 0
    %2567 = vmatpush1.bf16.msra.mxu0 0
    %2568 = vmatprep.subr.bf16.mxu0 0
    %2569 = vmatpush1.bf16.msra.mxu0 0
    %2570 = vmatprep.subr.bf16.mxu0 0
    %2571 = vmatpush1.bf16.msra.mxu0 0
    %2572 = vmatprep.subr.bf16.mxu0 0
    %2573 = vmatpush1.bf16.msra.mxu0 0
    %2574 = vmatprep.subr.bf16.mxu0 0
    %2575 = vmatpush1.bf16.msra.mxu0 0
    %2576 = vmatprep.subr.bf16.mxu0 0
    %2577 = vmatpush1.bf16.msra.mxu0 0
    %2578 = vmatprep.subr.bf16.mxu0 0
    %2579 = vmatpush1.bf16.msra.mxu0 %v1325
    %2580 = vmatprep.subr.bf16.mxu0 0
    %2581 = vmatpush2.bf16.msra.mxu0 0
    %2582 = vmatprep.subr.bf16.mxu0 0
    %2583 = vmatpush2.bf16.msra.mxu0 0
    %2584 = vmatprep.subr.bf16.mxu0 0
    %2585 = vmatpush2.bf16.msra.mxu0 0
    %2586 = vmatprep.subr.bf16.mxu0 0
    %2587 = vmatpush2.bf16.msra.mxu0 0
    %2588 = vmatprep.subr.bf16.mxu0 0
    %2589 = vmatpush2.bf16.msra.mxu0 0
    %2590 = vmatprep.subr.bf16.mxu0 0
    %2591 = vmatpush2.bf16.msra.mxu0 0
    %2592 = vmatprep.subr.bf16.mxu0 0
    %2593 = vmatpush2.bf16.msra.mxu0 0
    %2594 = vmatprep.subr.bf16.mxu0 0
    %2595 = vmatpush2.bf16.msra.mxu0 0
    %2596 = vmatprep.mubr.bf16.mxu0 0
    %2597 = vmatmul.mubr.bf16.gmra.mxu0 %v2562
    %v2598 = vpop.f32.mrf.mxu0
    %v2599 = vadd.f32 0.0, %v2598
    %v2600 = vpop.f32.mrf.mxu0
    %v2601 = vpop.f32.mrf.mxu0
    %v2602 = vpop.f32.mrf.mxu0
    %2603 = vdwg.mxu0
    %v2605 = vsel %vm1323, %v2544, 0
    %2607 = vmatprep.subr.bf16.mxu0 0
    %2608 = vmatpush1.bf16.msra.mxu0 0
    %2609 = vmatprep.subr.bf16.mxu0 0
    %2610 = vmatpush1.bf16.msra.mxu0 0
    %2611 = vmatprep.subr.bf16.mxu0 0
    %2612 = vmatpush1.bf16.msra.mxu0 0
    %2613 = vmatprep.subr.bf16.mxu0 0
    %2614 = vmatpush1.bf16.msra.mxu0 0
    %2615 = vmatprep.subr.bf16.mxu0 0
    %2616 = vmatpush1.bf16.msra.mxu0 0
    %2617 = vmatprep.subr.bf16.mxu0 0
    %2618 = vmatpush1.bf16.msra.mxu0 0
    %2619 = vmatprep.subr.bf16.mxu0 0
    %2620 = vmatpush1.bf16.msra.mxu0 0
    %2621 = vmatprep.subr.bf16.mxu0 0
    %2622 = vmatpush1.bf16.msra.mxu0 %v2605
    %2623 = vmatprep.subr.bf16.mxu0 0
    %2624 = vmatpush2.bf16.msra.mxu0 0
    %2625 = vmatprep.subr.bf16.mxu0 0
    %2626 = vmatpush2.bf16.msra.mxu0 0
    %2627 = vmatprep.subr.bf16.mxu0 0
    %2628 = vmatpush2.bf16.msra.mxu0 0
    %2629 = vmatprep.subr.bf16.mxu0 0
    %2630 = vmatpush2.bf16.msra.mxu0 0
    %2631 = vmatprep.subr.bf16.mxu0 0
    %2632 = vmatpush2.bf16.msra.mxu0 0
    %2633 = vmatprep.subr.bf16.mxu0 0
    %2634 = vmatpush2.bf16.msra.mxu0 0
    %2635 = vmatprep.subr.bf16.mxu0 0
    %2636 = vmatpush2.bf16.msra.mxu0 0
    %2637 = vmatprep.subr.bf16.mxu0 0
    %2638 = vmatpush2.bf16.msra.mxu0 0
    %2639 = vmatprep.mubr.bf16.mxu0 0
    %2640 = vmatmul.mubr.bf16.gmra.mxu0 %v1369
    %v2641 = vpop.f32.mrf.mxu0
    %v2642 = vadd.f32 0.0, %v2641
    %v2643 = vpop.f32.mrf.mxu0
    %v2644 = vpop.f32.mrf.mxu0
    %v2645 = vpop.f32.mrf.mxu0
    %2646 = vdwg.mxu0
    %v2647 = vpack.c.bf16 %v2642, %v2642
    %v2649 = vsel %vm1323, %v2647, 0
    %2651 = vmatprep.subr.bf16.mxu0 0
    %2652 = vmatpush1.bf16.msra.mxu0 0
    %2653 = vmatprep.subr.bf16.mxu0 0
    %2654 = vmatpush1.bf16.msra.mxu0 0
    %2655 = vmatprep.subr.bf16.mxu0 0
    %2656 = vmatpush1.bf16.msra.mxu0 0
    %2657 = vmatprep.subr.bf16.mxu0 0
    %2658 = vmatpush1.bf16.msra.mxu0 0
    %2659 = vmatprep.subr.bf16.mxu0 0
    %2660 = vmatpush1.bf16.msra.mxu0 0
    %2661 = vmatprep.subr.bf16.mxu0 0
    %2662 = vmatpush1.bf16.msra.mxu0 0
    %2663 = vmatprep.subr.bf16.mxu0 0
    %2664 = vmatpush1.bf16.msra.mxu0 0
    %2665 = vmatprep.subr.bf16.mxu0 0
    %2666 = vmatpush1.bf16.msra.mxu0 %v2649
    %2667 = vmatprep.subr.bf16.mxu0 0
    %2668 = vmatpush2.bf16.msra.mxu0 0
    %2669 = vmatprep.subr.bf16.mxu0 0
    %2670 = vmatpush2.bf16.msra.mxu0 0
    %2671 = vmatprep.subr.bf16.mxu0 0
    %2672 = vmatpush2.bf16.msra.mxu0 0
    %2673 = vmatprep.subr.bf16.mxu0 0
    %2674 = vmatpush2.bf16.msra.mxu0 0
    %2675 = vmatprep.subr.bf16.mxu0 0
    %2676 = vmatpush2.bf16.msra.mxu0 0
    %2677 = vmatprep.subr.bf16.mxu0 0
    %2678 = vmatpush2.bf16.msra.mxu0 0
    %2679 = vmatprep.subr.bf16.mxu0 0
    %2680 = vmatpush2.bf16.msra.mxu0 0
    %2681 = vmatprep.subr.bf16.mxu0 0
    %2682 = vmatpush2.bf16.msra.mxu0 0
    %2683 = vmatprep.mubr.bf16.mxu0 0
    %2684 = vmatmul.mubr.bf16.gmra.mxu0 %v2562
    %v2685 = vpop.f32.mrf.mxu0
    %v2686 = vadd.f32 0.0, %v2685
    %v2687 = vpop.f32.mrf.mxu0
    %v2688 = vpop.f32.mrf.mxu0
    %v2689 = vpop.f32.mrf.mxu0
    %2690 = vdwg.mxu0
    %v2691 = vpack.c.bf16 %v2686, %v2686
    %v2692 = vpack.c.bf16 %v2599, %v2599
    %v2694 = vsel %vm1460, %v2691, 0
    %v2697 = vsel %vm1464, %v2692, 0
    %2699 = vmatprep.subr.bf16.mxu0 0
    %2700 = vmatpush1.bf16.msra.mxu0 0
    %2701 = vmatprep.subr.bf16.mxu0 0
    %2702 = vmatpush1.bf16.msra.mxu0 0
    %2703 = vmatprep.subr.bf16.mxu0 0
    %2704 = vmatpush1.bf16.msra.mxu0 0
    %2705 = vmatprep.subr.bf16.mxu0 0
    %2706 = vmatpush1.bf16.msra.mxu0 0
    %2707 = vmatprep.subr.bf16.mxu0 0
    %2708 = vmatpush1.bf16.msra.mxu0 0
    %2709 = vmatprep.subr.bf16.mxu0 0
    %2710 = vmatpush1.bf16.msra.mxu0 0
    %2711 = vmatprep.subr.bf16.mxu0 0
    %2712 = vmatpush1.bf16.msra.mxu0 0
    %2713 = vmatprep.subr.bf16.mxu0 0
    %2714 = vmatpush1.bf16.msra.mxu0 %v2697
    %2715 = vmatprep.subr.bf16.mxu0 0
    %2716 = vmatpush2.bf16.msra.mxu0 0
    %2717 = vmatprep.subr.bf16.mxu0 0
    %2718 = vmatpush2.bf16.msra.mxu0 0
    %2719 = vmatprep.subr.bf16.mxu0 0
    %2720 = vmatpush2.bf16.msra.mxu0 0
    %2721 = vmatprep.subr.bf16.mxu0 0
    %2722 = vmatpush2.bf16.msra.mxu0 0
    %2723 = vmatprep.subr.bf16.mxu0 0
    %2724 = vmatpush2.bf16.msra.mxu0 0
    %2725 = vmatprep.subr.bf16.mxu0 0
    %2726 = vmatpush2.bf16.msra.mxu0 0
    %2727 = vmatprep.subr.bf16.mxu0 0
    %2728 = vmatpush2.bf16.msra.mxu0 0
    %2729 = vmatprep.subr.bf16.mxu0 0
    %2730 = vmatpush2.bf16.msra.mxu0 0
    %2731 = vmatprep.mubr.bf16.mxu0 0
    %2732 = vmatmul.mubr.bf16.gmra.mxu0 %v2694
    %v2733 = vpop.f32.mrf.mxu0
    %v2734 = vadd.f32 0.0, %v2733
    %v2735 = vpop.f32.mrf.mxu0
    %v2736 = vpop.f32.mrf.mxu0
    %v2737 = vpop.f32.mrf.mxu0
    %2738 = vdwg.mxu0
    %v2739 = vpack.c.bf16 %v2734, %v2734
    %2740 = vmatprep.subr.bf16.mxu0 0
    %2741 = vmatpush1.bf16.msra.mxu0 %v1571
    %2742 = vmatprep.subr.bf16.mxu0 0
    %2743 = vmatpush1.bf16.msra.mxu0 %v1570
    %2744 = vmatprep.subr.bf16.mxu0 0
    %2745 = vmatpush1.bf16.msra.mxu0 %v1569
    %2746 = vmatprep.subr.bf16.mxu0 0
    %2747 = vmatpush1.bf16.msra.mxu0 %v1568
    %2748 = vmatprep.subr.bf16.mxu0 0
    %2749 = vmatpush1.bf16.msra.mxu0 %v1567
    %2750 = vmatprep.subr.bf16.mxu0 0
    %2751 = vmatpush1.bf16.msra.mxu0 %v1566
    %2752 = vmatprep.subr.bf16.mxu0 0
    %2753 = vmatpush1.bf16.msra.mxu0 %v1565
    %2754 = vmatprep.subr.bf16.mxu0 0
    %2755 = vmatpush1.bf16.msra.mxu0 %v1564
    %2756 = vmatprep.subr.bf16.mxu0 0
    %2757 = vmatpush2.bf16.msra.mxu0 0
    %2758 = vmatprep.subr.bf16.mxu0 0
    %2759 = vmatpush2.bf16.msra.mxu0 0
    %2760 = vmatprep.subr.bf16.mxu0 0
    %2761 = vmatpush2.bf16.msra.mxu0 0
    %2762 = vmatprep.subr.bf16.mxu0 0
    %2763 = vmatpush2.bf16.msra.mxu0 0
    %2764 = vmatprep.subr.bf16.mxu0 0
    %2765 = vmatpush2.bf16.msra.mxu0 0
    %2766 = vmatprep.subr.bf16.mxu0 0
    %2767 = vmatpush2.bf16.msra.mxu0 0
    %2768 = vmatprep.subr.bf16.mxu0 0
    %2769 = vmatpush2.bf16.msra.mxu0 0
    %2770 = vmatprep.subr.bf16.mxu0 0
    %2771 = vmatpush2.bf16.msra.mxu0 0
    %2772 = vmatprep.mubr.bf16.mxu0 0
    %2773 = vmatmul.mubr.bf16.gmra.mxu0 %v2739
    %v2774 = vpop.f32.mrf.mxu0
    %v2775 = vadd.f32 %v1530, %v2774
    %v2776 = vpop.f32.mrf.mxu0
    %v2777 = vpop.f32.mrf.mxu0
    %v2778 = vpop.f32.mrf.mxu0
    %2779 = vdwg.mxu0
    %v2780 = vmax.f32 %v2775, 0.0
    %v2781 = vpack.c.bf16 %v2780, %v2780
    %v2783 = vsel %vm1464, %v2781, 0
    %2785 = vmatprep.subr.bf16.mxu0 0
    %2786 = vmatpush1.bf16.msra.mxu0 0
    %2787 = vmatprep.subr.bf16.mxu0 0
    %2788 = vmatpush1.bf16.msra.mxu0 0
    %2789 = vmatprep.subr.bf16.mxu0 0
    %2790 = vmatpush1.bf16.msra.mxu0 0
    %2791 = vmatprep.subr.bf16.mxu0 0
    %2792 = vmatpush1.bf16.msra.mxu0 0
    %2793 = vmatprep.subr.bf16.mxu0 0
    %2794 = vmatpush1.bf16.msra.mxu0 0
    %2795 = vmatprep.subr.bf16.mxu0 0
    %2796 = vmatpush1.bf16.msra.mxu0 0
    %2797 = vmatprep.subr.bf16.mxu0 0
    %2798 = vmatpush1.bf16.msra.mxu0 0
    %2799 = vmatprep.subr.bf16.mxu0 0
    %2800 = vmatpush1.bf16.msra.mxu0 %v2783
    %2801 = vmatprep.subr.bf16.mxu0 0
    %2802 = vmatpush2.bf16.msra.mxu0 0
    %2803 = vmatprep.subr.bf16.mxu0 0
    %2804 = vmatpush2.bf16.msra.mxu0 0
    %2805 = vmatprep.subr.bf16.mxu0 0
    %2806 = vmatpush2.bf16.msra.mxu0 0
    %2807 = vmatprep.subr.bf16.mxu0 0
    %2808 = vmatpush2.bf16.msra.mxu0 0
    %2809 = vmatprep.subr.bf16.mxu0 0
    %2810 = vmatpush2.bf16.msra.mxu0 0
    %2811 = vmatprep.subr.bf16.mxu0 0
    %2812 = vmatpush2.bf16.msra.mxu0 0
    %2813 = vmatprep.subr.bf16.mxu0 0
    %2814 = vmatpush2.bf16.msra.mxu0 0
    %2815 = vmatprep.subr.bf16.mxu0 0
    %2816 = vmatpush2.bf16.msra.mxu0 0
    %2817 = vmatprep.mubr.bf16.mxu0 0
    %2818 = vmatmul.mubr.bf16.gmra.mxu0 %v2694
    %v2819 = vpop.f32.mrf.mxu0
    %v2820 = vadd.f32 0.0, %v2819
    %v2821 = vpop.f32.mrf.mxu0
    %v2822 = vpop.f32.mrf.mxu0
    %v2823 = vpop.f32.mrf.mxu0
    %2824 = vdwg.mxu0
    %v2825 = vpack.c.bf16 %v2820, %v2820
    %2826 = vmatprep.subr.bf16.mxu0 0
    %2827 = vmatpush1.bf16.msra.mxu0 %v1730
    %2828 = vmatprep.subr.bf16.mxu0 0
    %2829 = vmatpush1.bf16.msra.mxu0 %v1729
    %2830 = vmatprep.subr.bf16.mxu0 0
    %2831 = vmatpush1.bf16.msra.mxu0 %v1728
    %2832 = vmatprep.subr.bf16.mxu0 0
    %2833 = vmatpush1.bf16.msra.mxu0 %v1727
    %2834 = vmatprep.subr.bf16.mxu0 0
    %2835 = vmatpush1.bf16.msra.mxu0 %v1726
    %2836 = vmatprep.subr.bf16.mxu0 0
    %2837 = vmatpush1.bf16.msra.mxu0 %v1725
    %2838 = vmatprep.subr.bf16.mxu0 0
    %2839 = vmatpush1.bf16.msra.mxu0 %v1724
    %2840 = vmatprep.subr.bf16.mxu0 0
    %2841 = vmatpush1.bf16.msra.mxu0 %v1723
    %2842 = vmatprep.subr.bf16.mxu0 0
    %2843 = vmatpush2.bf16.msra.mxu0 0
    %2844 = vmatprep.subr.bf16.mxu0 0
    %2845 = vmatpush2.bf16.msra.mxu0 0
    %2846 = vmatprep.subr.bf16.mxu0 0
    %2847 = vmatpush2.bf16.msra.mxu0 0
    %2848 = vmatprep.subr.bf16.mxu0 0
    %2849 = vmatpush2.bf16.msra.mxu0 0
    %2850 = vmatprep.subr.bf16.mxu0 0
    %2851 = vmatpush2.bf16.msra.mxu0 0
    %2852 = vmatprep.subr.bf16.mxu0 0
    %2853 = vmatpush2.bf16.msra.mxu0 0
    %2854 = vmatprep.subr.bf16.mxu0 0
    %2855 = vmatpush2.bf16.msra.mxu0 0
    %2856 = vmatprep.subr.bf16.mxu0 0
    %2857 = vmatpush2.bf16.msra.mxu0 0
    %2858 = vmatprep.mubr.bf16.mxu0 0
    %2859 = vmatmul.mubr.bf16.gmra.mxu0 %v2825
    %v2860 = vpop.f32.mrf.mxu0
    %v2861 = vadd.f32 %v1689, %v2860
    %v2862 = vpop.f32.mrf.mxu0
    %v2863 = vpop.f32.mrf.mxu0
    %v2864 = vpop.f32.mrf.mxu0
    %2865 = vdwg.mxu0
    %v2866 = vmax.f32 %v2861, 0.0
    %v2867 = vpack.c.bf16 %v2866, %v2866
    %v2869 = vsel %vm1464, %v2867, 0
    %2871 = vmatprep.subr.bf16.mxu0 0
    %2872 = vmatpush1.bf16.msra.mxu0 0
    %2873 = vmatprep.subr.bf16.mxu0 0
    %2874 = vmatpush1.bf16.msra.mxu0 0
    %2875 = vmatprep.subr.bf16.mxu0 0
    %2876 = vmatpush1.bf16.msra.mxu0 0
    %2877 = vmatprep.subr.bf16.mxu0 0
    %2878 = vmatpush1.bf16.msra.mxu0 0
    %2879 = vmatprep.subr.bf16.mxu0 0
    %2880 = vmatpush1.bf16.msra.mxu0 0
    %2881 = vmatprep.subr.bf16.mxu0 0
    %2882 = vmatpush1.bf16.msra.mxu0 0
    %2883 = vmatprep.subr.bf16.mxu0 0
    %2884 = vmatpush1.bf16.msra.mxu0 0
    %2885 = vmatprep.subr.bf16.mxu0 0
    %2886 = vmatpush1.bf16.msra.mxu0 %v2869
    %2887 = vmatprep.subr.bf16.mxu0 0
    %2888 = vmatpush2.bf16.msra.mxu0 0
    %2889 = vmatprep.subr.bf16.mxu0 0
    %2890 = vmatpush2.bf16.msra.mxu0 0
    %2891 = vmatprep.subr.bf16.mxu0 0
    %2892 = vmatpush2.bf16.msra.mxu0 0
    %2893 = vmatprep.subr.bf16.mxu0 0
    %2894 = vmatpush2.bf16.msra.mxu0 0
    %2895 = vmatprep.subr.bf16.mxu0 0
    %2896 = vmatpush2.bf16.msra.mxu0 0
    %2897 = vmatprep.subr.bf16.mxu0 0
    %2898 = vmatpush2.bf16.msra.mxu0 0
    %2899 = vmatprep.subr.bf16.mxu0 0
    %2900 = vmatpush2.bf16.msra.mxu0 0
    %2901 = vmatprep.subr.bf16.mxu0 0
    %2902 = vmatpush2.bf16.msra.mxu0 0
    %2903 = vmatprep.mubr.bf16.mxu0 0
    %2904 = vmatmul.mubr.bf16.gmra.mxu0 %v2694
    %v2905 = vpop.f32.mrf.mxu0
    %v2906 = vadd.f32 0.0, %v2905
    %v2907 = vpop.f32.mrf.mxu0
    %v2908 = vpop.f32.mrf.mxu0
    %v2909 = vpop.f32.mrf.mxu0
    %2910 = vdwg.mxu0
    %v2911 = vpack.c.bf16 %v2906, %v2906
    %2912 = vmatprep.subr.bf16.mxu0 0
    %2913 = vmatpush1.bf16.msra.mxu0 %v1887
    %2914 = vmatprep.subr.bf16.mxu0 0
    %2915 = vmatpush1.bf16.msra.mxu0 %v1886
    %2916 = vmatprep.subr.bf16.mxu0 0
    %2917 = vmatpush1.bf16.msra.mxu0 %v1885
    %2918 = vmatprep.subr.bf16.mxu0 0
    %2919 = vmatpush1.bf16.msra.mxu0 %v1884
    %2920 = vmatprep.subr.bf16.mxu0 0
    %2921 = vmatpush1.bf16.msra.mxu0 %v1883
    %2922 = vmatprep.subr.bf16.mxu0 0
    %2923 = vmatpush1.bf16.msra.mxu0 %v1882
    %2924 = vmatprep.subr.bf16.mxu0 0
    %2925 = vmatpush1.bf16.msra.mxu0 %v1881
    %2926 = vmatprep.subr.bf16.mxu0 0
    %2927 = vmatpush1.bf16.msra.mxu0 %v1880
    %2928 = vmatprep.subr.bf16.mxu0 0
    %2929 = vmatpush2.bf16.msra.mxu0 0
    %2930 = vmatprep.subr.bf16.mxu0 0
    %2931 = vmatpush2.bf16.msra.mxu0 0
    %2932 = vmatprep.subr.bf16.mxu0 0
    %2933 = vmatpush2.bf16.msra.mxu0 0
    %2934 = vmatprep.subr.bf16.mxu0 0
    %2935 = vmatpush2.bf16.msra.mxu0 0
    %2936 = vmatprep.subr.bf16.mxu0 0
    %2937 = vmatpush2.bf16.msra.mxu0 0
    %2938 = vmatprep.subr.bf16.mxu0 0
    %2939 = vmatpush2.bf16.msra.mxu0 0
    %2940 = vmatprep.subr.bf16.mxu0 0
    %2941 = vmatpush2.bf16.msra.mxu0 0
    %2942 = vmatprep.subr.bf16.mxu0 0
    %2943 = vmatpush2.bf16.msra.mxu0 0
    %2944 = vmatprep.mubr.bf16.mxu0 0
    %2945 = vmatmul.mubr.bf16.gmra.mxu0 %v2911
    %v2946 = vpop.f32.mrf.mxu0
    %v2947 = vadd.f32 %v1846, %v2946
    %v2948 = vpop.f32.mrf.mxu0
    %v2949 = vpop.f32.mrf.mxu0
    %v2950 = vpop.f32.mrf.mxu0
    %2951 = vdwg.mxu0
    %v2952 = vmax.f32 %v2947, 0.0
    %2953 = vmatprep.subr.bf16.mxu0 0
    %2954 = vmatpush1.bf16.msra.mxu0 %v1999
    %2955 = vmatprep.subr.bf16.mxu0 0
    %2956 = vmatpush1.bf16.msra.mxu0 %v1998
    %2957 = vmatprep.subr.bf16.mxu0 0
    %2958 = vmatpush1.bf16.msra.mxu0 %v1997
    %2959 = vmatprep.subr.bf16.mxu0 0
    %2960 = vmatpush1.bf16.msra.mxu0 %v1996
    %2961 = vmatprep.subr.bf16.mxu0 0
    %2962 = vmatpush1.bf16.msra.mxu0 %v1995
    %2963 = vmatprep.subr.bf16.mxu0 0
    %2964 = vmatpush1.bf16.msra.mxu0 %v1994
    %2965 = vmatprep.subr.bf16.mxu0 0
    %2966 = vmatpush1.bf16.msra.mxu0 %v1993
    %2967 = vmatprep.subr.bf16.mxu0 0
    %2968 = vmatpush1.bf16.msra.mxu0 %v1992
    %2969 = vmatprep.subr.bf16.mxu0 0
    %2970 = vmatpush2.bf16.msra.mxu0 0
    %2971 = vmatprep.subr.bf16.mxu0 0
    %2972 = vmatpush2.bf16.msra.mxu0 0
    %2973 = vmatprep.subr.bf16.mxu0 0
    %2974 = vmatpush2.bf16.msra.mxu0 0
    %2975 = vmatprep.subr.bf16.mxu0 0
    %2976 = vmatpush2.bf16.msra.mxu0 0
    %2977 = vmatprep.subr.bf16.mxu0 0
    %2978 = vmatpush2.bf16.msra.mxu0 0
    %2979 = vmatprep.subr.bf16.mxu0 0
    %2980 = vmatpush2.bf16.msra.mxu0 0
    %2981 = vmatprep.subr.bf16.mxu0 0
    %2982 = vmatpush2.bf16.msra.mxu0 0
    %2983 = vmatprep.subr.bf16.mxu0 0
    %2984 = vmatpush2.bf16.msra.mxu0 0
    %2985 = vmatprep.mubr.bf16.mxu0 0
    %2986 = vmatmul.mubr.bf16.gmra.mxu0 %v2911
    %v2987 = vpop.f32.mrf.mxu0
    %v2988 = vadd.f32 %v1958, %v2987
    %v2989 = vpop.f32.mrf.mxu0
    %v2990 = vpop.f32.mrf.mxu0
    %v2991 = vpop.f32.mrf.mxu0
    %2992 = vdwg.mxu0
    %v2993 = vsel %vm2048, %v2988, -inf
    %2994 = vmax.xlane.f32.xlu0 %v2993
    %v2995 = vpop.xlane.xlu0 %2994
    %v2996 = vsub.f32 %v2988, %v2995
    %v2997 = vmul.f32 %v2996, 1.442695
    %v2998 = vpow.pop %v2997
    %v2999 = vsel %vm2048, %v2998, 0.0
    %3000 = vadd.xlane.f32.xlu0 %v2999
    %v3001 = vpop.xlane.xlu0 %3000
    %v3002 = vrcp.pop %v3001
    %v3003 = vmul.f32 %v2998, %v3002
    %v3004 = vpack.c.bf16 %v3003, %v3003
    %v3005 = vpack.c.bf16 %v2952, %v2952
    %3006 = vxpose.xlu0.c.b16.start [1/8] %v3004, 128
    %3007 = vxpose.xlu0.c.b16.cont [2/8] 0, 128
    %3008 = vxpose.xlu0.c.b16.cont [3/8] 0, 128
    %3009 = vxpose.xlu0.c.b16.cont [4/8] 0, 128
    %3010 = vxpose.xlu0.c.b16.cont [5/8] 0, 128
    %3011 = vxpose.xlu0.c.b16.cont [6/8] 0, 128
    %3012 = vxpose.xlu0.c.b16.cont [7/8] 0, 128
    %3013 = vxpose.xlu0.c.b16.end [8/8] 0, 128
    %v3014 = vpop.trf.xlu0
    %v3015 = vpop.trf.xlu0
    %v3016 = vpop.trf.xlu0
    %v3017 = vpop.trf.xlu0
    %v3018 = vpop.trf.xlu0
    %v3019 = vpop.trf.xlu0
    %v3020 = vpop.trf.xlu0
    %v3021 = vpop.trf.xlu0
    %v3023 = vsel %vm1460, %v3014, 0
    %v3026 = vsel %vm1464, %v3005, 0
    %3028 = vmatprep.subr.bf16.mxu0 0
    %3029 = vmatpush1.bf16.msra.mxu0 0
    %3030 = vmatprep.subr.bf16.mxu0 0
    %3031 = vmatpush1.bf16.msra.mxu0 0
    %3032 = vmatprep.subr.bf16.mxu0 0
    %3033 = vmatpush1.bf16.msra.mxu0 0
    %3034 = vmatprep.subr.bf16.mxu0 0
    %3035 = vmatpush1.bf16.msra.mxu0 0
    %3036 = vmatprep.subr.bf16.mxu0 0
    %3037 = vmatpush1.bf16.msra.mxu0 0
    %3038 = vmatprep.subr.bf16.mxu0 0
    %3039 = vmatpush1.bf16.msra.mxu0 0
    %3040 = vmatprep.subr.bf16.mxu0 0
    %3041 = vmatpush1.bf16.msra.mxu0 0
    %3042 = vmatprep.subr.bf16.mxu0 0
    %3043 = vmatpush1.bf16.msra.mxu0 %v3026
    %3044 = vmatprep.subr.bf16.mxu0 0
    %3045 = vmatpush2.bf16.msra.mxu0 0
    %3046 = vmatprep.subr.bf16.mxu0 0
    %3047 = vmatpush2.bf16.msra.mxu0 0
    %3048 = vmatprep.subr.bf16.mxu0 0
    %3049 = vmatpush2.bf16.msra.mxu0 0
    %3050 = vmatprep.subr.bf16.mxu0 0
    %3051 = vmatpush2.bf16.msra.mxu0 0
    %3052 = vmatprep.subr.bf16.mxu0 0
    %3053 = vmatpush2.bf16.msra.mxu0 0
    %3054 = vmatprep.subr.bf16.mxu0 0
    %3055 = vmatpush2.bf16.msra.mxu0 0
    %3056 = vmatprep.subr.bf16.mxu0 0
    %3057 = vmatpush2.bf16.msra.mxu0 0
    %3058 = vmatprep.subr.bf16.mxu0 0
    %3059 = vmatpush2.bf16.msra.mxu0 0
    %3060 = vmatprep.mubr.bf16.mxu0 0
    %3061 = vmatmul.mubr.bf16.gmra.mxu0 %v3023
    %v3062 = vpop.f32.mrf.mxu0
    %v3063 = vadd.f32 0.0, %v3062
    %v3064 = vpop.f32.mrf.mxu0
    %v3065 = vpop.f32.mrf.mxu0
    %v3066 = vpop.f32.mrf.mxu0
    %3067 = vdwg.mxu0
    %v3069 = vsel %vm1464, %v3004, 0
    %3071 = vmatprep.subr.bf16.mxu0 0
    %3072 = vmatpush1.bf16.msra.mxu0 0
    %3073 = vmatprep.subr.bf16.mxu0 0
    %3074 = vmatpush1.bf16.msra.mxu0 0
    %3075 = vmatprep.subr.bf16.mxu0 0
    %3076 = vmatpush1.bf16.msra.mxu0 0
    %3077 = vmatprep.subr.bf16.mxu0 0
    %3078 = vmatpush1.bf16.msra.mxu0 0
    %3079 = vmatprep.subr.bf16.mxu0 0
    %3080 = vmatpush1.bf16.msra.mxu0 0
    %3081 = vmatprep.subr.bf16.mxu0 0
    %3082 = vmatpush1.bf16.msra.mxu0 0
    %3083 = vmatprep.subr.bf16.mxu0 0
    %3084 = vmatpush1.bf16.msra.mxu0 0
    %3085 = vmatprep.subr.bf16.mxu0 0
    %3086 = vmatpush1.bf16.msra.mxu0 %v3069
    %3087 = vmatprep.subr.bf16.mxu0 0
    %3088 = vmatpush2.bf16.msra.mxu0 0
    %3089 = vmatprep.subr.bf16.mxu0 0
    %3090 = vmatpush2.bf16.msra.mxu0 0
    %3091 = vmatprep.subr.bf16.mxu0 0
    %3092 = vmatpush2.bf16.msra.mxu0 0
    %3093 = vmatprep.subr.bf16.mxu0 0
    %3094 = vmatpush2.bf16.msra.mxu0 0
    %3095 = vmatprep.subr.bf16.mxu0 0
    %3096 = vmatpush2.bf16.msra.mxu0 0
    %3097 = vmatprep.subr.bf16.mxu0 0
    %3098 = vmatpush2.bf16.msra.mxu0 0
    %3099 = vmatprep.subr.bf16.mxu0 0
    %3100 = vmatpush2.bf16.msra.mxu0 0
    %3101 = vmatprep.subr.bf16.mxu0 0
    %3102 = vmatpush2.bf16.msra.mxu0 0
    %3103 = vmatprep.mubr.bf16.mxu0 0
    %3104 = vmatmul.mubr.bf16.gmra.mxu0 %v2694
    %v3105 = vpop.f32.mrf.mxu0
    %v3106 = vadd.f32 0.0, %v3105
    %v3107 = vpop.f32.mrf.mxu0
    %v3108 = vpop.f32.mrf.mxu0
    %v3109 = vpop.f32.mrf.mxu0
    %3110 = vdwg.mxu0
    %v3111 = vpack.c.bf16 %v3106, %v3106
    %v3113 = vsel %vm1464, %v3111, 0
    %3115 = vmatprep.subr.bf16.mxu0 0
    %3116 = vmatpush1.bf16.msra.mxu0 0
    %3117 = vmatprep.subr.bf16.mxu0 0
    %3118 = vmatpush1.bf16.msra.mxu0 0
    %3119 = vmatprep.subr.bf16.mxu0 0
    %3120 = vmatpush1.bf16.msra.mxu0 0
    %3121 = vmatprep.subr.bf16.mxu0 0
    %3122 = vmatpush1.bf16.msra.mxu0 0
    %3123 = vmatprep.subr.bf16.mxu0 0
    %3124 = vmatpush1.bf16.msra.mxu0 0
    %3125 = vmatprep.subr.bf16.mxu0 0
    %3126 = vmatpush1.bf16.msra.mxu0 0
    %3127 = vmatprep.subr.bf16.mxu0 0
    %3128 = vmatpush1.bf16.msra.mxu0 0
    %3129 = vmatprep.subr.bf16.mxu0 0
    %3130 = vmatpush1.bf16.msra.mxu0 %v3113
    %3131 = vmatprep.subr.bf16.mxu0 0
    %3132 = vmatpush2.bf16.msra.mxu0 0
    %3133 = vmatprep.subr.bf16.mxu0 0
    %3134 = vmatpush2.bf16.msra.mxu0 0
    %3135 = vmatprep.subr.bf16.mxu0 0
    %3136 = vmatpush2.bf16.msra.mxu0 0
    %3137 = vmatprep.subr.bf16.mxu0 0
    %3138 = vmatpush2.bf16.msra.mxu0 0
    %3139 = vmatprep.subr.bf16.mxu0 0
    %3140 = vmatpush2.bf16.msra.mxu0 0
    %3141 = vmatprep.subr.bf16.mxu0 0
    %3142 = vmatpush2.bf16.msra.mxu0 0
    %3143 = vmatprep.subr.bf16.mxu0 0
    %3144 = vmatpush2.bf16.msra.mxu0 0
    %3145 = vmatprep.subr.bf16.mxu0 0
    %3146 = vmatpush2.bf16.msra.mxu0 0
    %3147 = vmatprep.mubr.bf16.mxu0 0
    %3148 = vmatmul.mubr.bf16.gmra.mxu0 %v3023
    %v3149 = vpop.f32.mrf.mxu0
    %v3150 = vadd.f32 0.0, %v3149
    %v3151 = vpop.f32.mrf.mxu0
    %v3152 = vpop.f32.mrf.mxu0
    %v3153 = vpop.f32.mrf.mxu0
    %3154 = vdwg.mxu0
    %v3155 = vpack.c.bf16 %v3150, %v3150
    %v3156 = vpack.c.bf16 %v3063, %v3063
    %v3158 = vsel %vm2213, %v3155, 0
    %v3161 = vsel %vm2217, %v3156, 0
    %3163 = vmatprep.subr.bf16.mxu0 0
    %3164 = vmatpush1.bf16.msra.mxu0 0
    %3165 = vmatprep.subr.bf16.mxu0 0
    %3166 = vmatpush1.bf16.msra.mxu0 0
    %3167 = vmatprep.subr.bf16.mxu0 0
    %3168 = vmatpush1.bf16.msra.mxu0 0
    %3169 = vmatprep.subr.bf16.mxu0 0
    %3170 = vmatpush1.bf16.msra.mxu0 0
    %3171 = vmatprep.subr.bf16.mxu0 0
    %3172 = vmatpush1.bf16.msra.mxu0 0
    %3173 = vmatprep.subr.bf16.mxu0 0
    %3174 = vmatpush1.bf16.msra.mxu0 0
    %3175 = vmatprep.subr.bf16.mxu0 0
    %3176 = vmatpush1.bf16.msra.mxu0 0
    %3177 = vmatprep.subr.bf16.mxu0 0
    %3178 = vmatpush1.bf16.msra.mxu0 %v3161
    %3179 = vmatprep.subr.bf16.mxu0 0
    %3180 = vmatpush2.bf16.msra.mxu0 0
    %3181 = vmatprep.subr.bf16.mxu0 0
    %3182 = vmatpush2.bf16.msra.mxu0 0
    %3183 = vmatprep.subr.bf16.mxu0 0
    %3184 = vmatpush2.bf16.msra.mxu0 0
    %3185 = vmatprep.subr.bf16.mxu0 0
    %3186 = vmatpush2.bf16.msra.mxu0 0
    %3187 = vmatprep.subr.bf16.mxu0 0
    %3188 = vmatpush2.bf16.msra.mxu0 0
    %3189 = vmatprep.subr.bf16.mxu0 0
    %3190 = vmatpush2.bf16.msra.mxu0 0
    %3191 = vmatprep.subr.bf16.mxu0 0
    %3192 = vmatpush2.bf16.msra.mxu0 0
    %3193 = vmatprep.subr.bf16.mxu0 0
    %3194 = vmatpush2.bf16.msra.mxu0 0
    %3195 = vmatprep.mubr.bf16.mxu0 0
    %3196 = vmatmul.mubr.bf16.gmra.mxu0 %v3158
    %v3197 = vpop.f32.mrf.mxu0
    %v3198 = vadd.f32 0.0, %v3197
    %v3199 = vpop.f32.mrf.mxu0
    %v3200 = vpop.f32.mrf.mxu0
    %v3201 = vpop.f32.mrf.mxu0
    %3202 = vdwg.mxu0
    %v3203 = vpack.c.bf16 %v3198, %v3198
    %3204 = vmatprep.subr.bf16.mxu0 0
    %3205 = vmatpush1.bf16.msra.mxu0 %v2324
    %3206 = vmatprep.subr.bf16.mxu0 0
    %3207 = vmatpush1.bf16.msra.mxu0 %v2323
    %3208 = vmatprep.subr.bf16.mxu0 0
    %3209 = vmatpush1.bf16.msra.mxu0 %v2322
    %3210 = vmatprep.subr.bf16.mxu0 0
    %3211 = vmatpush1.bf16.msra.mxu0 %v2321
    %3212 = vmatprep.subr.bf16.mxu0 0
    %3213 = vmatpush1.bf16.msra.mxu0 %v2320
    %3214 = vmatprep.subr.bf16.mxu0 0
    %3215 = vmatpush1.bf16.msra.mxu0 %v2319
    %3216 = vmatprep.subr.bf16.mxu0 0
    %3217 = vmatpush1.bf16.msra.mxu0 %v2318
    %3218 = vmatprep.subr.bf16.mxu0 0
    %3219 = vmatpush1.bf16.msra.mxu0 %v2317
    %3220 = vmatprep.subr.bf16.mxu0 0
    %3221 = vmatpush2.bf16.msra.mxu0 0
    %3222 = vmatprep.subr.bf16.mxu0 0
    %3223 = vmatpush2.bf16.msra.mxu0 0
    %3224 = vmatprep.subr.bf16.mxu0 0
    %3225 = vmatpush2.bf16.msra.mxu0 0
    %3226 = vmatprep.subr.bf16.mxu0 0
    %3227 = vmatpush2.bf16.msra.mxu0 0
    %3228 = vmatprep.subr.bf16.mxu0 0
    %3229 = vmatpush2.bf16.msra.mxu0 0
    %3230 = vmatprep.subr.bf16.mxu0 0
    %3231 = vmatpush2.bf16.msra.mxu0 0
    %3232 = vmatprep.subr.bf16.mxu0 0
    %3233 = vmatpush2.bf16.msra.mxu0 0
    %3234 = vmatprep.subr.bf16.mxu0 0
    %3235 = vmatpush2.bf16.msra.mxu0 0
    %3236 = vmatprep.mubr.bf16.mxu0 0
    %3237 = vmatmul.mubr.bf16.gmra.mxu0 %v3203
    %v3238 = vpop.f32.mrf.mxu0
    %v3239 = vadd.f32 %v2283, %v3238
    %v3240 = vpop.f32.mrf.mxu0
    %v3241 = vpop.f32.mrf.mxu0
    %v3242 = vpop.f32.mrf.mxu0
    %3243 = vdwg.mxu0
    %v3244 = vmax.f32 %v3239, 0.0
    %v3245 = vpack.c.bf16 %v3244, %v3244
    %v3247 = vsel %vm2217, %v3245, 0
    %3249 = vmatprep.subr.bf16.mxu0 0
    %3250 = vmatpush1.bf16.msra.mxu0 0
    %3251 = vmatprep.subr.bf16.mxu0 0
    %3252 = vmatpush1.bf16.msra.mxu0 0
    %3253 = vmatprep.subr.bf16.mxu0 0
    %3254 = vmatpush1.bf16.msra.mxu0 0
    %3255 = vmatprep.subr.bf16.mxu0 0
    %3256 = vmatpush1.bf16.msra.mxu0 0
    %3257 = vmatprep.subr.bf16.mxu0 0
    %3258 = vmatpush1.bf16.msra.mxu0 0
    %3259 = vmatprep.subr.bf16.mxu0 0
    %3260 = vmatpush1.bf16.msra.mxu0 0
    %3261 = vmatprep.subr.bf16.mxu0 0
    %3262 = vmatpush1.bf16.msra.mxu0 0
    %3263 = vmatprep.subr.bf16.mxu0 0
    %3264 = vmatpush1.bf16.msra.mxu0 %v3247
    %3265 = vmatprep.subr.bf16.mxu0 0
    %3266 = vmatpush2.bf16.msra.mxu0 0
    %3267 = vmatprep.subr.bf16.mxu0 0
    %3268 = vmatpush2.bf16.msra.mxu0 0
    %3269 = vmatprep.subr.bf16.mxu0 0
    %3270 = vmatpush2.bf16.msra.mxu0 0
    %3271 = vmatprep.subr.bf16.mxu0 0
    %3272 = vmatpush2.bf16.msra.mxu0 0
    %3273 = vmatprep.subr.bf16.mxu0 0
    %3274 = vmatpush2.bf16.msra.mxu0 0
    %3275 = vmatprep.subr.bf16.mxu0 0
    %3276 = vmatpush2.bf16.msra.mxu0 0
    %3277 = vmatprep.subr.bf16.mxu0 0
    %3278 = vmatpush2.bf16.msra.mxu0 0
    %3279 = vmatprep.subr.bf16.mxu0 0
    %3280 = vmatpush2.bf16.msra.mxu0 0
    %3281 = vmatprep.mubr.bf16.mxu0 0
    %3282 = vmatmul.mubr.bf16.gmra.mxu0 %v3158
    %v3283 = vpop.f32.mrf.mxu0
    %v3284 = vadd.f32 0.0, %v3283
    %v3285 = vpop.f32.mrf.mxu0
    %v3286 = vpop.f32.mrf.mxu0
    %v3287 = vpop.f32.mrf.mxu0
    %3288 = vdwg.mxu0
    %v3289 = vpack.c.bf16 %v3284, %v3284
    %3290 = vmatprep.subr.bf16.mxu0 0
    %3291 = vmatpush1.bf16.msra.mxu0 %v2483
    %3292 = vmatprep.subr.bf16.mxu0 0
    %3293 = vmatpush1.bf16.msra.mxu0 %v2482
    %3294 = vmatprep.subr.bf16.mxu0 0
    %3295 = vmatpush1.bf16.msra.mxu0 %v2481
    %3296 = vmatprep.subr.bf16.mxu0 0
    %3297 = vmatpush1.bf16.msra.mxu0 %v2480
    %3298 = vmatprep.subr.bf16.mxu0 0
    %3299 = vmatpush1.bf16.msra.mxu0 %v2479
    %3300 = vmatprep.subr.bf16.mxu0 0
    %3301 = vmatpush1.bf16.msra.mxu0 %v2478
    %3302 = vmatprep.subr.bf16.mxu0 0
    %3303 = vmatpush1.bf16.msra.mxu0 %v2477
    %3304 = vmatprep.subr.bf16.mxu0 0
    %3305 = vmatpush1.bf16.msra.mxu0 %v2476
    %3306 = vmatprep.subr.bf16.mxu0 0
    %3307 = vmatpush2.bf16.msra.mxu0 0
    %3308 = vmatprep.subr.bf16.mxu0 0
    %3309 = vmatpush2.bf16.msra.mxu0 0
    %3310 = vmatprep.subr.bf16.mxu0 0
    %3311 = vmatpush2.bf16.msra.mxu0 0
    %3312 = vmatprep.subr.bf16.mxu0 0
    %3313 = vmatpush2.bf16.msra.mxu0 0
    %3314 = vmatprep.subr.bf16.mxu0 0
    %3315 = vmatpush2.bf16.msra.mxu0 0
    %3316 = vmatprep.subr.bf16.mxu0 0
    %3317 = vmatpush2.bf16.msra.mxu0 0
    %3318 = vmatprep.subr.bf16.mxu0 0
    %3319 = vmatpush2.bf16.msra.mxu0 0
    %3320 = vmatprep.subr.bf16.mxu0 0
    %3321 = vmatpush2.bf16.msra.mxu0 0
    %3322 = vmatprep.mubr.bf16.mxu0 0
    %3323 = vmatmul.mubr.bf16.gmra.mxu0 %v3289
    %v3324 = vpop.f32.mrf.mxu0
    %v3325 = vadd.f32 %v2442, %v3324
    %v3326 = vpop.f32.mrf.mxu0
    %v3327 = vpop.f32.mrf.mxu0
    %v3328 = vpop.f32.mrf.mxu0
    %3329 = vdwg.mxu0
    %v3330 = vmax.f32 %v3325, 0.0
    %v3331 = vsel %vm1464, %v3330, -inf
    %v3332 = vrot.slane %v3331, 4
    %v3333 = vmax.f32 %v3331, %v3332
    %v3334 = vrot.slane %v3333, 2
    %v3335 = vmax.f32 %v3333, %v3334
    %v3336 = vrot.slane %v3335, 1
    %v3337 = vmax.f32 %v3335, %v3336
    %v3338 = vsel %vm2217, %v2539, %v3337
    %v3339 = vpack.c.bf16 %v3338, %v3338
    %v3341 = vlaneseq
    %v3342 = vshrl.u32 %v3341, 7
    %v3343 = vsub.s32 0, %v3342
    %v3344 = vrot.slane %v269, %v3343
    %v3362 = vunpack.c.l.b16 %v253
    %v3363 = vunpack.c.l.b16 %v254
    %v3364 = vunpack.c.l.b16 %v255
    %v3365 = vunpack.c.l.b16 %v256
    %v3366 = vunpack.c.l.b16 %v257
    %v3367 = vunpack.c.l.b16 %v258
    %v3368 = vunpack.c.l.b16 %v259
    %v3369 = vunpack.c.l.b16 %v260
    %v3370 = vunpack.c.l.b16 %v261
    %v3371 = vunpack.c.l.b16 %v262
    %v3372 = vunpack.c.l.b16 %v263
    %v3373 = vunpack.c.l.b16 %v264
    %v3374 = vunpack.c.l.b16 %v265
    %v3375 = vunpack.c.l.b16 %v266
    %v3376 = vunpack.c.l.b16 %v267
    %v3377 = vunpack.c.l.b16 %v268
    %v3378 = vpack.c.b16 %v3363, %v3362
    %v3379 = vpack.c.b16 %v3365, %v3364
    %v3380 = vpack.c.b16 %v3367, %v3366
    %v3381 = vpack.c.b16 %v3369, %v3368
    %v3382 = vpack.c.b16 %v3371, %v3370
    %v3383 = vpack.c.b16 %v3373, %v3372
    %v3384 = vpack.c.b16 %v3375, %v3374
    %v3385 = vpack.c.b16 %v3377, %v3376
    %3394 = vmatprep.subr.bf16.mxu0 0
    %3395 = vmatpush1.bf16.msra.mxu0 %v3385
    %3396 = vmatprep.subr.bf16.mxu0 0
    %3397 = vmatpush1.bf16.msra.mxu0 %v3384
    %3398 = vmatprep.subr.bf16.mxu0 0
    %3399 = vmatpush1.bf16.msra.mxu0 %v3383
    %3400 = vmatprep.subr.bf16.mxu0 0
    %3401 = vmatpush1.bf16.msra.mxu0 %v3382
    %3402 = vmatprep.subr.bf16.mxu0 0
    %3403 = vmatpush1.bf16.msra.mxu0 %v3381
    %3404 = vmatprep.subr.bf16.mxu0 0
    %3405 = vmatpush1.bf16.msra.mxu0 %v3380
    %3406 = vmatprep.subr.bf16.mxu0 0
    %3407 = vmatpush1.bf16.msra.mxu0 %v3379
    %3408 = vmatprep.subr.bf16.mxu0 0
    %3409 = vmatpush1.bf16.msra.mxu0 %v3378
    %3410 = vmatprep.subr.bf16.mxu0 0
    %3411 = vmatpush2.bf16.msra.mxu0 0
    %3412 = vmatprep.subr.bf16.mxu0 0
    %3413 = vmatpush2.bf16.msra.mxu0 0
    %3414 = vmatprep.subr.bf16.mxu0 0
    %3415 = vmatpush2.bf16.msra.mxu0 0
    %3416 = vmatprep.subr.bf16.mxu0 0
    %3417 = vmatpush2.bf16.msra.mxu0 0
    %3418 = vmatprep.subr.bf16.mxu0 0
    %3419 = vmatpush2.bf16.msra.mxu0 0
    %3420 = vmatprep.subr.bf16.mxu0 0
    %3421 = vmatpush2.bf16.msra.mxu0 0
    %3422 = vmatprep.subr.bf16.mxu0 0
    %3423 = vmatpush2.bf16.msra.mxu0 0
    %3424 = vmatprep.subr.bf16.mxu0 0
    %3425 = vmatpush2.bf16.msra.mxu0 0
    %3426 = vmatprep.mubr.bf16.mxu0 0
    %3427 = vmatmul.mubr.bf16.gmra.mxu0 %v3339
    %v3428 = vpop.f32.mrf.mxu0
    %v3429 = vadd.f32 %v3344, %v3428
    %v3430 = vpop.f32.mrf.mxu0
    %v3431 = vpop.f32.mrf.mxu0
    %v3432 = vpop.f32.mrf.mxu0
    %3433 = vdwg.mxu0
    %3434 = vst [vmem:[#allocation19] sm:$0x3] %v3429
    // Predicated region
    $region126: #{diffpool_forward.1} parent=1 // pred_check
      _
    $region127: #{diffpool_forward.1} parent=1 // pred_check_branch
      %3436 = sbr.rel (0) target = $region129
    $region128: #{diffpool_forward.1} parent=1 // pred_region
      %s3438 = ssub.s32 32, 32
      %3439 = vsyncadd [#allocation4], %s3438
      %s3441 = sshll.u32 [#allocation19], 4
      %s3442 = int_to_ptr.vmem [resolvable:$true] %s3441
      %3444 = dma.vmem_to_hbm [thread:$0]  %s3442, 32, %s21, [#allocation4]
    $region129: #{diffpool_forward.1} parent=1 // pred_fallthru
      _
    // Predicated region
    $region130: #{diffpool_forward.1} parent=1 // pred_check
      _
    $region131: #{diffpool_forward.1} parent=1 // pred_check_branch
      %3446 = sbr.rel (0) target = $region133
    $region132: #{diffpool_forward.1} parent=1 // pred_region
      %3447 = dma.done [#allocation4], 32
    $region133: #{diffpool_forward.1} parent=1 // pred_fallthru
      _
    %3448 = vsyncpa [#allocation3], 1
    %3449 = vsyncpa [#allocation6], 1
    %3450 = vsyncpa [#allocation9], 1
    %3451 = vsyncpa [#allocation12], 1
    %3452 = vsyncpa [#allocation15], 1
    %3453 = vsyncpa [#allocation18], 1
    %3454 = vsyncpa [#allocation4], 1

</llo_original>
